<compile_context>
chip_gen: v5e
topology: v5e:2x2
jax: 0.10.0
libtpu: 0.0.40
codegen_flags: <defaults>
</compile_context>

<pallas_src>
import numpy as np
import jax
import jax.numpy as jnp
from jax.experimental import pallas as pl
from jax.experimental.pallas import tpu as pltpu


def _round_up(x, m):
    return ((x + m - 1) // m) * m


# ----------------------------- Pallas kernel -------------------------------
def _power_spec_kernel(frames_ref, basis_ref, out_ref):
    """frames (tm, K_pad) bf16 @ fused [cos|sin] basis (K_pad, 2*n_bins) bf16
    with f32 accumulation on the MXU, then |X|^2 fused before the store."""
    n_bins = out_ref.shape[-1]
    prod = jnp.dot(frames_ref[...], basis_ref[...],
                   preferred_element_type=jnp.float32)        # (tm, 2*n_bins) f32
    re = prod[:, :n_bins]                                      # 128-aligned slices
    im = prod[:, n_bins:]
    out_ref[...] = re * re + im * im                           # power=2 -> |X|^2


def _power_spectrum_pallas(frames2d, basis, *, tm):
    M, K = frames2d.shape
    Kb, N2 = basis.shape
    n_bins = N2 // 2
    assert K == Kb and M % tm == 0 and tm % 8 == 0
    assert K % 128 == 0 and n_bins % 128 == 0
    return pl.pallas_call(
        _power_spec_kernel,
        out_shape=jax.ShapeDtypeStruct((M, n_bins), jnp.float32),
        grid=(M // tm,),
        in_specs=[
            pl.BlockSpec((tm, K), lambda i: (i, 0)),           # frames row tile
            pl.BlockSpec((K, N2), lambda i: (0, 0)),           # fused basis (const)
        ],
        out_specs=pl.BlockSpec((tm, n_bins), lambda i: (i, 0)),  # lane-dense (512)
        compiler_params=pltpu.CompilerParams(
            dimension_semantics=("parallel",),                 # megacore over M tiles
            vmem_limit_bytes=32 * 1024 * 1024),
    )(frames2d, basis)


# ------------------------------ glue (JAX / numpy) ---------------------------
def _make_window(n_fft, win_length):
    # torch.hann_window(win_length) is periodic: 0.5*(1 - cos(2*pi*n/N)),
    # centered inside n_fft exactly like torch.stft does.
    n = np.arange(win_length, dtype=np.float64)
    w = 0.5 * (1.0 - np.cos(2.0 * np.pi * n / win_length))
    left = (n_fft - win_length) // 2
    window = np.zeros(n_fft, dtype=np.float64)
    window[left:left + win_length] = w
    return window


def _make_fused_dft_basis(n_fft, n_bins, k_pad):
    k = np.arange(n_fft, dtype=np.float64)
    f = np.arange(n_bins, dtype=np.float64)
    ang = 2.0 * np.pi * np.outer(k, f) / n_fft
    basis = np.concatenate([np.cos(ang), -np.sin(ang)], axis=1)   # (n_fft, 2*n_bins)
    return np.pad(basis, ((0, k_pad - n_fft), (0, 0)))            # zero-pad K rows


def audio_transform(wav, n_fft=1023, return_debug=False):
    """wav: (B, T) float32 -> (B, n_fft//2+1, n_frames) float32 power spectrogram."""
    win_length = 400
    hop_length = win_length // 4                               # 100
    pad = win_length * 2 + 200                                 # 1000
    n_bins = n_fft // 2 + 1                                    # 512 (onesided)
    half = n_fft // 2                                          # 511 (center pad)

    B, T = wav.shape
    # 1) Spectrogram's `pad`: constant zero-pad both sides.
    x = jnp.pad(wav, ((0, 0), (pad, pad)))
    L = x.shape[1]
    # 2) torch.stft center=True, pad_mode="reflect".
    x = jnp.pad(x, ((0, 0), (half, half)), mode="reflect")
    n_frames = 1 + (L + 2 * half - n_fft) // hop_length

    # 3) frame + window.
    # TODO(synk): for long audio, build the (tm, n_fft) frame tile inside the
    # kernel from the padded signal (hop=100) to avoid this ~10x HBM expansion.
    window = _make_window(n_fft, win_length)
    starts = jnp.arange(n_frames) * hop_length
    idx = starts[:, None] + jnp.arange(n_fft)[None, :]         # (n_frames, n_fft)
    frames = x[:, idx] * jnp.asarray(window, jnp.float32)      # (B, n_frames, n_fft)

    # 4) TPU-friendly shapes: K -> 1024, M tiled by tm (<=512 rows).
    M = B * n_frames
    K_pad = _round_up(n_fft, 128)                              # 1024
    tm = _round_up(M, 8) if M <= 512 else 512
    M_pad = _round_up(M, tm)
    frames2d = frames.reshape(M, n_fft)
    frames2d = jnp.pad(frames2d, ((0, M_pad - M), (0, K_pad - n_fft)))

    basis64 = _make_fused_dft_basis(n_fft, n_bins, K_pad)      # (K_pad, 2*n_bins) f64
    basis_bf16 = jnp.asarray(basis64, jnp.bfloat16)
    frames_bf16 = frames2d.astype(jnp.bfloat16)

    # 5) hot path: single fused matmul + |.|^2 on the MXU (bf16 in, f32 accumulate).
    spec2d = _power_spectrum_pallas(frames_bf16, basis_bf16, tm=tm)  # (M_pad, n_bins)

    # 6) back to torchaudio layout (..., freq, time).
    spec = spec2d[:M].reshape(B, n_frames, n_bins)
    spec = jnp.transpose(spec, (0, 2, 1))
    if return_debug:
        return spec, frames2d, basis64
    return spec


# ------------------------------ main / check --------------------------------
if __name__ == "__main__":
    key = jax.random.PRNGKey(0)
    wav = jax.random.normal(key, (2, 400), dtype=jnp.float32)   # (batch, time)

    spec, frames2d_f32, basis64 = audio_transform(wav, return_debug=True)
    spec = jax.block_until_ready(spec)

    B, T = wav.shape
    n_fft, win_length = 1023, 400
    hop, pad = win_length // 4, win_length * 2 + 200
    n_bins = n_fft // 2 + 1
    exp_frames = 1 + (T + 2 * pad + 2 * (n_fft // 2) - n_fft) // hop
    assert spec.shape == (B, n_bins, exp_frames), spec.shape
    assert spec.dtype == jnp.float32

    # float64 reference of the same math (f32 frames, exact DFT basis); this
    # checks the bf16-operand / f32-accumulate kernel path end-to-end.
    fr64 = np.asarray(frames2d_f32, dtype=np.float64)
    prod = fr64 @ basis64
    re, im = prod[:, :n_bins], prod[:, n_bins:]
    ref2d = re * re + im * im
    M = B * exp_frames
    ref = ref2d[:M].reshape(B, exp_frames, n_bins).transpose(0, 2, 1)

    np.testing.assert_allclose(np.asarray(spec), ref,
                               rtol=5e-2, atol=2e-2 * float(ref.max()))
    print("KERNEL_OK")
</pallas_src>

<mosaic_0001>
module attributes {stable_mosaic.version = 11 : i64} {
  func.func @_power_spec_kernel(%arg0: i32, %arg1: memref<48x1024xbf16, #tpu.memory_space<vmem>>, %arg2: memref<1024x1024xbf16, #tpu.memory_space<vmem>>, %arg3: memref<48x512xf32, #tpu.memory_space<vmem>>) attributes {dimension_semantics = [#tpu.dimension_semantics<parallel>], iteration_bounds = array<i64: 1>, scalar_prefetch = 0 : i64, scratch_operands = 0 : i64, tpu.core_type = #tpu.core_type<tc>, window_params = [{transform_indices = @transform_0, window_bounds = array<i64: 48, 1024>}, {pipeline_mode = #tpu.pipeline_mode<synchronous>, transform_indices = @transform_1, window_bounds = array<i64: 1024, 1024>}, {transform_indices = @transform_2, window_bounds = array<i64: 48, 512>}]} {
    %c0 = arith.constant 0 : index
    %c0_0 = arith.constant 0 : index
    %0 = vector.load %arg1[%c0, %c0_0] : memref<48x1024xbf16, #tpu.memory_space<vmem>>, vector<48x1024xbf16>
    %c0_1 = arith.constant 0 : index
    %c0_2 = arith.constant 0 : index
    %1 = vector.load %arg2[%c0_1, %c0_2] : memref<1024x1024xbf16, #tpu.memory_space<vmem>>, vector<1024x1024xbf16>
    %cst = arith.constant dense<0.000000e+00> : vector<48x1024xf32>
    %2 = tpu.matmul %0, %1, %cst {dimension_numbers = #tpu.dot_dimension_numbers<[1], [0], [0], [1], [0, 0, 1, 1], [], []>} : vector<48x1024xbf16>, vector<1024x1024xbf16>, vector<48x1024xf32> -> vector<48x1024xf32>
    %3 = vector.extract_strided_slice %2 {offsets = [0, 0], sizes = [48, 512], strides = [1, 1]} : vector<48x1024xf32> to vector<48x512xf32>
    %4 = vector.extract_strided_slice %2 {offsets = [0, 512], sizes = [48, 512], strides = [1, 1]} : vector<48x1024xf32> to vector<48x512xf32>
    %5 = arith.mulf %3, %3 : vector<48x512xf32>
    %6 = arith.mulf %4, %4 : vector<48x512xf32>
    %7 = arith.addf %5, %6 : vector<48x512xf32>
    %c0_3 = arith.constant 0 : index
    %c0_4 = arith.constant 0 : index
    %8 = vector.load %arg3[%c0_3, %c0_4] : memref<48x512xf32, #tpu.memory_space<vmem>>, vector<48x512xf32>
    tpu.vector_store %arg3[%c0_3, %c0_4], %7 {strides = array<i32>} : memref<48x512xf32, #tpu.memory_space<vmem>>, vector<48x512xf32>,
    return
  }
  func.func @transform_0(%arg0: i32) -> (i32, i32) {
    %c0_i32 = arith.constant 0 : i32
    %c0_i32_0 = arith.constant 0 : i32
    return %arg0, %c0_i32 : i32, i32
  }
  func.func @transform_1(%arg0: i32) -> (i32, i32) {
    %c0_i32 = arith.constant 0 : i32
    %c0_i32_0 = arith.constant 0 : i32
    %c0_i32_1 = arith.constant 0 : i32
    return %c0_i32, %c0_i32_0 : i32, i32
  }
  func.func @transform_2(%arg0: i32) -> (i32, i32) {
    %c0_i32 = arith.constant 0 : i32
    %c0_i32_0 = arith.constant 0 : i32
    return %arg0, %c0_i32 : i32, i32
  }
}

</mosaic_0001>

<llo_original>
// kernel: tpu_custom_call.1
$region0: #{tpu_custom_call.1}
  #allocation0 [shape = 'u32[]', space=smem, size = 0x4, offset = 0x4, fixed_abs, tag = 'smem constant byte address 0x4 - core index']
  #allocation1 [shape = 'u32[72,128]{1,0:T(1,128)}', space=vmem, size = 0x9000, scoped, tag = 'internal scratch']
  %s0 = inlined_call_operand.hbm [shape: bf16[48,1024], index: 0, kind: input, shape index: {}]
  %s1 = inlined_call_operand.hbm [shape: bf16[1024,1024], index: 1, kind: input, shape index: {}]
  %s2 = inlined_call_operand.hbm [shape: f32[48,512], index: 2, kind: output, shape index: {}]
  %s3 = sld [smem:[#allocation0]]
  $region26: #{tpu_custom_call.1} parent=0
    _
  %s5 = ssub.s32 1, %s3
  %s6 = scalar_select 0, %s5, %s3
  $region1: #{tpu_custom_call.1} parent=0
    #allocation2 [shape = 'u8[98304]{0}', space=vmem, size = 0x18000, scoped, tag = 'input window, operand 0, single buffered']
    #allocation3 [shape = 's32[1]{0}', space=sflag, size = 0x4, scoped, tag = 'scoped memory for tpu_custom_call.1']
    #allocation4 [shape = 's32[1]{0}', space=sflag, size = 0x4, scoped, tag = 'scoped memory for tpu_custom_call.1']
    #allocation5 [shape = 'u8[2097152]{0}', space=vmem, size = 0x200000, scoped, tag = 'input window, operand 1, single buffered']
    #allocation6 [shape = 's32[1]{0}', space=sflag, size = 0x4, scoped, tag = 'scoped memory for tpu_custom_call.1']
    #allocation7 [shape = 'u8[98304]{0}', space=vmem, size = 0x18000, scoped, tag = 'output window, operand 0, single buffered']
    %7 = vsyncpa [#allocation3], 0
    %8 = vsyncpa [#allocation6], 0
    %9 = vsyncpa [#allocation4], 0
    // Predicated region
    $region2: #{tpu_custom_call.1} parent=1 // pred_check
      _
    $region3: #{tpu_custom_call.1} parent=1 // pred_check_branch
      %11 = sbr.rel (0) target = $region5
    $region4: #{tpu_custom_call.1} parent=1 // pred_region
      %13 = vsyncadd [#allocation3], 0
      %s14 = sshll.u32 %s0, 4
      %s15 = int_to_ptr.hbm [resolvable:$true] %s14
      %s16 = sshll.u32 [#allocation2], 4
      %s17 = int_to_ptr.vmem [resolvable:$true] %s16
      %22 = dma.hbm_to_vmem [thread:$0]  %s15, 3072, %s17, [#allocation3], 512, 512, 32
    $region5: #{tpu_custom_call.1} parent=1 // pred_fallthru
      _
    // Predicated region
    $region6: #{tpu_custom_call.1} parent=1 // pred_check
      _
    $region7: #{tpu_custom_call.1} parent=1 // pred_check_branch
      %24 = sbr.rel (0) target = $region9
    $region8: #{tpu_custom_call.1} parent=1 // pred_region
      %26 = vsyncadd [#allocation6], 0
      %s27 = sshll.u32 %s1, 4
      %s28 = int_to_ptr.hbm [resolvable:$true] %s27
      %s29 = sshll.u32 [#allocation5], 4
      %s30 = int_to_ptr.vmem [resolvable:$true] %s29
      %35 = dma.hbm_to_vmem [thread:$0]  %s28, 65536, %s30, [#allocation6], 512, 512, 32
    $region9: #{tpu_custom_call.1} parent=1 // pred_fallthru
      _
    // Predicated region
    $region10: #{tpu_custom_call.1} parent=1 // pred_check
      _
    $region11: #{tpu_custom_call.1} parent=1 // pred_check_branch
      %37 = sbr.rel (0) target = $region13
    $region12: #{tpu_custom_call.1} parent=1 // pred_region
      %39 = dma.done [#allocation3], 3072
    $region13: #{tpu_custom_call.1} parent=1 // pred_fallthru
      _
    // Predicated region
    $region14: #{tpu_custom_call.1} parent=1 // pred_check
      _
    $region15: #{tpu_custom_call.1} parent=1 // pred_check_branch
      %41 = sbr.rel (0) target = $region17
    $region16: #{tpu_custom_call.1} parent=1 // pred_region
      %43 = dma.done [#allocation6], 65536
    $region17: #{tpu_custom_call.1} parent=1 // pred_fallthru
      _
    %v44 = vld [vmem:[#allocation2] sm:$0xff]
    %v45 = vld [vmem:[#allocation2 + $0x8] sm:$0xff]
    %v46 = vld [vmem:[#allocation2 + $0x10] sm:$0xff]
    %v47 = vld [vmem:[#allocation2 + $0x18] sm:$0xff]
    %v48 = vld [vmem:[#allocation2 + $0x20] sm:$0xff]
    %v49 = vld [vmem:[#allocation2 + $0x28] sm:$0xff]
    %v50 = vld [vmem:[#allocation2 + $0x30] sm:$0xff]
    %v51 = vld [vmem:[#allocation2 + $0x38] sm:$0xff]
    %v52 = vld [vmem:[#allocation2 + $0x40] sm:$0xff]
    %v53 = vld [vmem:[#allocation2 + $0x48] sm:$0xff]
    %v54 = vld [vmem:[#allocation2 + $0x50] sm:$0xff]
    %v55 = vld [vmem:[#allocation2 + $0x58] sm:$0xff]
    %v56 = vld [vmem:[#allocation2 + $0x60] sm:$0xff]
    %v57 = vld [vmem:[#allocation2 + $0x68] sm:$0xff]
    %v58 = vld [vmem:[#allocation2 + $0x70] sm:$0xff]
    %v59 = vld [vmem:[#allocation2 + $0x78] sm:$0xff]
    %v60 = vld [vmem:[#allocation2 + $0x80] sm:$0xff]
    %v61 = vld [vmem:[#allocation2 + $0x88] sm:$0xff]
    %v62 = vld [vmem:[#allocation2 + $0x90] sm:$0xff]
    %v63 = vld [vmem:[#allocation2 + $0x98] sm:$0xff]
    %v64 = vld [vmem:[#allocation2 + $0xa0] sm:$0xff]
    %v65 = vld [vmem:[#allocation2 + $0xa8] sm:$0xff]
    %v66 = vld [vmem:[#allocation2 + $0xb0] sm:$0xff]
    %v67 = vld [vmem:[#allocation2 + $0xb8] sm:$0xff]
    %v68 = vld [vmem:[#allocation5] sm:$0xff]
    %v69 = vld [vmem:[#allocation5 + $0x8] sm:$0xff]
    %v70 = vld [vmem:[#allocation5 + $0x10] sm:$0xff]
    %v71 = vld [vmem:[#allocation5 + $0x18] sm:$0xff]
    %v72 = vld [vmem:[#allocation5 + $0x20] sm:$0xff]
    %v73 = vld [vmem:[#allocation5 + $0x28] sm:$0xff]
    %v74 = vld [vmem:[#allocation5 + $0x30] sm:$0xff]
    %v75 = vld [vmem:[#allocation5 + $0x38] sm:$0xff]
    %v76 = vld [vmem:[#allocation5 + $0x40] sm:$0xff]
    %v77 = vld [vmem:[#allocation5 + $0x48] sm:$0xff]
    %v78 = vld [vmem:[#allocation5 + $0x50] sm:$0xff]
    %v79 = vld [vmem:[#allocation5 + $0x58] sm:$0xff]
    %v80 = vld [vmem:[#allocation5 + $0x60] sm:$0xff]
    %v81 = vld [vmem:[#allocation5 + $0x68] sm:$0xff]
    %v82 = vld [vmem:[#allocation5 + $0x70] sm:$0xff]
    %v83 = vld [vmem:[#allocation5 + $0x78] sm:$0xff]
    %v84 = vld [vmem:[#allocation5 + $0x80] sm:$0xff]
    %v85 = vld [vmem:[#allocation5 + $0x88] sm:$0xff]
    %v86 = vld [vmem:[#allocation5 + $0x90] sm:$0xff]
    %v87 = vld [vmem:[#allocation5 + $0x98] sm:$0xff]
    %v88 = vld [vmem:[#allocation5 + $0xa0] sm:$0xff]
    %v89 = vld [vmem:[#allocation5 + $0xa8] sm:$0xff]
    %v90 = vld [vmem:[#allocation5 + $0xb0] sm:$0xff]
    %v91 = vld [vmem:[#allocation5 + $0xb8] sm:$0xff]
    %v92 = vld [vmem:[#allocation5 + $0xc0] sm:$0xff]
    %v93 = vld [vmem:[#allocation5 + $0xc8] sm:$0xff]
    %v94 = vld [vmem:[#allocation5 + $0xd0] sm:$0xff]
    %v95 = vld [vmem:[#allocation5 + $0xd8] sm:$0xff]
    %v96 = vld [vmem:[#allocation5 + $0xe0] sm:$0xff]
    %v97 = vld [vmem:[#allocation5 + $0xe8] sm:$0xff]
    %v98 = vld [vmem:[#allocation5 + $0xf0] sm:$0xff]
    %v99 = vld [vmem:[#allocation5 + $0xf8] sm:$0xff]
    %v100 = vld [vmem:[#allocation5 + $0x100] sm:$0xff]
    %v101 = vld [vmem:[#allocation5 + $0x108] sm:$0xff]
    %v102 = vld [vmem:[#allocation5 + $0x110] sm:$0xff]
    %v103 = vld [vmem:[#allocation5 + $0x118] sm:$0xff]
    %v104 = vld [vmem:[#allocation5 + $0x120] sm:$0xff]
    %v105 = vld [vmem:[#allocation5 + $0x128] sm:$0xff]
    %v106 = vld [vmem:[#allocation5 + $0x130] sm:$0xff]
    %v107 = vld [vmem:[#allocation5 + $0x138] sm:$0xff]
    %v108 = vld [vmem:[#allocation5 + $0x140] sm:$0xff]
    %v109 = vld [vmem:[#allocation5 + $0x148] sm:$0xff]
    %v110 = vld [vmem:[#allocation5 + $0x150] sm:$0xff]
    %v111 = vld [vmem:[#allocation5 + $0x158] sm:$0xff]
    %v112 = vld [vmem:[#allocation5 + $0x160] sm:$0xff]
    %v113 = vld [vmem:[#allocation5 + $0x168] sm:$0xff]
    %v114 = vld [vmem:[#allocation5 + $0x170] sm:$0xff]
    %v115 = vld [vmem:[#allocation5 + $0x178] sm:$0xff]
    %v116 = vld [vmem:[#allocation5 + $0x180] sm:$0xff]
    %v117 = vld [vmem:[#allocation5 + $0x188] sm:$0xff]
    %v118 = vld [vmem:[#allocation5 + $0x190] sm:$0xff]
    %v119 = vld [vmem:[#allocation5 + $0x198] sm:$0xff]
    %v120 = vld [vmem:[#allocation5 + $0x1a0] sm:$0xff]
    %v121 = vld [vmem:[#allocation5 + $0x1a8] sm:$0xff]
    %v122 = vld [vmem:[#allocation5 + $0x1b0] sm:$0xff]
    %v123 = vld [vmem:[#allocation5 + $0x1b8] sm:$0xff]
    %v124 = vld [vmem:[#allocation5 + $0x1c0] sm:$0xff]
    %v125 = vld [vmem:[#allocation5 + $0x1c8] sm:$0xff]
    %v126 = vld [vmem:[#allocation5 + $0x1d0] sm:$0xff]
    %v127 = vld [vmem:[#allocation5 + $0x1d8] sm:$0xff]
    %v128 = vld [vmem:[#allocation5 + $0x1e0] sm:$0xff]
    %v129 = vld [vmem:[#allocation5 + $0x1e8] sm:$0xff]
    %v130 = vld [vmem:[#allocation5 + $0x1f0] sm:$0xff]
    %v131 = vld [vmem:[#allocation5 + $0x1f8] sm:$0xff]
    %v132 = vld [vmem:[#allocation5 + $0x200] sm:$0xff]
    %v133 = vld [vmem:[#allocation5 + $0x208] sm:$0xff]
    %v134 = vld [vmem:[#allocation5 + $0x210] sm:$0xff]
    %v135 = vld [vmem:[#allocation5 + $0x218] sm:$0xff]
    %v136 = vld [vmem:[#allocation5 + $0x220] sm:$0xff]
    %v137 = vld [vmem:[#allocation5 + $0x228] sm:$0xff]
    %v138 = vld [vmem:[#allocation5 + $0x230] sm:$0xff]
    %v139 = vld [vmem:[#allocation5 + $0x238] sm:$0xff]
    %v140 = vld [vmem:[#allocation5 + $0x240] sm:$0xff]
    %v141 = vld [vmem:[#allocation5 + $0x248] sm:$0xff]
    %v142 = vld [vmem:[#allocation5 + $0x250] sm:$0xff]
    %v143 = vld [vmem:[#allocation5 + $0x258] sm:$0xff]
    %v144 = vld [vmem:[#allocation5 + $0x260] sm:$0xff]
    %v145 = vld [vmem:[#allocation5 + $0x268] sm:$0xff]
    %v146 = vld [vmem:[#allocation5 + $0x270] sm:$0xff]
    %v147 = vld [vmem:[#allocation5 + $0x278] sm:$0xff]
    %v148 = vld [vmem:[#allocation5 + $0x280] sm:$0xff]
    %v149 = vld [vmem:[#allocation5 + $0x288] sm:$0xff]
    %v150 = vld [vmem:[#allocation5 + $0x290] sm:$0xff]
    %v151 = vld [vmem:[#allocation5 + $0x298] sm:$0xff]
    %v152 = vld [vmem:[#allocation5 + $0x2a0] sm:$0xff]
    %v153 = vld [vmem:[#allocation5 + $0x2a8] sm:$0xff]
    %v154 = vld [vmem:[#allocation5 + $0x2b0] sm:$0xff]
    %v155 = vld [vmem:[#allocation5 + $0x2b8] sm:$0xff]
    %v156 = vld [vmem:[#allocation5 + $0x2c0] sm:$0xff]
    %v157 = vld [vmem:[#allocation5 + $0x2c8] sm:$0xff]
    %v158 = vld [vmem:[#allocation5 + $0x2d0] sm:$0xff]
    %v159 = vld [vmem:[#allocation5 + $0x2d8] sm:$0xff]
    %v160 = vld [vmem:[#allocation5 + $0x2e0] sm:$0xff]
    %v161 = vld [vmem:[#allocation5 + $0x2e8] sm:$0xff]
    %v162 = vld [vmem:[#allocation5 + $0x2f0] sm:$0xff]
    %v163 = vld [vmem:[#allocation5 + $0x2f8] sm:$0xff]
    %v164 = vld [vmem:[#allocation5 + $0x300] sm:$0xff]
    %v165 = vld [vmem:[#allocation5 + $0x308] sm:$0xff]
    %v166 = vld [vmem:[#allocation5 + $0x310] sm:$0xff]
    %v167 = vld [vmem:[#allocation5 + $0x318] sm:$0xff]
    %v168 = vld [vmem:[#allocation5 + $0x320] sm:$0xff]
    %v169 = vld [vmem:[#allocation5 + $0x328] sm:$0xff]
    %v170 = vld [vmem:[#allocation5 + $0x330] sm:$0xff]
    %v171 = vld [vmem:[#allocation5 + $0x338] sm:$0xff]
    %v172 = vld [vmem:[#allocation5 + $0x340] sm:$0xff]
    %v173 = vld [vmem:[#allocation5 + $0x348] sm:$0xff]
    %v174 = vld [vmem:[#allocation5 + $0x350] sm:$0xff]
    %v175 = vld [vmem:[#allocation5 + $0x358] sm:$0xff]
    %v176 = vld [vmem:[#allocation5 + $0x360] sm:$0xff]
    %v177 = vld [vmem:[#allocation5 + $0x368] sm:$0xff]
    %v178 = vld [vmem:[#allocation5 + $0x370] sm:$0xff]
    %v179 = vld [vmem:[#allocation5 + $0x378] sm:$0xff]
    %v180 = vld [vmem:[#allocation5 + $0x380] sm:$0xff]
    %v181 = vld [vmem:[#allocation5 + $0x388] sm:$0xff]
    %v182 = vld [vmem:[#allocation5 + $0x390] sm:$0xff]
    %v183 = vld [vmem:[#allocation5 + $0x398] sm:$0xff]
    %v184 = vld [vmem:[#allocation5 + $0x3a0] sm:$0xff]
    %v185 = vld [vmem:[#allocation5 + $0x3a8] sm:$0xff]
    %v186 = vld [vmem:[#allocation5 + $0x3b0] sm:$0xff]
    %v187 = vld [vmem:[#allocation5 + $0x3b8] sm:$0xff]
    %v188 = vld [vmem:[#allocation5 + $0x3c0] sm:$0xff]
    %v189 = vld [vmem:[#allocation5 + $0x3c8] sm:$0xff]
    %v190 = vld [vmem:[#allocation5 + $0x3d0] sm:$0xff]
    %v191 = vld [vmem:[#allocation5 + $0x3d8] sm:$0xff]
    %v192 = vld [vmem:[#allocation5 + $0x3e0] sm:$0xff]
    %v193 = vld [vmem:[#allocation5 + $0x3e8] sm:$0xff]
    %v194 = vld [vmem:[#allocation5 + $0x3f0] sm:$0xff]
    %v195 = vld [vmem:[#allocation5 + $0x3f8] sm:$0xff]
    %v196 = vld [vmem:[#allocation5 + $0x400] sm:$0xff]
    %v197 = vld [vmem:[#allocation5 + $0x408] sm:$0xff]
    %v198 = vld [vmem:[#allocation5 + $0x410] sm:$0xff]
    %v199 = vld [vmem:[#allocation5 + $0x418] sm:$0xff]
    %v200 = vld [vmem:[#allocation5 + $0x420] sm:$0xff]
    %v201 = vld [vmem:[#allocation5 + $0x428] sm:$0xff]
    %v202 = vld [vmem:[#allocation5 + $0x430] sm:$0xff]
    %v203 = vld [vmem:[#allocation5 + $0x438] sm:$0xff]
    %v204 = vld [vmem:[#allocation5 + $0x440] sm:$0xff]
    %v205 = vld [vmem:[#allocation5 + $0x448] sm:$0xff]
    %v206 = vld [vmem:[#allocation5 + $0x450] sm:$0xff]
    %v207 = vld [vmem:[#allocation5 + $0x458] sm:$0xff]
    %v208 = vld [vmem:[#allocation5 + $0x460] sm:$0xff]
    %v209 = vld [vmem:[#allocation5 + $0x468] sm:$0xff]
    %v210 = vld [vmem:[#allocation5 + $0x470] sm:$0xff]
    %v211 = vld [vmem:[#allocation5 + $0x478] sm:$0xff]
    %v212 = vld [vmem:[#allocation5 + $0x480] sm:$0xff]
    %v213 = vld [vmem:[#allocation5 + $0x488] sm:$0xff]
    %v214 = vld [vmem:[#allocation5 + $0x490] sm:$0xff]
    %v215 = vld [vmem:[#allocation5 + $0x498] sm:$0xff]
    %v216 = vld [vmem:[#allocation5 + $0x4a0] sm:$0xff]
    %v217 = vld [vmem:[#allocation5 + $0x4a8] sm:$0xff]
    %v218 = vld [vmem:[#allocation5 + $0x4b0] sm:$0xff]
    %v219 = vld [vmem:[#allocation5 + $0x4b8] sm:$0xff]
    %v220 = vld [vmem:[#allocation5 + $0x4c0] sm:$0xff]
    %v221 = vld [vmem:[#allocation5 + $0x4c8] sm:$0xff]
    %v222 = vld [vmem:[#allocation5 + $0x4d0] sm:$0xff]
    %v223 = vld [vmem:[#allocation5 + $0x4d8] sm:$0xff]
    %v224 = vld [vmem:[#allocation5 + $0x4e0] sm:$0xff]
    %v225 = vld [vmem:[#allocation5 + $0x4e8] sm:$0xff]
    %v226 = vld [vmem:[#allocation5 + $0x4f0] sm:$0xff]
    %v227 = vld [vmem:[#allocation5 + $0x4f8] sm:$0xff]
    %v228 = vld [vmem:[#allocation5 + $0x500] sm:$0xff]
    %v229 = vld [vmem:[#allocation5 + $0x508] sm:$0xff]
    %v230 = vld [vmem:[#allocation5 + $0x510] sm:$0xff]
    %v231 = vld [vmem:[#allocation5 + $0x518] sm:$0xff]
    %v232 = vld [vmem:[#allocation5 + $0x520] sm:$0xff]
    %v233 = vld [vmem:[#allocation5 + $0x528] sm:$0xff]
    %v234 = vld [vmem:[#allocation5 + $0x530] sm:$0xff]
    %v235 = vld [vmem:[#allocation5 + $0x538] sm:$0xff]
    %v236 = vld [vmem:[#allocation5 + $0x540] sm:$0xff]
    %v237 = vld [vmem:[#allocation5 + $0x548] sm:$0xff]
    %v238 = vld [vmem:[#allocation5 + $0x550] sm:$0xff]
    %v239 = vld [vmem:[#allocation5 + $0x558] sm:$0xff]
    %v240 = vld [vmem:[#allocation5 + $0x560] sm:$0xff]
    %v241 = vld [vmem:[#allocation5 + $0x568] sm:$0xff]
    %v242 = vld [vmem:[#allocation5 + $0x570] sm:$0xff]
    %v243 = vld [vmem:[#allocation5 + $0x578] sm:$0xff]
    %v244 = vld [vmem:[#allocation5 + $0x580] sm:$0xff]
    %v245 = vld [vmem:[#allocation5 + $0x588] sm:$0xff]
    %v246 = vld [vmem:[#allocation5 + $0x590] sm:$0xff]
    %v247 = vld [vmem:[#allocation5 + $0x598] sm:$0xff]
    %v248 = vld [vmem:[#allocation5 + $0x5a0] sm:$0xff]
    %v249 = vld [vmem:[#allocation5 + $0x5a8] sm:$0xff]
    %v250 = vld [vmem:[#allocation5 + $0x5b0] sm:$0xff]
    %v251 = vld [vmem:[#allocation5 + $0x5b8] sm:$0xff]
    %v252 = vld [vmem:[#allocation5 + $0x5c0] sm:$0xff]
    %v253 = vld [vmem:[#allocation5 + $0x5c8] sm:$0xff]
    %v254 = vld [vmem:[#allocation5 + $0x5d0] sm:$0xff]
    %v255 = vld [vmem:[#allocation5 + $0x5d8] sm:$0xff]
    %v256 = vld [vmem:[#allocation5 + $0x5e0] sm:$0xff]
    %v257 = vld [vmem:[#allocation5 + $0x5e8] sm:$0xff]
    %v258 = vld [vmem:[#allocation5 + $0x5f0] sm:$0xff]
    %v259 = vld [vmem:[#allocation5 + $0x5f8] sm:$0xff]
    %v260 = vld [vmem:[#allocation5 + $0x600] sm:$0xff]
    %v261 = vld [vmem:[#allocation5 + $0x608] sm:$0xff]
    %v262 = vld [vmem:[#allocation5 + $0x610] sm:$0xff]
    %v263 = vld [vmem:[#allocation5 + $0x618] sm:$0xff]
    %v264 = vld [vmem:[#allocation5 + $0x620] sm:$0xff]
    %v265 = vld [vmem:[#allocation5 + $0x628] sm:$0xff]
    %v266 = vld [vmem:[#allocation5 + $0x630] sm:$0xff]
    %v267 = vld [vmem:[#allocation5 + $0x638] sm:$0xff]
    %v268 = vld [vmem:[#allocation5 + $0x640] sm:$0xff]
    %v269 = vld [vmem:[#allocation5 + $0x648] sm:$0xff]
    %v270 = vld [vmem:[#allocation5 + $0x650] sm:$0xff]
    %v271 = vld [vmem:[#allocation5 + $0x658] sm:$0xff]
    %v272 = vld [vmem:[#allocation5 + $0x660] sm:$0xff]
    %v273 = vld [vmem:[#allocation5 + $0x668] sm:$0xff]
    %v274 = vld [vmem:[#allocation5 + $0x670] sm:$0xff]
    %v275 = vld [vmem:[#allocation5 + $0x678] sm:$0xff]
    %v276 = vld [vmem:[#allocation5 + $0x680] sm:$0xff]
    %v277 = vld [vmem:[#allocation5 + $0x688] sm:$0xff]
    %v278 = vld [vmem:[#allocation5 + $0x690] sm:$0xff]
    %v279 = vld [vmem:[#allocation5 + $0x698] sm:$0xff]
    %v280 = vld [vmem:[#allocation5 + $0x6a0] sm:$0xff]
    %v281 = vld [vmem:[#allocation5 + $0x6a8] sm:$0xff]
    %v282 = vld [vmem:[#allocation5 + $0x6b0] sm:$0xff]
    %v283 = vld [vmem:[#allocation5 + $0x6b8] sm:$0xff]
    %v284 = vld [vmem:[#allocation5 + $0x6c0] sm:$0xff]
    %v285 = vld [vmem:[#allocation5 + $0x6c8] sm:$0xff]
    %v286 = vld [vmem:[#allocation5 + $0x6d0] sm:$0xff]
    %v287 = vld [vmem:[#allocation5 + $0x6d8] sm:$0xff]
    %v288 = vld [vmem:[#allocation5 + $0x6e0] sm:$0xff]
    %v289 = vld [vmem:[#allocation5 + $0x6e8] sm:$0xff]
    %v290 = vld [vmem:[#allocation5 + $0x6f0] sm:$0xff]
    %v291 = vld [vmem:[#allocation5 + $0x6f8] sm:$0xff]
    %v292 = vld [vmem:[#allocation5 + $0x700] sm:$0xff]
    %v293 = vld [vmem:[#allocation5 + $0x708] sm:$0xff]
    %v294 = vld [vmem:[#allocation5 + $0x710] sm:$0xff]
    %v295 = vld [vmem:[#allocation5 + $0x718] sm:$0xff]
    %v296 = vld [vmem:[#allocation5 + $0x720] sm:$0xff]
    %v297 = vld [vmem:[#allocation5 + $0x728] sm:$0xff]
    %v298 = vld [vmem:[#allocation5 + $0x730] sm:$0xff]
    %v299 = vld [vmem:[#allocation5 + $0x738] sm:$0xff]
    %v300 = vld [vmem:[#allocation5 + $0x740] sm:$0xff]
    %v301 = vld [vmem:[#allocation5 + $0x748] sm:$0xff]
    %v302 = vld [vmem:[#allocation5 + $0x750] sm:$0xff]
    %v303 = vld [vmem:[#allocation5 + $0x758] sm:$0xff]
    %v304 = vld [vmem:[#allocation5 + $0x760] sm:$0xff]
    %v305 = vld [vmem:[#allocation5 + $0x768] sm:$0xff]
    %v306 = vld [vmem:[#allocation5 + $0x770] sm:$0xff]
    %v307 = vld [vmem:[#allocation5 + $0x778] sm:$0xff]
    %v308 = vld [vmem:[#allocation5 + $0x780] sm:$0xff]
    %v309 = vld [vmem:[#allocation5 + $0x788] sm:$0xff]
    %v310 = vld [vmem:[#allocation5 + $0x790] sm:$0xff]
    %v311 = vld [vmem:[#allocation5 + $0x798] sm:$0xff]
    %v312 = vld [vmem:[#allocation5 + $0x7a0] sm:$0xff]
    %v313 = vld [vmem:[#allocation5 + $0x7a8] sm:$0xff]
    %v314 = vld [vmem:[#allocation5 + $0x7b0] sm:$0xff]
    %v315 = vld [vmem:[#allocation5 + $0x7b8] sm:$0xff]
    %v316 = vld [vmem:[#allocation5 + $0x7c0] sm:$0xff]
    %v317 = vld [vmem:[#allocation5 + $0x7c8] sm:$0xff]
    %v318 = vld [vmem:[#allocation5 + $0x7d0] sm:$0xff]
    %v319 = vld [vmem:[#allocation5 + $0x7d8] sm:$0xff]
    %v320 = vld [vmem:[#allocation5 + $0x7e0] sm:$0xff]
    %v321 = vld [vmem:[#allocation5 + $0x7e8] sm:$0xff]
    %v322 = vld [vmem:[#allocation5 + $0x7f0] sm:$0xff]
    %v323 = vld [vmem:[#allocation5 + $0x7f8] sm:$0xff]
    %v324 = vld [vmem:[#allocation5 + $0x800] sm:$0xff]
    %v325 = vld [vmem:[#allocation5 + $0x808] sm:$0xff]
    %v326 = vld [vmem:[#allocation5 + $0x810] sm:$0xff]
    %v327 = vld [vmem:[#allocation5 + $0x818] sm:$0xff]
    %v328 = vld [vmem:[#allocation5 + $0x820] sm:$0xff]
    %v329 = vld [vmem:[#allocation5 + $0x828] sm:$0xff]
    %v330 = vld [vmem:[#allocation5 + $0x830] sm:$0xff]
    %v331 = vld [vmem:[#allocation5 + $0x838] sm:$0xff]
    %v332 = vld [vmem:[#allocation5 + $0x840] sm:$0xff]
    %v333 = vld [vmem:[#allocation5 + $0x848] sm:$0xff]
    %v334 = vld [vmem:[#allocation5 + $0x850] sm:$0xff]
    %v335 = vld [vmem:[#allocation5 + $0x858] sm:$0xff]
    %v336 = vld [vmem:[#allocation5 + $0x860] sm:$0xff]
    %v337 = vld [vmem:[#allocation5 + $0x868] sm:$0xff]
    %v338 = vld [vmem:[#allocation5 + $0x870] sm:$0xff]
    %v339 = vld [vmem:[#allocation5 + $0x878] sm:$0xff]
    %v340 = vld [vmem:[#allocation5 + $0x880] sm:$0xff]
    %v341 = vld [vmem:[#allocation5 + $0x888] sm:$0xff]
    %v342 = vld [vmem:[#allocation5 + $0x890] sm:$0xff]
    %v343 = vld [vmem:[#allocation5 + $0x898] sm:$0xff]
    %v344 = vld [vmem:[#allocation5 + $0x8a0] sm:$0xff]
    %v345 = vld [vmem:[#allocation5 + $0x8a8] sm:$0xff]
    %v346 = vld [vmem:[#allocation5 + $0x8b0] sm:$0xff]
    %v347 = vld [vmem:[#allocation5 + $0x8b8] sm:$0xff]
    %v348 = vld [vmem:[#allocation5 + $0x8c0] sm:$0xff]
    %v349 = vld [vmem:[#allocation5 + $0x8c8] sm:$0xff]
    %v350 = vld [vmem:[#allocation5 + $0x8d0] sm:$0xff]
    %v351 = vld [vmem:[#allocation5 + $0x8d8] sm:$0xff]
    %v352 = vld [vmem:[#allocation5 + $0x8e0] sm:$0xff]
    %v353 = vld [vmem:[#allocation5 + $0x8e8] sm:$0xff]
    %v354 = vld [vmem:[#allocation5 + $0x8f0] sm:$0xff]
    %v355 = vld [vmem:[#allocation5 + $0x8f8] sm:$0xff]
    %v356 = vld [vmem:[#allocation5 + $0x900] sm:$0xff]
    %v357 = vld [vmem:[#allocation5 + $0x908] sm:$0xff]
    %v358 = vld [vmem:[#allocation5 + $0x910] sm:$0xff]
    %v359 = vld [vmem:[#allocation5 + $0x918] sm:$0xff]
    %v360 = vld [vmem:[#allocation5 + $0x920] sm:$0xff]
    %v361 = vld [vmem:[#allocation5 + $0x928] sm:$0xff]
    %v362 = vld [vmem:[#allocation5 + $0x930] sm:$0xff]
    %v363 = vld [vmem:[#allocation5 + $0x938] sm:$0xff]
    %v364 = vld [vmem:[#allocation5 + $0x940] sm:$0xff]
    %v365 = vld [vmem:[#allocation5 + $0x948] sm:$0xff]
    %v366 = vld [vmem:[#allocation5 + $0x950] sm:$0xff]
    %v367 = vld [vmem:[#allocation5 + $0x958] sm:$0xff]
    %v368 = vld [vmem:[#allocation5 + $0x960] sm:$0xff]
    %v369 = vld [vmem:[#allocation5 + $0x968] sm:$0xff]
    %v370 = vld [vmem:[#allocation5 + $0x970] sm:$0xff]
    %v371 = vld [vmem:[#allocation5 + $0x978] sm:$0xff]
    %v372 = vld [vmem:[#allocation5 + $0x980] sm:$0xff]
    %v373 = vld [vmem:[#allocation5 + $0x988] sm:$0xff]
    %v374 = vld [vmem:[#allocation5 + $0x990] sm:$0xff]
    %v375 = vld [vmem:[#allocation5 + $0x998] sm:$0xff]
    %v376 = vld [vmem:[#allocation5 + $0x9a0] sm:$0xff]
    %v377 = vld [vmem:[#allocation5 + $0x9a8] sm:$0xff]
    %v378 = vld [vmem:[#allocation5 + $0x9b0] sm:$0xff]
    %v379 = vld [vmem:[#allocation5 + $0x9b8] sm:$0xff]
    %v380 = vld [vmem:[#allocation5 + $0x9c0] sm:$0xff]
    %v381 = vld [vmem:[#allocation5 + $0x9c8] sm:$0xff]
    %v382 = vld [vmem:[#allocation5 + $0x9d0] sm:$0xff]
    %v383 = vld [vmem:[#allocation5 + $0x9d8] sm:$0xff]
    %v384 = vld [vmem:[#allocation5 + $0x9e0] sm:$0xff]
    %v385 = vld [vmem:[#allocation5 + $0x9e8] sm:$0xff]
    %v386 = vld [vmem:[#allocation5 + $0x9f0] sm:$0xff]
    %v387 = vld [vmem:[#allocation5 + $0x9f8] sm:$0xff]
    %v388 = vld [vmem:[#allocation5 + $0xa00] sm:$0xff]
    %v389 = vld [vmem:[#allocation5 + $0xa08] sm:$0xff]
    %v390 = vld [vmem:[#allocation5 + $0xa10] sm:$0xff]
    %v391 = vld [vmem:[#allocation5 + $0xa18] sm:$0xff]
    %v392 = vld [vmem:[#allocation5 + $0xa20] sm:$0xff]
    %v393 = vld [vmem:[#allocation5 + $0xa28] sm:$0xff]
    %v394 = vld [vmem:[#allocation5 + $0xa30] sm:$0xff]
    %v395 = vld [vmem:[#allocation5 + $0xa38] sm:$0xff]
    %v396 = vld [vmem:[#allocation5 + $0xa40] sm:$0xff]
    %v397 = vld [vmem:[#allocation5 + $0xa48] sm:$0xff]
    %v398 = vld [vmem:[#allocation5 + $0xa50] sm:$0xff]
    %v399 = vld [vmem:[#allocation5 + $0xa58] sm:$0xff]
    %v400 = vld [vmem:[#allocation5 + $0xa60] sm:$0xff]
    %v401 = vld [vmem:[#allocation5 + $0xa68] sm:$0xff]
    %v402 = vld [vmem:[#allocation5 + $0xa70] sm:$0xff]
    %v403 = vld [vmem:[#allocation5 + $0xa78] sm:$0xff]
    %v404 = vld [vmem:[#allocation5 + $0xa80] sm:$0xff]
    %v405 = vld [vmem:[#allocation5 + $0xa88] sm:$0xff]
    %v406 = vld [vmem:[#allocation5 + $0xa90] sm:$0xff]
    %v407 = vld [vmem:[#allocation5 + $0xa98] sm:$0xff]
    %v408 = vld [vmem:[#allocation5 + $0xaa0] sm:$0xff]
    %v409 = vld [vmem:[#allocation5 + $0xaa8] sm:$0xff]
    %v410 = vld [vmem:[#allocation5 + $0xab0] sm:$0xff]
    %v411 = vld [vmem:[#allocation5 + $0xab8] sm:$0xff]
    %v412 = vld [vmem:[#allocation5 + $0xac0] sm:$0xff]
    %v413 = vld [vmem:[#allocation5 + $0xac8] sm:$0xff]
    %v414 = vld [vmem:[#allocation5 + $0xad0] sm:$0xff]
    %v415 = vld [vmem:[#allocation5 + $0xad8] sm:$0xff]
    %v416 = vld [vmem:[#allocation5 + $0xae0] sm:$0xff]
    %v417 = vld [vmem:[#allocation5 + $0xae8] sm:$0xff]
    %v418 = vld [vmem:[#allocation5 + $0xaf0] sm:$0xff]
    %v419 = vld [vmem:[#allocation5 + $0xaf8] sm:$0xff]
    %v420 = vld [vmem:[#allocation5 + $0xb00] sm:$0xff]
    %v421 = vld [vmem:[#allocation5 + $0xb08] sm:$0xff]
    %v422 = vld [vmem:[#allocation5 + $0xb10] sm:$0xff]
    %v423 = vld [vmem:[#allocation5 + $0xb18] sm:$0xff]
    %v424 = vld [vmem:[#allocation5 + $0xb20] sm:$0xff]
    %v425 = vld [vmem:[#allocation5 + $0xb28] sm:$0xff]
    %v426 = vld [vmem:[#allocation5 + $0xb30] sm:$0xff]
    %v427 = vld [vmem:[#allocation5 + $0xb38] sm:$0xff]
    %v428 = vld [vmem:[#allocation5 + $0xb40] sm:$0xff]
    %v429 = vld [vmem:[#allocation5 + $0xb48] sm:$0xff]
    %v430 = vld [vmem:[#allocation5 + $0xb50] sm:$0xff]
    %v431 = vld [vmem:[#allocation5 + $0xb58] sm:$0xff]
    %v432 = vld [vmem:[#allocation5 + $0xb60] sm:$0xff]
    %v433 = vld [vmem:[#allocation5 + $0xb68] sm:$0xff]
    %v434 = vld [vmem:[#allocation5 + $0xb70] sm:$0xff]
    %v435 = vld [vmem:[#allocation5 + $0xb78] sm:$0xff]
    %v436 = vld [vmem:[#allocation5 + $0xb80] sm:$0xff]
    %v437 = vld [vmem:[#allocation5 + $0xb88] sm:$0xff]
    %v438 = vld [vmem:[#allocation5 + $0xb90] sm:$0xff]
    %v439 = vld [vmem:[#allocation5 + $0xb98] sm:$0xff]
    %v440 = vld [vmem:[#allocation5 + $0xba0] sm:$0xff]
    %v441 = vld [vmem:[#allocation5 + $0xba8] sm:$0xff]
    %v442 = vld [vmem:[#allocation5 + $0xbb0] sm:$0xff]
    %v443 = vld [vmem:[#allocation5 + $0xbb8] sm:$0xff]
    %v444 = vld [vmem:[#allocation5 + $0xbc0] sm:$0xff]
    %v445 = vld [vmem:[#allocation5 + $0xbc8] sm:$0xff]
    %v446 = vld [vmem:[#allocation5 + $0xbd0] sm:$0xff]
    %v447 = vld [vmem:[#allocation5 + $0xbd8] sm:$0xff]
    %v448 = vld [vmem:[#allocation5 + $0xbe0] sm:$0xff]
    %v449 = vld [vmem:[#allocation5 + $0xbe8] sm:$0xff]
    %v450 = vld [vmem:[#allocation5 + $0xbf0] sm:$0xff]
    %v451 = vld [vmem:[#allocation5 + $0xbf8] sm:$0xff]
    %v452 = vld [vmem:[#allocation5 + $0xc00] sm:$0xff]
    %v453 = vld [vmem:[#allocation5 + $0xc08] sm:$0xff]
    %v454 = vld [vmem:[#allocation5 + $0xc10] sm:$0xff]
    %v455 = vld [vmem:[#allocation5 + $0xc18] sm:$0xff]
    %v456 = vld [vmem:[#allocation5 + $0xc20] sm:$0xff]
    %v457 = vld [vmem:[#allocation5 + $0xc28] sm:$0xff]
    %v458 = vld [vmem:[#allocation5 + $0xc30] sm:$0xff]
    %v459 = vld [vmem:[#allocation5 + $0xc38] sm:$0xff]
    %v460 = vld [vmem:[#allocation5 + $0xc40] sm:$0xff]
    %v461 = vld [vmem:[#allocation5 + $0xc48] sm:$0xff]
    %v462 = vld [vmem:[#allocation5 + $0xc50] sm:$0xff]
    %v463 = vld [vmem:[#allocation5 + $0xc58] sm:$0xff]
    %v464 = vld [vmem:[#allocation5 + $0xc60] sm:$0xff]
    %v465 = vld [vmem:[#allocation5 + $0xc68] sm:$0xff]
    %v466 = vld [vmem:[#allocation5 + $0xc70] sm:$0xff]
    %v467 = vld [vmem:[#allocation5 + $0xc78] sm:$0xff]
    %v468 = vld [vmem:[#allocation5 + $0xc80] sm:$0xff]
    %v469 = vld [vmem:[#allocation5 + $0xc88] sm:$0xff]
    %v470 = vld [vmem:[#allocation5 + $0xc90] sm:$0xff]
    %v471 = vld [vmem:[#allocation5 + $0xc98] sm:$0xff]
    %v472 = vld [vmem:[#allocation5 + $0xca0] sm:$0xff]
    %v473 = vld [vmem:[#allocation5 + $0xca8] sm:$0xff]
    %v474 = vld [vmem:[#allocation5 + $0xcb0] sm:$0xff]
    %v475 = vld [vmem:[#allocation5 + $0xcb8] sm:$0xff]
    %v476 = vld [vmem:[#allocation5 + $0xcc0] sm:$0xff]
    %v477 = vld [vmem:[#allocation5 + $0xcc8] sm:$0xff]
    %v478 = vld [vmem:[#allocation5 + $0xcd0] sm:$0xff]
    %v479 = vld [vmem:[#allocation5 + $0xcd8] sm:$0xff]
    %v480 = vld [vmem:[#allocation5 + $0xce0] sm:$0xff]
    %v481 = vld [vmem:[#allocation5 + $0xce8] sm:$0xff]
    %v482 = vld [vmem:[#allocation5 + $0xcf0] sm:$0xff]
    %v483 = vld [vmem:[#allocation5 + $0xcf8] sm:$0xff]
    %v484 = vld [vmem:[#allocation5 + $0xd00] sm:$0xff]
    %v485 = vld [vmem:[#allocation5 + $0xd08] sm:$0xff]
    %v486 = vld [vmem:[#allocation5 + $0xd10] sm:$0xff]
    %v487 = vld [vmem:[#allocation5 + $0xd18] sm:$0xff]
    %v488 = vld [vmem:[#allocation5 + $0xd20] sm:$0xff]
    %v489 = vld [vmem:[#allocation5 + $0xd28] sm:$0xff]
    %v490 = vld [vmem:[#allocation5 + $0xd30] sm:$0xff]
    %v491 = vld [vmem:[#allocation5 + $0xd38] sm:$0xff]
    %v492 = vld [vmem:[#allocation5 + $0xd40] sm:$0xff]
    %v493 = vld [vmem:[#allocation5 + $0xd48] sm:$0xff]
    %v494 = vld [vmem:[#allocation5 + $0xd50] sm:$0xff]
    %v495 = vld [vmem:[#allocation5 + $0xd58] sm:$0xff]
    %v496 = vld [vmem:[#allocation5 + $0xd60] sm:$0xff]
    %v497 = vld [vmem:[#allocation5 + $0xd68] sm:$0xff]
    %v498 = vld [vmem:[#allocation5 + $0xd70] sm:$0xff]
    %v499 = vld [vmem:[#allocation5 + $0xd78] sm:$0xff]
    %v500 = vld [vmem:[#allocation5 + $0xd80] sm:$0xff]
    %v501 = vld [vmem:[#allocation5 + $0xd88] sm:$0xff]
    %v502 = vld [vmem:[#allocation5 + $0xd90] sm:$0xff]
    %v503 = vld [vmem:[#allocation5 + $0xd98] sm:$0xff]
    %v504 = vld [vmem:[#allocation5 + $0xda0] sm:$0xff]
    %v505 = vld [vmem:[#allocation5 + $0xda8] sm:$0xff]
    %v506 = vld [vmem:[#allocation5 + $0xdb0] sm:$0xff]
    %v507 = vld [vmem:[#allocation5 + $0xdb8] sm:$0xff]
    %v508 = vld [vmem:[#allocation5 + $0xdc0] sm:$0xff]
    %v509 = vld [vmem:[#allocation5 + $0xdc8] sm:$0xff]
    %v510 = vld [vmem:[#allocation5 + $0xdd0] sm:$0xff]
    %v511 = vld [vmem:[#allocation5 + $0xdd8] sm:$0xff]
    %v512 = vld [vmem:[#allocation5 + $0xde0] sm:$0xff]
    %v513 = vld [vmem:[#allocation5 + $0xde8] sm:$0xff]
    %v514 = vld [vmem:[#allocation5 + $0xdf0] sm:$0xff]
    %v515 = vld [vmem:[#allocation5 + $0xdf8] sm:$0xff]
    %v516 = vld [vmem:[#allocation5 + $0xe00] sm:$0xff]
    %v517 = vld [vmem:[#allocation5 + $0xe08] sm:$0xff]
    %v518 = vld [vmem:[#allocation5 + $0xe10] sm:$0xff]
    %v519 = vld [vmem:[#allocation5 + $0xe18] sm:$0xff]
    %v520 = vld [vmem:[#allocation5 + $0xe20] sm:$0xff]
    %v521 = vld [vmem:[#allocation5 + $0xe28] sm:$0xff]
    %v522 = vld [vmem:[#allocation5 + $0xe30] sm:$0xff]
    %v523 = vld [vmem:[#allocation5 + $0xe38] sm:$0xff]
    %v524 = vld [vmem:[#allocation5 + $0xe40] sm:$0xff]
    %v525 = vld [vmem:[#allocation5 + $0xe48] sm:$0xff]
    %v526 = vld [vmem:[#allocation5 + $0xe50] sm:$0xff]
    %v527 = vld [vmem:[#allocation5 + $0xe58] sm:$0xff]
    %v528 = vld [vmem:[#allocation5 + $0xe60] sm:$0xff]
    %v529 = vld [vmem:[#allocation5 + $0xe68] sm:$0xff]
    %v530 = vld [vmem:[#allocation5 + $0xe70] sm:$0xff]
    %v531 = vld [vmem:[#allocation5 + $0xe78] sm:$0xff]
    %v532 = vld [vmem:[#allocation5 + $0xe80] sm:$0xff]
    %v533 = vld [vmem:[#allocation5 + $0xe88] sm:$0xff]
    %v534 = vld [vmem:[#allocation5 + $0xe90] sm:$0xff]
    %v535 = vld [vmem:[#allocation5 + $0xe98] sm:$0xff]
    %v536 = vld [vmem:[#allocation5 + $0xea0] sm:$0xff]
    %v537 = vld [vmem:[#allocation5 + $0xea8] sm:$0xff]
    %v538 = vld [vmem:[#allocation5 + $0xeb0] sm:$0xff]
    %v539 = vld [vmem:[#allocation5 + $0xeb8] sm:$0xff]
    %v540 = vld [vmem:[#allocation5 + $0xec0] sm:$0xff]
    %v541 = vld [vmem:[#allocation5 + $0xec8] sm:$0xff]
    %v542 = vld [vmem:[#allocation5 + $0xed0] sm:$0xff]
    %v543 = vld [vmem:[#allocation5 + $0xed8] sm:$0xff]
    %v544 = vld [vmem:[#allocation5 + $0xee0] sm:$0xff]
    %v545 = vld [vmem:[#allocation5 + $0xee8] sm:$0xff]
    %v546 = vld [vmem:[#allocation5 + $0xef0] sm:$0xff]
    %v547 = vld [vmem:[#allocation5 + $0xef8] sm:$0xff]
    %v548 = vld [vmem:[#allocation5 + $0xf00] sm:$0xff]
    %v549 = vld [vmem:[#allocation5 + $0xf08] sm:$0xff]
    %v550 = vld [vmem:[#allocation5 + $0xf10] sm:$0xff]
    %v551 = vld [vmem:[#allocation5 + $0xf18] sm:$0xff]
    %v552 = vld [vmem:[#allocation5 + $0xf20] sm:$0xff]
    %v553 = vld [vmem:[#allocation5 + $0xf28] sm:$0xff]
    %v554 = vld [vmem:[#allocation5 + $0xf30] sm:$0xff]
    %v555 = vld [vmem:[#allocation5 + $0xf38] sm:$0xff]
    %v556 = vld [vmem:[#allocation5 + $0xf40] sm:$0xff]
    %v557 = vld [vmem:[#allocation5 + $0xf48] sm:$0xff]
    %v558 = vld [vmem:[#allocation5 + $0xf50] sm:$0xff]
    %v559 = vld [vmem:[#allocation5 + $0xf58] sm:$0xff]
    %v560 = vld [vmem:[#allocation5 + $0xf60] sm:$0xff]
    %v561 = vld [vmem:[#allocation5 + $0xf68] sm:$0xff]
    %v562 = vld [vmem:[#allocation5 + $0xf70] sm:$0xff]
    %v563 = vld [vmem:[#allocation5 + $0xf78] sm:$0xff]
    %v564 = vld [vmem:[#allocation5 + $0xf80] sm:$0xff]
    %v565 = vld [vmem:[#allocation5 + $0xf88] sm:$0xff]
    %v566 = vld [vmem:[#allocation5 + $0xf90] sm:$0xff]
    %v567 = vld [vmem:[#allocation5 + $0xf98] sm:$0xff]
    %v568 = vld [vmem:[#allocation5 + $0xfa0] sm:$0xff]
    %v569 = vld [vmem:[#allocation5 + $0xfa8] sm:$0xff]
    %v570 = vld [vmem:[#allocation5 + $0xfb0] sm:$0xff]
    %v571 = vld [vmem:[#allocation5 + $0xfb8] sm:$0xff]
    %v572 = vld [vmem:[#allocation5 + $0xfc0] sm:$0xff]
    %v573 = vld [vmem:[#allocation5 + $0xfc8] sm:$0xff]
    %v574 = vld [vmem:[#allocation5 + $0xfd0] sm:$0xff]
    %v575 = vld [vmem:[#allocation5 + $0xfd8] sm:$0xff]
    %v576 = vld [vmem:[#allocation5 + $0xfe0] sm:$0xff]
    %v577 = vld [vmem:[#allocation5 + $0xfe8] sm:$0xff]
    %v578 = vld [vmem:[#allocation5 + $0xff0] sm:$0xff]
    %v579 = vld [vmem:[#allocation5 + $0xff8] sm:$0xff]
    %v604 = vunpack.c.l.b16 %v44
    %v605 = vunpack.c.h.b16 %v44
    %v606 = vunpack.c.l.b16 %v45
    %v607 = vunpack.c.h.b16 %v45
    %v608 = vunpack.c.l.b16 %v46
    %v609 = vunpack.c.h.b16 %v46
    %v610 = vunpack.c.l.b16 %v47
    %v611 = vunpack.c.h.b16 %v47
    %v612 = vunpack.c.l.b16 %v48
    %v613 = vunpack.c.h.b16 %v48
    %v614 = vunpack.c.l.b16 %v49
    %v615 = vunpack.c.h.b16 %v49
    %v616 = vunpack.c.l.b16 %v50
    %v617 = vunpack.c.h.b16 %v50
    %v618 = vunpack.c.l.b16 %v51
    %v619 = vunpack.c.h.b16 %v51
    %v620 = vunpack.c.l.b16 %v52
    %v621 = vunpack.c.h.b16 %v52
    %v622 = vunpack.c.l.b16 %v53
    %v623 = vunpack.c.h.b16 %v53
    %v624 = vunpack.c.l.b16 %v54
    %v625 = vunpack.c.h.b16 %v54
    %v626 = vunpack.c.l.b16 %v55
    %v627 = vunpack.c.h.b16 %v55
    %v628 = vunpack.c.l.b16 %v56
    %v629 = vunpack.c.h.b16 %v56
    %v630 = vunpack.c.l.b16 %v57
    %v631 = vunpack.c.h.b16 %v57
    %v632 = vunpack.c.l.b16 %v58
    %v633 = vunpack.c.h.b16 %v58
    %v634 = vunpack.c.l.b16 %v59
    %v635 = vunpack.c.h.b16 %v59
    %v636 = vunpack.c.l.b16 %v60
    %v637 = vunpack.c.h.b16 %v60
    %v638 = vunpack.c.l.b16 %v61
    %v639 = vunpack.c.h.b16 %v61
    %v640 = vunpack.c.l.b16 %v62
    %v641 = vunpack.c.h.b16 %v62
    %v642 = vunpack.c.l.b16 %v63
    %v643 = vunpack.c.h.b16 %v63
    %v644 = vunpack.c.l.b16 %v64
    %v645 = vunpack.c.h.b16 %v64
    %v646 = vunpack.c.l.b16 %v65
    %v647 = vunpack.c.h.b16 %v65
    %v648 = vunpack.c.l.b16 %v66
    %v649 = vunpack.c.h.b16 %v66
    %v650 = vunpack.c.l.b16 %v67
    %v651 = vunpack.c.h.b16 %v67
    %v652 = vpack.c.b16 %v612, %v604
    %v653 = vpack.c.b16 %v613, %v605
    %v654 = vpack.c.b16 %v614, %v606
    %v655 = vpack.c.b16 %v615, %v607
    %v656 = vpack.c.b16 %v616, %v608
    %v657 = vpack.c.b16 %v617, %v609
    %v658 = vpack.c.b16 %v618, %v610
    %v659 = vpack.c.b16 %v619, %v611
    %v660 = vpack.c.b16 %v628, %v620
    %v661 = vpack.c.b16 %v629, %v621
    %v662 = vpack.c.b16 %v630, %v622
    %v663 = vpack.c.b16 %v631, %v623
    %v664 = vpack.c.b16 %v632, %v624
    %v665 = vpack.c.b16 %v633, %v625
    %v666 = vpack.c.b16 %v634, %v626
    %v667 = vpack.c.b16 %v635, %v627
    %v668 = vpack.c.b16 %v644, %v636
    %v669 = vpack.c.b16 %v645, %v637
    %v670 = vpack.c.b16 %v646, %v638
    %v671 = vpack.c.b16 %v647, %v639
    %v672 = vpack.c.b16 %v648, %v640
    %v673 = vpack.c.b16 %v649, %v641
    %v674 = vpack.c.b16 %v650, %v642
    %v675 = vpack.c.b16 %v651, %v643
    %v1212 = vunpack.c.l.b16 %v68
    %v1213 = vunpack.c.h.b16 %v68
    %v1214 = vunpack.c.l.b16 %v69
    %v1215 = vunpack.c.h.b16 %v69
    %v1216 = vunpack.c.l.b16 %v70
    %v1217 = vunpack.c.h.b16 %v70
    %v1218 = vunpack.c.l.b16 %v71
    %v1219 = vunpack.c.h.b16 %v71
    %v1220 = vunpack.c.l.b16 %v72
    %v1221 = vunpack.c.h.b16 %v72
    %v1222 = vunpack.c.l.b16 %v73
    %v1223 = vunpack.c.h.b16 %v73
    %v1224 = vunpack.c.l.b16 %v74
    %v1225 = vunpack.c.h.b16 %v74
    %v1226 = vunpack.c.l.b16 %v75
    %v1227 = vunpack.c.h.b16 %v75
    %v1228 = vunpack.c.l.b16 %v76
    %v1229 = vunpack.c.h.b16 %v76
    %v1230 = vunpack.c.l.b16 %v77
    %v1231 = vunpack.c.h.b16 %v77
    %v1232 = vunpack.c.l.b16 %v78
    %v1233 = vunpack.c.h.b16 %v78
    %v1234 = vunpack.c.l.b16 %v79
    %v1235 = vunpack.c.h.b16 %v79
    %v1236 = vunpack.c.l.b16 %v80
    %v1237 = vunpack.c.h.b16 %v80
    %v1238 = vunpack.c.l.b16 %v81
    %v1239 = vunpack.c.h.b16 %v81
    %v1240 = vunpack.c.l.b16 %v82
    %v1241 = vunpack.c.h.b16 %v82
    %v1242 = vunpack.c.l.b16 %v83
    %v1243 = vunpack.c.h.b16 %v83
    %v1244 = vunpack.c.l.b16 %v84
    %v1245 = vunpack.c.h.b16 %v84
    %v1246 = vunpack.c.l.b16 %v85
    %v1247 = vunpack.c.h.b16 %v85
    %v1248 = vunpack.c.l.b16 %v86
    %v1249 = vunpack.c.h.b16 %v86
    %v1250 = vunpack.c.l.b16 %v87
    %v1251 = vunpack.c.h.b16 %v87
    %v1252 = vunpack.c.l.b16 %v88
    %v1253 = vunpack.c.h.b16 %v88
    %v1254 = vunpack.c.l.b16 %v89
    %v1255 = vunpack.c.h.b16 %v89
    %v1256 = vunpack.c.l.b16 %v90
    %v1257 = vunpack.c.h.b16 %v90
    %v1258 = vunpack.c.l.b16 %v91
    %v1259 = vunpack.c.h.b16 %v91
    %v1260 = vunpack.c.l.b16 %v92
    %v1261 = vunpack.c.h.b16 %v92
    %v1262 = vunpack.c.l.b16 %v93
    %v1263 = vunpack.c.h.b16 %v93
    %v1264 = vunpack.c.l.b16 %v94
    %v1265 = vunpack.c.h.b16 %v94
    %v1266 = vunpack.c.l.b16 %v95
    %v1267 = vunpack.c.h.b16 %v95
    %v1268 = vunpack.c.l.b16 %v96
    %v1269 = vunpack.c.h.b16 %v96
    %v1270 = vunpack.c.l.b16 %v97
    %v1271 = vunpack.c.h.b16 %v97
    %v1272 = vunpack.c.l.b16 %v98
    %v1273 = vunpack.c.h.b16 %v98
    %v1274 = vunpack.c.l.b16 %v99
    %v1275 = vunpack.c.h.b16 %v99
    %v1276 = vunpack.c.l.b16 %v100
    %v1277 = vunpack.c.h.b16 %v100
    %v1278 = vunpack.c.l.b16 %v101
    %v1279 = vunpack.c.h.b16 %v101
    %v1280 = vunpack.c.l.b16 %v102
    %v1281 = vunpack.c.h.b16 %v102
    %v1282 = vunpack.c.l.b16 %v103
    %v1283 = vunpack.c.h.b16 %v103
    %v1284 = vunpack.c.l.b16 %v104
    %v1285 = vunpack.c.h.b16 %v104
    %v1286 = vunpack.c.l.b16 %v105
    %v1287 = vunpack.c.h.b16 %v105
    %v1288 = vunpack.c.l.b16 %v106
    %v1289 = vunpack.c.h.b16 %v106
    %v1290 = vunpack.c.l.b16 %v107
    %v1291 = vunpack.c.h.b16 %v107
    %v1292 = vunpack.c.l.b16 %v108
    %v1293 = vunpack.c.h.b16 %v108
    %v1294 = vunpack.c.l.b16 %v109
    %v1295 = vunpack.c.h.b16 %v109
    %v1296 = vunpack.c.l.b16 %v110
    %v1297 = vunpack.c.h.b16 %v110
    %v1298 = vunpack.c.l.b16 %v111
    %v1299 = vunpack.c.h.b16 %v111
    %v1300 = vunpack.c.l.b16 %v112
    %v1301 = vunpack.c.h.b16 %v112
    %v1302 = vunpack.c.l.b16 %v113
    %v1303 = vunpack.c.h.b16 %v113
    %v1304 = vunpack.c.l.b16 %v114
    %v1305 = vunpack.c.h.b16 %v114
    %v1306 = vunpack.c.l.b16 %v115
    %v1307 = vunpack.c.h.b16 %v115
    %v1308 = vunpack.c.l.b16 %v116
    %v1309 = vunpack.c.h.b16 %v116
    %v1310 = vunpack.c.l.b16 %v117
    %v1311 = vunpack.c.h.b16 %v117
    %v1312 = vunpack.c.l.b16 %v118
    %v1313 = vunpack.c.h.b16 %v118
    %v1314 = vunpack.c.l.b16 %v119
    %v1315 = vunpack.c.h.b16 %v119
    %v1316 = vunpack.c.l.b16 %v120
    %v1317 = vunpack.c.h.b16 %v120
    %v1318 = vunpack.c.l.b16 %v121
    %v1319 = vunpack.c.h.b16 %v121
    %v1320 = vunpack.c.l.b16 %v122
    %v1321 = vunpack.c.h.b16 %v122
    %v1322 = vunpack.c.l.b16 %v123
    %v1323 = vunpack.c.h.b16 %v123
    %v1324 = vunpack.c.l.b16 %v124
    %v1325 = vunpack.c.h.b16 %v124
    %v1326 = vunpack.c.l.b16 %v125
    %v1327 = vunpack.c.h.b16 %v125
    %v1328 = vunpack.c.l.b16 %v126
    %v1329 = vunpack.c.h.b16 %v126
    %v1330 = vunpack.c.l.b16 %v127
    %v1331 = vunpack.c.h.b16 %v127
    %v1332 = vunpack.c.l.b16 %v128
    %v1333 = vunpack.c.h.b16 %v128
    %v1334 = vunpack.c.l.b16 %v129
    %v1335 = vunpack.c.h.b16 %v129
    %v1336 = vunpack.c.l.b16 %v130
    %v1337 = vunpack.c.h.b16 %v130
    %v1338 = vunpack.c.l.b16 %v131
    %v1339 = vunpack.c.h.b16 %v131
    %v1340 = vunpack.c.l.b16 %v132
    %v1341 = vunpack.c.h.b16 %v132
    %v1342 = vunpack.c.l.b16 %v133
    %v1343 = vunpack.c.h.b16 %v133
    %v1344 = vunpack.c.l.b16 %v134
    %v1345 = vunpack.c.h.b16 %v134
    %v1346 = vunpack.c.l.b16 %v135
    %v1347 = vunpack.c.h.b16 %v135
    %v1348 = vunpack.c.l.b16 %v136
    %v1349 = vunpack.c.h.b16 %v136
    %v1350 = vunpack.c.l.b16 %v137
    %v1351 = vunpack.c.h.b16 %v137
    %v1352 = vunpack.c.l.b16 %v138
    %v1353 = vunpack.c.h.b16 %v138
    %v1354 = vunpack.c.l.b16 %v139
    %v1355 = vunpack.c.h.b16 %v139
    %v1356 = vunpack.c.l.b16 %v140
    %v1357 = vunpack.c.h.b16 %v140
    %v1358 = vunpack.c.l.b16 %v141
    %v1359 = vunpack.c.h.b16 %v141
    %v1360 = vunpack.c.l.b16 %v142
    %v1361 = vunpack.c.h.b16 %v142
    %v1362 = vunpack.c.l.b16 %v143
    %v1363 = vunpack.c.h.b16 %v143
    %v1364 = vunpack.c.l.b16 %v144
    %v1365 = vunpack.c.h.b16 %v144
    %v1366 = vunpack.c.l.b16 %v145
    %v1367 = vunpack.c.h.b16 %v145
    %v1368 = vunpack.c.l.b16 %v146
    %v1369 = vunpack.c.h.b16 %v146
    %v1370 = vunpack.c.l.b16 %v147
    %v1371 = vunpack.c.h.b16 %v147
    %v1372 = vunpack.c.l.b16 %v148
    %v1373 = vunpack.c.h.b16 %v148
    %v1374 = vunpack.c.l.b16 %v149
    %v1375 = vunpack.c.h.b16 %v149
    %v1376 = vunpack.c.l.b16 %v150
    %v1377 = vunpack.c.h.b16 %v150
    %v1378 = vunpack.c.l.b16 %v151
    %v1379 = vunpack.c.h.b16 %v151
    %v1380 = vunpack.c.l.b16 %v152
    %v1381 = vunpack.c.h.b16 %v152
    %v1382 = vunpack.c.l.b16 %v153
    %v1383 = vunpack.c.h.b16 %v153
    %v1384 = vunpack.c.l.b16 %v154
    %v1385 = vunpack.c.h.b16 %v154
    %v1386 = vunpack.c.l.b16 %v155
    %v1387 = vunpack.c.h.b16 %v155
    %v1388 = vunpack.c.l.b16 %v156
    %v1389 = vunpack.c.h.b16 %v156
    %v1390 = vunpack.c.l.b16 %v157
    %v1391 = vunpack.c.h.b16 %v157
    %v1392 = vunpack.c.l.b16 %v158
    %v1393 = vunpack.c.h.b16 %v158
    %v1394 = vunpack.c.l.b16 %v159
    %v1395 = vunpack.c.h.b16 %v159
    %v1396 = vunpack.c.l.b16 %v160
    %v1397 = vunpack.c.h.b16 %v160
    %v1398 = vunpack.c.l.b16 %v161
    %v1399 = vunpack.c.h.b16 %v161
    %v1400 = vunpack.c.l.b16 %v162
    %v1401 = vunpack.c.h.b16 %v162
    %v1402 = vunpack.c.l.b16 %v163
    %v1403 = vunpack.c.h.b16 %v163
    %v1404 = vunpack.c.l.b16 %v164
    %v1405 = vunpack.c.h.b16 %v164
    %v1406 = vunpack.c.l.b16 %v165
    %v1407 = vunpack.c.h.b16 %v165
    %v1408 = vunpack.c.l.b16 %v166
    %v1409 = vunpack.c.h.b16 %v166
    %v1410 = vunpack.c.l.b16 %v167
    %v1411 = vunpack.c.h.b16 %v167
    %v1412 = vunpack.c.l.b16 %v168
    %v1413 = vunpack.c.h.b16 %v168
    %v1414 = vunpack.c.l.b16 %v169
    %v1415 = vunpack.c.h.b16 %v169
    %v1416 = vunpack.c.l.b16 %v170
    %v1417 = vunpack.c.h.b16 %v170
    %v1418 = vunpack.c.l.b16 %v171
    %v1419 = vunpack.c.h.b16 %v171
    %v1420 = vunpack.c.l.b16 %v172
    %v1421 = vunpack.c.h.b16 %v172
    %v1422 = vunpack.c.l.b16 %v173
    %v1423 = vunpack.c.h.b16 %v173
    %v1424 = vunpack.c.l.b16 %v174
    %v1425 = vunpack.c.h.b16 %v174
    %v1426 = vunpack.c.l.b16 %v175
    %v1427 = vunpack.c.h.b16 %v175
    %v1428 = vunpack.c.l.b16 %v176
    %v1429 = vunpack.c.h.b16 %v176
    %v1430 = vunpack.c.l.b16 %v177
    %v1431 = vunpack.c.h.b16 %v177
    %v1432 = vunpack.c.l.b16 %v178
    %v1433 = vunpack.c.h.b16 %v178
    %v1434 = vunpack.c.l.b16 %v179
    %v1435 = vunpack.c.h.b16 %v179
    %v1436 = vunpack.c.l.b16 %v180
    %v1437 = vunpack.c.h.b16 %v180
    %v1438 = vunpack.c.l.b16 %v181
    %v1439 = vunpack.c.h.b16 %v181
    %v1440 = vunpack.c.l.b16 %v182
    %v1441 = vunpack.c.h.b16 %v182
    %v1442 = vunpack.c.l.b16 %v183
    %v1443 = vunpack.c.h.b16 %v183
    %v1444 = vunpack.c.l.b16 %v184
    %v1445 = vunpack.c.h.b16 %v184
    %v1446 = vunpack.c.l.b16 %v185
    %v1447 = vunpack.c.h.b16 %v185
    %v1448 = vunpack.c.l.b16 %v186
    %v1449 = vunpack.c.h.b16 %v186
    %v1450 = vunpack.c.l.b16 %v187
    %v1451 = vunpack.c.h.b16 %v187
    %v1452 = vunpack.c.l.b16 %v188
    %v1453 = vunpack.c.h.b16 %v188
    %v1454 = vunpack.c.l.b16 %v189
    %v1455 = vunpack.c.h.b16 %v189
    %v1456 = vunpack.c.l.b16 %v190
    %v1457 = vunpack.c.h.b16 %v190
    %v1458 = vunpack.c.l.b16 %v191
    %v1459 = vunpack.c.h.b16 %v191
    %v1460 = vunpack.c.l.b16 %v192
    %v1461 = vunpack.c.h.b16 %v192
    %v1462 = vunpack.c.l.b16 %v193
    %v1463 = vunpack.c.h.b16 %v193
    %v1464 = vunpack.c.l.b16 %v194
    %v1465 = vunpack.c.h.b16 %v194
    %v1466 = vunpack.c.l.b16 %v195
    %v1467 = vunpack.c.h.b16 %v195
    %v1468 = vunpack.c.l.b16 %v196
    %v1469 = vunpack.c.h.b16 %v196
    %v1470 = vunpack.c.l.b16 %v197
    %v1471 = vunpack.c.h.b16 %v197
    %v1472 = vunpack.c.l.b16 %v198
    %v1473 = vunpack.c.h.b16 %v198
    %v1474 = vunpack.c.l.b16 %v199
    %v1475 = vunpack.c.h.b16 %v199
    %v1476 = vunpack.c.l.b16 %v200
    %v1477 = vunpack.c.h.b16 %v200
    %v1478 = vunpack.c.l.b16 %v201
    %v1479 = vunpack.c.h.b16 %v201
    %v1480 = vunpack.c.l.b16 %v202
    %v1481 = vunpack.c.h.b16 %v202
    %v1482 = vunpack.c.l.b16 %v203
    %v1483 = vunpack.c.h.b16 %v203
    %v1484 = vunpack.c.l.b16 %v204
    %v1485 = vunpack.c.h.b16 %v204
    %v1486 = vunpack.c.l.b16 %v205
    %v1487 = vunpack.c.h.b16 %v205
    %v1488 = vunpack.c.l.b16 %v206
    %v1489 = vunpack.c.h.b16 %v206
    %v1490 = vunpack.c.l.b16 %v207
    %v1491 = vunpack.c.h.b16 %v207
    %v1492 = vunpack.c.l.b16 %v208
    %v1493 = vunpack.c.h.b16 %v208
    %v1494 = vunpack.c.l.b16 %v209
    %v1495 = vunpack.c.h.b16 %v209
    %v1496 = vunpack.c.l.b16 %v210
    %v1497 = vunpack.c.h.b16 %v210
    %v1498 = vunpack.c.l.b16 %v211
    %v1499 = vunpack.c.h.b16 %v211
    %v1500 = vunpack.c.l.b16 %v212
    %v1501 = vunpack.c.h.b16 %v212
    %v1502 = vunpack.c.l.b16 %v213
    %v1503 = vunpack.c.h.b16 %v213
    %v1504 = vunpack.c.l.b16 %v214
    %v1505 = vunpack.c.h.b16 %v214
    %v1506 = vunpack.c.l.b16 %v215
    %v1507 = vunpack.c.h.b16 %v215
    %v1508 = vunpack.c.l.b16 %v216
    %v1509 = vunpack.c.h.b16 %v216
    %v1510 = vunpack.c.l.b16 %v217
    %v1511 = vunpack.c.h.b16 %v217
    %v1512 = vunpack.c.l.b16 %v218
    %v1513 = vunpack.c.h.b16 %v218
    %v1514 = vunpack.c.l.b16 %v219
    %v1515 = vunpack.c.h.b16 %v219
    %v1516 = vunpack.c.l.b16 %v220
    %v1517 = vunpack.c.h.b16 %v220
    %v1518 = vunpack.c.l.b16 %v221
    %v1519 = vunpack.c.h.b16 %v221
    %v1520 = vunpack.c.l.b16 %v222
    %v1521 = vunpack.c.h.b16 %v222
    %v1522 = vunpack.c.l.b16 %v223
    %v1523 = vunpack.c.h.b16 %v223
    %v1524 = vunpack.c.l.b16 %v224
    %v1525 = vunpack.c.h.b16 %v224
    %v1526 = vunpack.c.l.b16 %v225
    %v1527 = vunpack.c.h.b16 %v225
    %v1528 = vunpack.c.l.b16 %v226
    %v1529 = vunpack.c.h.b16 %v226
    %v1530 = vunpack.c.l.b16 %v227
    %v1531 = vunpack.c.h.b16 %v227
    %v1532 = vunpack.c.l.b16 %v228
    %v1533 = vunpack.c.h.b16 %v228
    %v1534 = vunpack.c.l.b16 %v229
    %v1535 = vunpack.c.h.b16 %v229
    %v1536 = vunpack.c.l.b16 %v230
    %v1537 = vunpack.c.h.b16 %v230
    %v1538 = vunpack.c.l.b16 %v231
    %v1539 = vunpack.c.h.b16 %v231
    %v1540 = vunpack.c.l.b16 %v232
    %v1541 = vunpack.c.h.b16 %v232
    %v1542 = vunpack.c.l.b16 %v233
    %v1543 = vunpack.c.h.b16 %v233
    %v1544 = vunpack.c.l.b16 %v234
    %v1545 = vunpack.c.h.b16 %v234
    %v1546 = vunpack.c.l.b16 %v235
    %v1547 = vunpack.c.h.b16 %v235
    %v1548 = vunpack.c.l.b16 %v236
    %v1549 = vunpack.c.h.b16 %v236
    %v1550 = vunpack.c.l.b16 %v237
    %v1551 = vunpack.c.h.b16 %v237
    %v1552 = vunpack.c.l.b16 %v238
    %v1553 = vunpack.c.h.b16 %v238
    %v1554 = vunpack.c.l.b16 %v239
    %v1555 = vunpack.c.h.b16 %v239
    %v1556 = vunpack.c.l.b16 %v240
    %v1557 = vunpack.c.h.b16 %v240
    %v1558 = vunpack.c.l.b16 %v241
    %v1559 = vunpack.c.h.b16 %v241
    %v1560 = vunpack.c.l.b16 %v242
    %v1561 = vunpack.c.h.b16 %v242
    %v1562 = vunpack.c.l.b16 %v243
    %v1563 = vunpack.c.h.b16 %v243
    %v1564 = vunpack.c.l.b16 %v244
    %v1565 = vunpack.c.h.b16 %v244
    %v1566 = vunpack.c.l.b16 %v245
    %v1567 = vunpack.c.h.b16 %v245
    %v1568 = vunpack.c.l.b16 %v246
    %v1569 = vunpack.c.h.b16 %v246
    %v1570 = vunpack.c.l.b16 %v247
    %v1571 = vunpack.c.h.b16 %v247
    %v1572 = vunpack.c.l.b16 %v248
    %v1573 = vunpack.c.h.b16 %v248
    %v1574 = vunpack.c.l.b16 %v249
    %v1575 = vunpack.c.h.b16 %v249
    %v1576 = vunpack.c.l.b16 %v250
    %v1577 = vunpack.c.h.b16 %v250
    %v1578 = vunpack.c.l.b16 %v251
    %v1579 = vunpack.c.h.b16 %v251
    %v1580 = vunpack.c.l.b16 %v252
    %v1581 = vunpack.c.h.b16 %v252
    %v1582 = vunpack.c.l.b16 %v253
    %v1583 = vunpack.c.h.b16 %v253
    %v1584 = vunpack.c.l.b16 %v254
    %v1585 = vunpack.c.h.b16 %v254
    %v1586 = vunpack.c.l.b16 %v255
    %v1587 = vunpack.c.h.b16 %v255
    %v1588 = vunpack.c.l.b16 %v256
    %v1589 = vunpack.c.h.b16 %v256
    %v1590 = vunpack.c.l.b16 %v257
    %v1591 = vunpack.c.h.b16 %v257
    %v1592 = vunpack.c.l.b16 %v258
    %v1593 = vunpack.c.h.b16 %v258
    %v1594 = vunpack.c.l.b16 %v259
    %v1595 = vunpack.c.h.b16 %v259
    %v1596 = vunpack.c.l.b16 %v260
    %v1597 = vunpack.c.h.b16 %v260
    %v1598 = vunpack.c.l.b16 %v261
    %v1599 = vunpack.c.h.b16 %v261
    %v1600 = vunpack.c.l.b16 %v262
    %v1601 = vunpack.c.h.b16 %v262
    %v1602 = vunpack.c.l.b16 %v263
    %v1603 = vunpack.c.h.b16 %v263
    %v1604 = vunpack.c.l.b16 %v264
    %v1605 = vunpack.c.h.b16 %v264
    %v1606 = vunpack.c.l.b16 %v265
    %v1607 = vunpack.c.h.b16 %v265
    %v1608 = vunpack.c.l.b16 %v266
    %v1609 = vunpack.c.h.b16 %v266
    %v1610 = vunpack.c.l.b16 %v267
    %v1611 = vunpack.c.h.b16 %v267
    %v1612 = vunpack.c.l.b16 %v268
    %v1613 = vunpack.c.h.b16 %v268
    %v1614 = vunpack.c.l.b16 %v269
    %v1615 = vunpack.c.h.b16 %v269
    %v1616 = vunpack.c.l.b16 %v270
    %v1617 = vunpack.c.h.b16 %v270
    %v1618 = vunpack.c.l.b16 %v271
    %v1619 = vunpack.c.h.b16 %v271
    %v1620 = vunpack.c.l.b16 %v272
    %v1621 = vunpack.c.h.b16 %v272
    %v1622 = vunpack.c.l.b16 %v273
    %v1623 = vunpack.c.h.b16 %v273
    %v1624 = vunpack.c.l.b16 %v274
    %v1625 = vunpack.c.h.b16 %v274
    %v1626 = vunpack.c.l.b16 %v275
    %v1627 = vunpack.c.h.b16 %v275
    %v1628 = vunpack.c.l.b16 %v276
    %v1629 = vunpack.c.h.b16 %v276
    %v1630 = vunpack.c.l.b16 %v277
    %v1631 = vunpack.c.h.b16 %v277
    %v1632 = vunpack.c.l.b16 %v278
    %v1633 = vunpack.c.h.b16 %v278
    %v1634 = vunpack.c.l.b16 %v279
    %v1635 = vunpack.c.h.b16 %v279
    %v1636 = vunpack.c.l.b16 %v280
    %v1637 = vunpack.c.h.b16 %v280
    %v1638 = vunpack.c.l.b16 %v281
    %v1639 = vunpack.c.h.b16 %v281
    %v1640 = vunpack.c.l.b16 %v282
    %v1641 = vunpack.c.h.b16 %v282
    %v1642 = vunpack.c.l.b16 %v283
    %v1643 = vunpack.c.h.b16 %v283
    %v1644 = vunpack.c.l.b16 %v284
    %v1645 = vunpack.c.h.b16 %v284
    %v1646 = vunpack.c.l.b16 %v285
    %v1647 = vunpack.c.h.b16 %v285
    %v1648 = vunpack.c.l.b16 %v286
    %v1649 = vunpack.c.h.b16 %v286
    %v1650 = vunpack.c.l.b16 %v287
    %v1651 = vunpack.c.h.b16 %v287
    %v1652 = vunpack.c.l.b16 %v288
    %v1653 = vunpack.c.h.b16 %v288
    %v1654 = vunpack.c.l.b16 %v289
    %v1655 = vunpack.c.h.b16 %v289
    %v1656 = vunpack.c.l.b16 %v290
    %v1657 = vunpack.c.h.b16 %v290
    %v1658 = vunpack.c.l.b16 %v291
    %v1659 = vunpack.c.h.b16 %v291
    %v1660 = vunpack.c.l.b16 %v292
    %v1661 = vunpack.c.h.b16 %v292
    %v1662 = vunpack.c.l.b16 %v293
    %v1663 = vunpack.c.h.b16 %v293
    %v1664 = vunpack.c.l.b16 %v294
    %v1665 = vunpack.c.h.b16 %v294
    %v1666 = vunpack.c.l.b16 %v295
    %v1667 = vunpack.c.h.b16 %v295
    %v1668 = vunpack.c.l.b16 %v296
    %v1669 = vunpack.c.h.b16 %v296
    %v1670 = vunpack.c.l.b16 %v297
    %v1671 = vunpack.c.h.b16 %v297
    %v1672 = vunpack.c.l.b16 %v298
    %v1673 = vunpack.c.h.b16 %v298
    %v1674 = vunpack.c.l.b16 %v299
    %v1675 = vunpack.c.h.b16 %v299
    %v1676 = vunpack.c.l.b16 %v300
    %v1677 = vunpack.c.h.b16 %v300
    %v1678 = vunpack.c.l.b16 %v301
    %v1679 = vunpack.c.h.b16 %v301
    %v1680 = vunpack.c.l.b16 %v302
    %v1681 = vunpack.c.h.b16 %v302
    %v1682 = vunpack.c.l.b16 %v303
    %v1683 = vunpack.c.h.b16 %v303
    %v1684 = vunpack.c.l.b16 %v304
    %v1685 = vunpack.c.h.b16 %v304
    %v1686 = vunpack.c.l.b16 %v305
    %v1687 = vunpack.c.h.b16 %v305
    %v1688 = vunpack.c.l.b16 %v306
    %v1689 = vunpack.c.h.b16 %v306
    %v1690 = vunpack.c.l.b16 %v307
    %v1691 = vunpack.c.h.b16 %v307
    %v1692 = vunpack.c.l.b16 %v308
    %v1693 = vunpack.c.h.b16 %v308
    %v1694 = vunpack.c.l.b16 %v309
    %v1695 = vunpack.c.h.b16 %v309
    %v1696 = vunpack.c.l.b16 %v310
    %v1697 = vunpack.c.h.b16 %v310
    %v1698 = vunpack.c.l.b16 %v311
    %v1699 = vunpack.c.h.b16 %v311
    %v1700 = vunpack.c.l.b16 %v312
    %v1701 = vunpack.c.h.b16 %v312
    %v1702 = vunpack.c.l.b16 %v313
    %v1703 = vunpack.c.h.b16 %v313
    %v1704 = vunpack.c.l.b16 %v314
    %v1705 = vunpack.c.h.b16 %v314
    %v1706 = vunpack.c.l.b16 %v315
    %v1707 = vunpack.c.h.b16 %v315
    %v1708 = vunpack.c.l.b16 %v316
    %v1709 = vunpack.c.h.b16 %v316
    %v1710 = vunpack.c.l.b16 %v317
    %v1711 = vunpack.c.h.b16 %v317
    %v1712 = vunpack.c.l.b16 %v318
    %v1713 = vunpack.c.h.b16 %v318
    %v1714 = vunpack.c.l.b16 %v319
    %v1715 = vunpack.c.h.b16 %v319
    %v1716 = vunpack.c.l.b16 %v320
    %v1717 = vunpack.c.h.b16 %v320
    %v1718 = vunpack.c.l.b16 %v321
    %v1719 = vunpack.c.h.b16 %v321
    %v1720 = vunpack.c.l.b16 %v322
    %v1721 = vunpack.c.h.b16 %v322
    %v1722 = vunpack.c.l.b16 %v323
    %v1723 = vunpack.c.h.b16 %v323
    %v1724 = vunpack.c.l.b16 %v324
    %v1725 = vunpack.c.h.b16 %v324
    %v1726 = vunpack.c.l.b16 %v325
    %v1727 = vunpack.c.h.b16 %v325
    %v1728 = vunpack.c.l.b16 %v326
    %v1729 = vunpack.c.h.b16 %v326
    %v1730 = vunpack.c.l.b16 %v327
    %v1731 = vunpack.c.h.b16 %v327
    %v1732 = vunpack.c.l.b16 %v328
    %v1733 = vunpack.c.h.b16 %v328
    %v1734 = vunpack.c.l.b16 %v329
    %v1735 = vunpack.c.h.b16 %v329
    %v1736 = vunpack.c.l.b16 %v330
    %v1737 = vunpack.c.h.b16 %v330
    %v1738 = vunpack.c.l.b16 %v331
    %v1739 = vunpack.c.h.b16 %v331
    %v1740 = vunpack.c.l.b16 %v332
    %v1741 = vunpack.c.h.b16 %v332
    %v1742 = vunpack.c.l.b16 %v333
    %v1743 = vunpack.c.h.b16 %v333
    %v1744 = vunpack.c.l.b16 %v334
    %v1745 = vunpack.c.h.b16 %v334
    %v1746 = vunpack.c.l.b16 %v335
    %v1747 = vunpack.c.h.b16 %v335
    %v1748 = vunpack.c.l.b16 %v336
    %v1749 = vunpack.c.h.b16 %v336
    %v1750 = vunpack.c.l.b16 %v337
    %v1751 = vunpack.c.h.b16 %v337
    %v1752 = vunpack.c.l.b16 %v338
    %v1753 = vunpack.c.h.b16 %v338
    %v1754 = vunpack.c.l.b16 %v339
    %v1755 = vunpack.c.h.b16 %v339
    %v1756 = vunpack.c.l.b16 %v340
    %v1757 = vunpack.c.h.b16 %v340
    %v1758 = vunpack.c.l.b16 %v341
    %v1759 = vunpack.c.h.b16 %v341
    %v1760 = vunpack.c.l.b16 %v342
    %v1761 = vunpack.c.h.b16 %v342
    %v1762 = vunpack.c.l.b16 %v343
    %v1763 = vunpack.c.h.b16 %v343
    %v1764 = vunpack.c.l.b16 %v344
    %v1765 = vunpack.c.h.b16 %v344
    %v1766 = vunpack.c.l.b16 %v345
    %v1767 = vunpack.c.h.b16 %v345
    %v1768 = vunpack.c.l.b16 %v346
    %v1769 = vunpack.c.h.b16 %v346
    %v1770 = vunpack.c.l.b16 %v347
    %v1771 = vunpack.c.h.b16 %v347
    %v1772 = vunpack.c.l.b16 %v348
    %v1773 = vunpack.c.h.b16 %v348
    %v1774 = vunpack.c.l.b16 %v349
    %v1775 = vunpack.c.h.b16 %v349
    %v1776 = vunpack.c.l.b16 %v350
    %v1777 = vunpack.c.h.b16 %v350
    %v1778 = vunpack.c.l.b16 %v351
    %v1779 = vunpack.c.h.b16 %v351
    %v1780 = vunpack.c.l.b16 %v352
    %v1781 = vunpack.c.h.b16 %v352
    %v1782 = vunpack.c.l.b16 %v353
    %v1783 = vunpack.c.h.b16 %v353
    %v1784 = vunpack.c.l.b16 %v354
    %v1785 = vunpack.c.h.b16 %v354
    %v1786 = vunpack.c.l.b16 %v355
    %v1787 = vunpack.c.h.b16 %v355
    %v1788 = vunpack.c.l.b16 %v356
    %v1789 = vunpack.c.h.b16 %v356
    %v1790 = vunpack.c.l.b16 %v357
    %v1791 = vunpack.c.h.b16 %v357
    %v1792 = vunpack.c.l.b16 %v358
    %v1793 = vunpack.c.h.b16 %v358
    %v1794 = vunpack.c.l.b16 %v359
    %v1795 = vunpack.c.h.b16 %v359
    %v1796 = vunpack.c.l.b16 %v360
    %v1797 = vunpack.c.h.b16 %v360
    %v1798 = vunpack.c.l.b16 %v361
    %v1799 = vunpack.c.h.b16 %v361
    %v1800 = vunpack.c.l.b16 %v362
    %v1801 = vunpack.c.h.b16 %v362
    %v1802 = vunpack.c.l.b16 %v363
    %v1803 = vunpack.c.h.b16 %v363
    %v1804 = vunpack.c.l.b16 %v364
    %v1805 = vunpack.c.h.b16 %v364
    %v1806 = vunpack.c.l.b16 %v365
    %v1807 = vunpack.c.h.b16 %v365
    %v1808 = vunpack.c.l.b16 %v366
    %v1809 = vunpack.c.h.b16 %v366
    %v1810 = vunpack.c.l.b16 %v367
    %v1811 = vunpack.c.h.b16 %v367
    %v1812 = vunpack.c.l.b16 %v368
    %v1813 = vunpack.c.h.b16 %v368
    %v1814 = vunpack.c.l.b16 %v369
    %v1815 = vunpack.c.h.b16 %v369
    %v1816 = vunpack.c.l.b16 %v370
    %v1817 = vunpack.c.h.b16 %v370
    %v1818 = vunpack.c.l.b16 %v371
    %v1819 = vunpack.c.h.b16 %v371
    %v1820 = vunpack.c.l.b16 %v372
    %v1821 = vunpack.c.h.b16 %v372
    %v1822 = vunpack.c.l.b16 %v373
    %v1823 = vunpack.c.h.b16 %v373
    %v1824 = vunpack.c.l.b16 %v374
    %v1825 = vunpack.c.h.b16 %v374
    %v1826 = vunpack.c.l.b16 %v375
    %v1827 = vunpack.c.h.b16 %v375
    %v1828 = vunpack.c.l.b16 %v376
    %v1829 = vunpack.c.h.b16 %v376
    %v1830 = vunpack.c.l.b16 %v377
    %v1831 = vunpack.c.h.b16 %v377
    %v1832 = vunpack.c.l.b16 %v378
    %v1833 = vunpack.c.h.b16 %v378
    %v1834 = vunpack.c.l.b16 %v379
    %v1835 = vunpack.c.h.b16 %v379
    %v1836 = vunpack.c.l.b16 %v380
    %v1837 = vunpack.c.h.b16 %v380
    %v1838 = vunpack.c.l.b16 %v381
    %v1839 = vunpack.c.h.b16 %v381
    %v1840 = vunpack.c.l.b16 %v382
    %v1841 = vunpack.c.h.b16 %v382
    %v1842 = vunpack.c.l.b16 %v383
    %v1843 = vunpack.c.h.b16 %v383
    %v1844 = vunpack.c.l.b16 %v384
    %v1845 = vunpack.c.h.b16 %v384
    %v1846 = vunpack.c.l.b16 %v385
    %v1847 = vunpack.c.h.b16 %v385
    %v1848 = vunpack.c.l.b16 %v386
    %v1849 = vunpack.c.h.b16 %v386
    %v1850 = vunpack.c.l.b16 %v387
    %v1851 = vunpack.c.h.b16 %v387
    %v1852 = vunpack.c.l.b16 %v388
    %v1853 = vunpack.c.h.b16 %v388
    %v1854 = vunpack.c.l.b16 %v389
    %v1855 = vunpack.c.h.b16 %v389
    %v1856 = vunpack.c.l.b16 %v390
    %v1857 = vunpack.c.h.b16 %v390
    %v1858 = vunpack.c.l.b16 %v391
    %v1859 = vunpack.c.h.b16 %v391
    %v1860 = vunpack.c.l.b16 %v392
    %v1861 = vunpack.c.h.b16 %v392
    %v1862 = vunpack.c.l.b16 %v393
    %v1863 = vunpack.c.h.b16 %v393
    %v1864 = vunpack.c.l.b16 %v394
    %v1865 = vunpack.c.h.b16 %v394
    %v1866 = vunpack.c.l.b16 %v395
    %v1867 = vunpack.c.h.b16 %v395
    %v1868 = vunpack.c.l.b16 %v396
    %v1869 = vunpack.c.h.b16 %v396
    %v1870 = vunpack.c.l.b16 %v397
    %v1871 = vunpack.c.h.b16 %v397
    %v1872 = vunpack.c.l.b16 %v398
    %v1873 = vunpack.c.h.b16 %v398
    %v1874 = vunpack.c.l.b16 %v399
    %v1875 = vunpack.c.h.b16 %v399
    %v1876 = vunpack.c.l.b16 %v400
    %v1877 = vunpack.c.h.b16 %v400
    %v1878 = vunpack.c.l.b16 %v401
    %v1879 = vunpack.c.h.b16 %v401
    %v1880 = vunpack.c.l.b16 %v402
    %v1881 = vunpack.c.h.b16 %v402
    %v1882 = vunpack.c.l.b16 %v403
    %v1883 = vunpack.c.h.b16 %v403
    %v1884 = vunpack.c.l.b16 %v404
    %v1885 = vunpack.c.h.b16 %v404
    %v1886 = vunpack.c.l.b16 %v405
    %v1887 = vunpack.c.h.b16 %v405
    %v1888 = vunpack.c.l.b16 %v406
    %v1889 = vunpack.c.h.b16 %v406
    %v1890 = vunpack.c.l.b16 %v407
    %v1891 = vunpack.c.h.b16 %v407
    %v1892 = vunpack.c.l.b16 %v408
    %v1893 = vunpack.c.h.b16 %v408
    %v1894 = vunpack.c.l.b16 %v409
    %v1895 = vunpack.c.h.b16 %v409
    %v1896 = vunpack.c.l.b16 %v410
    %v1897 = vunpack.c.h.b16 %v410
    %v1898 = vunpack.c.l.b16 %v411
    %v1899 = vunpack.c.h.b16 %v411
    %v1900 = vunpack.c.l.b16 %v412
    %v1901 = vunpack.c.h.b16 %v412
    %v1902 = vunpack.c.l.b16 %v413
    %v1903 = vunpack.c.h.b16 %v413
    %v1904 = vunpack.c.l.b16 %v414
    %v1905 = vunpack.c.h.b16 %v414
    %v1906 = vunpack.c.l.b16 %v415
    %v1907 = vunpack.c.h.b16 %v415
    %v1908 = vunpack.c.l.b16 %v416
    %v1909 = vunpack.c.h.b16 %v416
    %v1910 = vunpack.c.l.b16 %v417
    %v1911 = vunpack.c.h.b16 %v417
    %v1912 = vunpack.c.l.b16 %v418
    %v1913 = vunpack.c.h.b16 %v418
    %v1914 = vunpack.c.l.b16 %v419
    %v1915 = vunpack.c.h.b16 %v419
    %v1916 = vunpack.c.l.b16 %v420
    %v1917 = vunpack.c.h.b16 %v420
    %v1918 = vunpack.c.l.b16 %v421
    %v1919 = vunpack.c.h.b16 %v421
    %v1920 = vunpack.c.l.b16 %v422
    %v1921 = vunpack.c.h.b16 %v422
    %v1922 = vunpack.c.l.b16 %v423
    %v1923 = vunpack.c.h.b16 %v423
    %v1924 = vunpack.c.l.b16 %v424
    %v1925 = vunpack.c.h.b16 %v424
    %v1926 = vunpack.c.l.b16 %v425
    %v1927 = vunpack.c.h.b16 %v425
    %v1928 = vunpack.c.l.b16 %v426
    %v1929 = vunpack.c.h.b16 %v426
    %v1930 = vunpack.c.l.b16 %v427
    %v1931 = vunpack.c.h.b16 %v427
    %v1932 = vunpack.c.l.b16 %v428
    %v1933 = vunpack.c.h.b16 %v428
    %v1934 = vunpack.c.l.b16 %v429
    %v1935 = vunpack.c.h.b16 %v429
    %v1936 = vunpack.c.l.b16 %v430
    %v1937 = vunpack.c.h.b16 %v430
    %v1938 = vunpack.c.l.b16 %v431
    %v1939 = vunpack.c.h.b16 %v431
    %v1940 = vunpack.c.l.b16 %v432
    %v1941 = vunpack.c.h.b16 %v432
    %v1942 = vunpack.c.l.b16 %v433
    %v1943 = vunpack.c.h.b16 %v433
    %v1944 = vunpack.c.l.b16 %v434
    %v1945 = vunpack.c.h.b16 %v434
    %v1946 = vunpack.c.l.b16 %v435
    %v1947 = vunpack.c.h.b16 %v435
    %v1948 = vunpack.c.l.b16 %v436
    %v1949 = vunpack.c.h.b16 %v436
    %v1950 = vunpack.c.l.b16 %v437
    %v1951 = vunpack.c.h.b16 %v437
    %v1952 = vunpack.c.l.b16 %v438
    %v1953 = vunpack.c.h.b16 %v438
    %v1954 = vunpack.c.l.b16 %v439
    %v1955 = vunpack.c.h.b16 %v439
    %v1956 = vunpack.c.l.b16 %v440
    %v1957 = vunpack.c.h.b16 %v440
    %v1958 = vunpack.c.l.b16 %v441
    %v1959 = vunpack.c.h.b16 %v441
    %v1960 = vunpack.c.l.b16 %v442
    %v1961 = vunpack.c.h.b16 %v442
    %v1962 = vunpack.c.l.b16 %v443
    %v1963 = vunpack.c.h.b16 %v443
    %v1964 = vunpack.c.l.b16 %v444
    %v1965 = vunpack.c.h.b16 %v444
    %v1966 = vunpack.c.l.b16 %v445
    %v1967 = vunpack.c.h.b16 %v445
    %v1968 = vunpack.c.l.b16 %v446
    %v1969 = vunpack.c.h.b16 %v446
    %v1970 = vunpack.c.l.b16 %v447
    %v1971 = vunpack.c.h.b16 %v447
    %v1972 = vunpack.c.l.b16 %v448
    %v1973 = vunpack.c.h.b16 %v448
    %v1974 = vunpack.c.l.b16 %v449
    %v1975 = vunpack.c.h.b16 %v449
    %v1976 = vunpack.c.l.b16 %v450
    %v1977 = vunpack.c.h.b16 %v450
    %v1978 = vunpack.c.l.b16 %v451
    %v1979 = vunpack.c.h.b16 %v451
    %v1980 = vunpack.c.l.b16 %v452
    %v1981 = vunpack.c.h.b16 %v452
    %v1982 = vunpack.c.l.b16 %v453
    %v1983 = vunpack.c.h.b16 %v453
    %v1984 = vunpack.c.l.b16 %v454
    %v1985 = vunpack.c.h.b16 %v454
    %v1986 = vunpack.c.l.b16 %v455
    %v1987 = vunpack.c.h.b16 %v455
    %v1988 = vunpack.c.l.b16 %v456
    %v1989 = vunpack.c.h.b16 %v456
    %v1990 = vunpack.c.l.b16 %v457
    %v1991 = vunpack.c.h.b16 %v457
    %v1992 = vunpack.c.l.b16 %v458
    %v1993 = vunpack.c.h.b16 %v458
    %v1994 = vunpack.c.l.b16 %v459
    %v1995 = vunpack.c.h.b16 %v459
    %v1996 = vunpack.c.l.b16 %v460
    %v1997 = vunpack.c.h.b16 %v460
    %v1998 = vunpack.c.l.b16 %v461
    %v1999 = vunpack.c.h.b16 %v461
    %v2000 = vunpack.c.l.b16 %v462
    %v2001 = vunpack.c.h.b16 %v462
    %v2002 = vunpack.c.l.b16 %v463
    %v2003 = vunpack.c.h.b16 %v463
    %v2004 = vunpack.c.l.b16 %v464
    %v2005 = vunpack.c.h.b16 %v464
    %v2006 = vunpack.c.l.b16 %v465
    %v2007 = vunpack.c.h.b16 %v465
    %v2008 = vunpack.c.l.b16 %v466
    %v2009 = vunpack.c.h.b16 %v466
    %v2010 = vunpack.c.l.b16 %v467
    %v2011 = vunpack.c.h.b16 %v467
    %v2012 = vunpack.c.l.b16 %v468
    %v2013 = vunpack.c.h.b16 %v468
    %v2014 = vunpack.c.l.b16 %v469
    %v2015 = vunpack.c.h.b16 %v469
    %v2016 = vunpack.c.l.b16 %v470
    %v2017 = vunpack.c.h.b16 %v470
    %v2018 = vunpack.c.l.b16 %v471
    %v2019 = vunpack.c.h.b16 %v471
    %v2020 = vunpack.c.l.b16 %v472
    %v2021 = vunpack.c.h.b16 %v472
    %v2022 = vunpack.c.l.b16 %v473
    %v2023 = vunpack.c.h.b16 %v473
    %v2024 = vunpack.c.l.b16 %v474
    %v2025 = vunpack.c.h.b16 %v474
    %v2026 = vunpack.c.l.b16 %v475
    %v2027 = vunpack.c.h.b16 %v475
    %v2028 = vunpack.c.l.b16 %v476
    %v2029 = vunpack.c.h.b16 %v476
    %v2030 = vunpack.c.l.b16 %v477
    %v2031 = vunpack.c.h.b16 %v477
    %v2032 = vunpack.c.l.b16 %v478
    %v2033 = vunpack.c.h.b16 %v478
    %v2034 = vunpack.c.l.b16 %v479
    %v2035 = vunpack.c.h.b16 %v479
    %v2036 = vunpack.c.l.b16 %v480
    %v2037 = vunpack.c.h.b16 %v480
    %v2038 = vunpack.c.l.b16 %v481
    %v2039 = vunpack.c.h.b16 %v481
    %v2040 = vunpack.c.l.b16 %v482
    %v2041 = vunpack.c.h.b16 %v482
    %v2042 = vunpack.c.l.b16 %v483
    %v2043 = vunpack.c.h.b16 %v483
    %v2044 = vunpack.c.l.b16 %v484
    %v2045 = vunpack.c.h.b16 %v484
    %v2046 = vunpack.c.l.b16 %v485
    %v2047 = vunpack.c.h.b16 %v485
    %v2048 = vunpack.c.l.b16 %v486
    %v2049 = vunpack.c.h.b16 %v486
    %v2050 = vunpack.c.l.b16 %v487
    %v2051 = vunpack.c.h.b16 %v487
    %v2052 = vunpack.c.l.b16 %v488
    %v2053 = vunpack.c.h.b16 %v488
    %v2054 = vunpack.c.l.b16 %v489
    %v2055 = vunpack.c.h.b16 %v489
    %v2056 = vunpack.c.l.b16 %v490
    %v2057 = vunpack.c.h.b16 %v490
    %v2058 = vunpack.c.l.b16 %v491
    %v2059 = vunpack.c.h.b16 %v491
    %v2060 = vunpack.c.l.b16 %v492
    %v2061 = vunpack.c.h.b16 %v492
    %v2062 = vunpack.c.l.b16 %v493
    %v2063 = vunpack.c.h.b16 %v493
    %v2064 = vunpack.c.l.b16 %v494
    %v2065 = vunpack.c.h.b16 %v494
    %v2066 = vunpack.c.l.b16 %v495
    %v2067 = vunpack.c.h.b16 %v495
    %v2068 = vunpack.c.l.b16 %v496
    %v2069 = vunpack.c.h.b16 %v496
    %v2070 = vunpack.c.l.b16 %v497
    %v2071 = vunpack.c.h.b16 %v497
    %v2072 = vunpack.c.l.b16 %v498
    %v2073 = vunpack.c.h.b16 %v498
    %v2074 = vunpack.c.l.b16 %v499
    %v2075 = vunpack.c.h.b16 %v499
    %v2076 = vunpack.c.l.b16 %v500
    %v2077 = vunpack.c.h.b16 %v500
    %v2078 = vunpack.c.l.b16 %v501
    %v2079 = vunpack.c.h.b16 %v501
    %v2080 = vunpack.c.l.b16 %v502
    %v2081 = vunpack.c.h.b16 %v502
    %v2082 = vunpack.c.l.b16 %v503
    %v2083 = vunpack.c.h.b16 %v503
    %v2084 = vunpack.c.l.b16 %v504
    %v2085 = vunpack.c.h.b16 %v504
    %v2086 = vunpack.c.l.b16 %v505
    %v2087 = vunpack.c.h.b16 %v505
    %v2088 = vunpack.c.l.b16 %v506
    %v2089 = vunpack.c.h.b16 %v506
    %v2090 = vunpack.c.l.b16 %v507
    %v2091 = vunpack.c.h.b16 %v507
    %v2092 = vunpack.c.l.b16 %v508
    %v2093 = vunpack.c.h.b16 %v508
    %v2094 = vunpack.c.l.b16 %v509
    %v2095 = vunpack.c.h.b16 %v509
    %v2096 = vunpack.c.l.b16 %v510
    %v2097 = vunpack.c.h.b16 %v510
    %v2098 = vunpack.c.l.b16 %v511
    %v2099 = vunpack.c.h.b16 %v511
    %v2100 = vunpack.c.l.b16 %v512
    %v2101 = vunpack.c.h.b16 %v512
    %v2102 = vunpack.c.l.b16 %v513
    %v2103 = vunpack.c.h.b16 %v513
    %v2104 = vunpack.c.l.b16 %v514
    %v2105 = vunpack.c.h.b16 %v514
    %v2106 = vunpack.c.l.b16 %v515
    %v2107 = vunpack.c.h.b16 %v515
    %v2108 = vunpack.c.l.b16 %v516
    %v2109 = vunpack.c.h.b16 %v516
    %v2110 = vunpack.c.l.b16 %v517
    %v2111 = vunpack.c.h.b16 %v517
    %v2112 = vunpack.c.l.b16 %v518
    %v2113 = vunpack.c.h.b16 %v518
    %v2114 = vunpack.c.l.b16 %v519
    %v2115 = vunpack.c.h.b16 %v519
    %v2116 = vunpack.c.l.b16 %v520
    %v2117 = vunpack.c.h.b16 %v520
    %v2118 = vunpack.c.l.b16 %v521
    %v2119 = vunpack.c.h.b16 %v521
    %v2120 = vunpack.c.l.b16 %v522
    %v2121 = vunpack.c.h.b16 %v522
    %v2122 = vunpack.c.l.b16 %v523
    %v2123 = vunpack.c.h.b16 %v523
    %v2124 = vunpack.c.l.b16 %v524
    %v2125 = vunpack.c.h.b16 %v524
    %v2126 = vunpack.c.l.b16 %v525
    %v2127 = vunpack.c.h.b16 %v525
    %v2128 = vunpack.c.l.b16 %v526
    %v2129 = vunpack.c.h.b16 %v526
    %v2130 = vunpack.c.l.b16 %v527
    %v2131 = vunpack.c.h.b16 %v527
    %v2132 = vunpack.c.l.b16 %v528
    %v2133 = vunpack.c.h.b16 %v528
    %v2134 = vunpack.c.l.b16 %v529
    %v2135 = vunpack.c.h.b16 %v529
    %v2136 = vunpack.c.l.b16 %v530
    %v2137 = vunpack.c.h.b16 %v530
    %v2138 = vunpack.c.l.b16 %v531
    %v2139 = vunpack.c.h.b16 %v531
    %v2140 = vunpack.c.l.b16 %v532
    %v2141 = vunpack.c.h.b16 %v532
    %v2142 = vunpack.c.l.b16 %v533
    %v2143 = vunpack.c.h.b16 %v533
    %v2144 = vunpack.c.l.b16 %v534
    %v2145 = vunpack.c.h.b16 %v534
    %v2146 = vunpack.c.l.b16 %v535
    %v2147 = vunpack.c.h.b16 %v535
    %v2148 = vunpack.c.l.b16 %v536
    %v2149 = vunpack.c.h.b16 %v536
    %v2150 = vunpack.c.l.b16 %v537
    %v2151 = vunpack.c.h.b16 %v537
    %v2152 = vunpack.c.l.b16 %v538
    %v2153 = vunpack.c.h.b16 %v538
    %v2154 = vunpack.c.l.b16 %v539
    %v2155 = vunpack.c.h.b16 %v539
    %v2156 = vunpack.c.l.b16 %v540
    %v2157 = vunpack.c.h.b16 %v540
    %v2158 = vunpack.c.l.b16 %v541
    %v2159 = vunpack.c.h.b16 %v541
    %v2160 = vunpack.c.l.b16 %v542
    %v2161 = vunpack.c.h.b16 %v542
    %v2162 = vunpack.c.l.b16 %v543
    %v2163 = vunpack.c.h.b16 %v543
    %v2164 = vunpack.c.l.b16 %v544
    %v2165 = vunpack.c.h.b16 %v544
    %v2166 = vunpack.c.l.b16 %v545
    %v2167 = vunpack.c.h.b16 %v545
    %v2168 = vunpack.c.l.b16 %v546
    %v2169 = vunpack.c.h.b16 %v546
    %v2170 = vunpack.c.l.b16 %v547
    %v2171 = vunpack.c.h.b16 %v547
    %v2172 = vunpack.c.l.b16 %v548
    %v2173 = vunpack.c.h.b16 %v548
    %v2174 = vunpack.c.l.b16 %v549
    %v2175 = vunpack.c.h.b16 %v549
    %v2176 = vunpack.c.l.b16 %v550
    %v2177 = vunpack.c.h.b16 %v550
    %v2178 = vunpack.c.l.b16 %v551
    %v2179 = vunpack.c.h.b16 %v551
    %v2180 = vunpack.c.l.b16 %v552
    %v2181 = vunpack.c.h.b16 %v552
    %v2182 = vunpack.c.l.b16 %v553
    %v2183 = vunpack.c.h.b16 %v553
    %v2184 = vunpack.c.l.b16 %v554
    %v2185 = vunpack.c.h.b16 %v554
    %v2186 = vunpack.c.l.b16 %v555
    %v2187 = vunpack.c.h.b16 %v555
    %v2188 = vunpack.c.l.b16 %v556
    %v2189 = vunpack.c.h.b16 %v556
    %v2190 = vunpack.c.l.b16 %v557
    %v2191 = vunpack.c.h.b16 %v557
    %v2192 = vunpack.c.l.b16 %v558
    %v2193 = vunpack.c.h.b16 %v558
    %v2194 = vunpack.c.l.b16 %v559
    %v2195 = vunpack.c.h.b16 %v559
    %v2196 = vunpack.c.l.b16 %v560
    %v2197 = vunpack.c.h.b16 %v560
    %v2198 = vunpack.c.l.b16 %v561
    %v2199 = vunpack.c.h.b16 %v561
    %v2200 = vunpack.c.l.b16 %v562
    %v2201 = vunpack.c.h.b16 %v562
    %v2202 = vunpack.c.l.b16 %v563
    %v2203 = vunpack.c.h.b16 %v563
    %v2204 = vunpack.c.l.b16 %v564
    %v2205 = vunpack.c.h.b16 %v564
    %v2206 = vunpack.c.l.b16 %v565
    %v2207 = vunpack.c.h.b16 %v565
    %v2208 = vunpack.c.l.b16 %v566
    %v2209 = vunpack.c.h.b16 %v566
    %v2210 = vunpack.c.l.b16 %v567
    %v2211 = vunpack.c.h.b16 %v567
    %v2212 = vunpack.c.l.b16 %v568
    %v2213 = vunpack.c.h.b16 %v568
    %v2214 = vunpack.c.l.b16 %v569
    %v2215 = vunpack.c.h.b16 %v569
    %v2216 = vunpack.c.l.b16 %v570
    %v2217 = vunpack.c.h.b16 %v570
    %v2218 = vunpack.c.l.b16 %v571
    %v2219 = vunpack.c.h.b16 %v571
    %v2220 = vunpack.c.l.b16 %v572
    %v2221 = vunpack.c.h.b16 %v572
    %v2222 = vunpack.c.l.b16 %v573
    %v2223 = vunpack.c.h.b16 %v573
    %v2224 = vunpack.c.l.b16 %v574
    %v2225 = vunpack.c.h.b16 %v574
    %v2226 = vunpack.c.l.b16 %v575
    %v2227 = vunpack.c.h.b16 %v575
    %v2228 = vunpack.c.l.b16 %v576
    %v2229 = vunpack.c.h.b16 %v576
    %v2230 = vunpack.c.l.b16 %v577
    %v2231 = vunpack.c.h.b16 %v577
    %v2232 = vunpack.c.l.b16 %v578
    %v2233 = vunpack.c.h.b16 %v578
    %v2234 = vunpack.c.l.b16 %v579
    %v2235 = vunpack.c.h.b16 %v579
    %v2236 = vpack.c.b16 %v1220, %v1212
    %v2237 = vpack.c.b16 %v1221, %v1213
    %v2238 = vpack.c.b16 %v1222, %v1214
    %v2239 = vpack.c.b16 %v1223, %v1215
    %v2240 = vpack.c.b16 %v1224, %v1216
    %v2241 = vpack.c.b16 %v1225, %v1217
    %v2242 = vpack.c.b16 %v1226, %v1218
    %v2243 = vpack.c.b16 %v1227, %v1219
    %v2244 = vpack.c.b16 %v1236, %v1228
    %v2245 = vpack.c.b16 %v1237, %v1229
    %v2246 = vpack.c.b16 %v1238, %v1230
    %v2247 = vpack.c.b16 %v1239, %v1231
    %v2248 = vpack.c.b16 %v1240, %v1232
    %v2249 = vpack.c.b16 %v1241, %v1233
    %v2250 = vpack.c.b16 %v1242, %v1234
    %v2251 = vpack.c.b16 %v1243, %v1235
    %v2252 = vpack.c.b16 %v1252, %v1244
    %v2253 = vpack.c.b16 %v1253, %v1245
    %v2254 = vpack.c.b16 %v1254, %v1246
    %v2255 = vpack.c.b16 %v1255, %v1247
    %v2256 = vpack.c.b16 %v1256, %v1248
    %v2257 = vpack.c.b16 %v1257, %v1249
    %v2258 = vpack.c.b16 %v1258, %v1250
    %v2259 = vpack.c.b16 %v1259, %v1251
    %v2260 = vpack.c.b16 %v1268, %v1260
    %v2261 = vpack.c.b16 %v1269, %v1261
    %v2262 = vpack.c.b16 %v1270, %v1262
    %v2263 = vpack.c.b16 %v1271, %v1263
    %v2264 = vpack.c.b16 %v1272, %v1264
    %v2265 = vpack.c.b16 %v1273, %v1265
    %v2266 = vpack.c.b16 %v1274, %v1266
    %v2267 = vpack.c.b16 %v1275, %v1267
    %v2268 = vpack.c.b16 %v1284, %v1276
    %v2269 = vpack.c.b16 %v1285, %v1277
    %v2270 = vpack.c.b16 %v1286, %v1278
    %v2271 = vpack.c.b16 %v1287, %v1279
    %v2272 = vpack.c.b16 %v1288, %v1280
    %v2273 = vpack.c.b16 %v1289, %v1281
    %v2274 = vpack.c.b16 %v1290, %v1282
    %v2275 = vpack.c.b16 %v1291, %v1283
    %v2276 = vpack.c.b16 %v1300, %v1292
    %v2277 = vpack.c.b16 %v1301, %v1293
    %v2278 = vpack.c.b16 %v1302, %v1294
    %v2279 = vpack.c.b16 %v1303, %v1295
    %v2280 = vpack.c.b16 %v1304, %v1296
    %v2281 = vpack.c.b16 %v1305, %v1297
    %v2282 = vpack.c.b16 %v1306, %v1298
    %v2283 = vpack.c.b16 %v1307, %v1299
    %v2284 = vpack.c.b16 %v1316, %v1308
    %v2285 = vpack.c.b16 %v1317, %v1309
    %v2286 = vpack.c.b16 %v1318, %v1310
    %v2287 = vpack.c.b16 %v1319, %v1311
    %v2288 = vpack.c.b16 %v1320, %v1312
    %v2289 = vpack.c.b16 %v1321, %v1313
    %v2290 = vpack.c.b16 %v1322, %v1314
    %v2291 = vpack.c.b16 %v1323, %v1315
    %v2292 = vpack.c.b16 %v1332, %v1324
    %v2293 = vpack.c.b16 %v1333, %v1325
    %v2294 = vpack.c.b16 %v1334, %v1326
    %v2295 = vpack.c.b16 %v1335, %v1327
    %v2296 = vpack.c.b16 %v1336, %v1328
    %v2297 = vpack.c.b16 %v1337, %v1329
    %v2298 = vpack.c.b16 %v1338, %v1330
    %v2299 = vpack.c.b16 %v1339, %v1331
    %v2300 = vpack.c.b16 %v1348, %v1340
    %v2301 = vpack.c.b16 %v1349, %v1341
    %v2302 = vpack.c.b16 %v1350, %v1342
    %v2303 = vpack.c.b16 %v1351, %v1343
    %v2304 = vpack.c.b16 %v1352, %v1344
    %v2305 = vpack.c.b16 %v1353, %v1345
    %v2306 = vpack.c.b16 %v1354, %v1346
    %v2307 = vpack.c.b16 %v1355, %v1347
    %v2308 = vpack.c.b16 %v1364, %v1356
    %v2309 = vpack.c.b16 %v1365, %v1357
    %v2310 = vpack.c.b16 %v1366, %v1358
    %v2311 = vpack.c.b16 %v1367, %v1359
    %v2312 = vpack.c.b16 %v1368, %v1360
    %v2313 = vpack.c.b16 %v1369, %v1361
    %v2314 = vpack.c.b16 %v1370, %v1362
    %v2315 = vpack.c.b16 %v1371, %v1363
    %v2316 = vpack.c.b16 %v1380, %v1372
    %v2317 = vpack.c.b16 %v1381, %v1373
    %v2318 = vpack.c.b16 %v1382, %v1374
    %v2319 = vpack.c.b16 %v1383, %v1375
    %v2320 = vpack.c.b16 %v1384, %v1376
    %v2321 = vpack.c.b16 %v1385, %v1377
    %v2322 = vpack.c.b16 %v1386, %v1378
    %v2323 = vpack.c.b16 %v1387, %v1379
    %v2324 = vpack.c.b16 %v1396, %v1388
    %v2325 = vpack.c.b16 %v1397, %v1389
    %v2326 = vpack.c.b16 %v1398, %v1390
    %v2327 = vpack.c.b16 %v1399, %v1391
    %v2328 = vpack.c.b16 %v1400, %v1392
    %v2329 = vpack.c.b16 %v1401, %v1393
    %v2330 = vpack.c.b16 %v1402, %v1394
    %v2331 = vpack.c.b16 %v1403, %v1395
    %v2332 = vpack.c.b16 %v1412, %v1404
    %v2333 = vpack.c.b16 %v1413, %v1405
    %v2334 = vpack.c.b16 %v1414, %v1406
    %v2335 = vpack.c.b16 %v1415, %v1407
    %v2336 = vpack.c.b16 %v1416, %v1408
    %v2337 = vpack.c.b16 %v1417, %v1409
    %v2338 = vpack.c.b16 %v1418, %v1410
    %v2339 = vpack.c.b16 %v1419, %v1411
    %v2340 = vpack.c.b16 %v1428, %v1420
    %v2341 = vpack.c.b16 %v1429, %v1421
    %v2342 = vpack.c.b16 %v1430, %v1422
    %v2343 = vpack.c.b16 %v1431, %v1423
    %v2344 = vpack.c.b16 %v1432, %v1424
    %v2345 = vpack.c.b16 %v1433, %v1425
    %v2346 = vpack.c.b16 %v1434, %v1426
    %v2347 = vpack.c.b16 %v1435, %v1427
    %v2348 = vpack.c.b16 %v1444, %v1436
    %v2349 = vpack.c.b16 %v1445, %v1437
    %v2350 = vpack.c.b16 %v1446, %v1438
    %v2351 = vpack.c.b16 %v1447, %v1439
    %v2352 = vpack.c.b16 %v1448, %v1440
    %v2353 = vpack.c.b16 %v1449, %v1441
    %v2354 = vpack.c.b16 %v1450, %v1442
    %v2355 = vpack.c.b16 %v1451, %v1443
    %v2356 = vpack.c.b16 %v1460, %v1452
    %v2357 = vpack.c.b16 %v1461, %v1453
    %v2358 = vpack.c.b16 %v1462, %v1454
    %v2359 = vpack.c.b16 %v1463, %v1455
    %v2360 = vpack.c.b16 %v1464, %v1456
    %v2361 = vpack.c.b16 %v1465, %v1457
    %v2362 = vpack.c.b16 %v1466, %v1458
    %v2363 = vpack.c.b16 %v1467, %v1459
    %v2364 = vpack.c.b16 %v1476, %v1468
    %v2365 = vpack.c.b16 %v1477, %v1469
    %v2366 = vpack.c.b16 %v1478, %v1470
    %v2367 = vpack.c.b16 %v1479, %v1471
    %v2368 = vpack.c.b16 %v1480, %v1472
    %v2369 = vpack.c.b16 %v1481, %v1473
    %v2370 = vpack.c.b16 %v1482, %v1474
    %v2371 = vpack.c.b16 %v1483, %v1475
    %v2372 = vpack.c.b16 %v1492, %v1484
    %v2373 = vpack.c.b16 %v1493, %v1485
    %v2374 = vpack.c.b16 %v1494, %v1486
    %v2375 = vpack.c.b16 %v1495, %v1487
    %v2376 = vpack.c.b16 %v1496, %v1488
    %v2377 = vpack.c.b16 %v1497, %v1489
    %v2378 = vpack.c.b16 %v1498, %v1490
    %v2379 = vpack.c.b16 %v1499, %v1491
    %v2380 = vpack.c.b16 %v1508, %v1500
    %v2381 = vpack.c.b16 %v1509, %v1501
    %v2382 = vpack.c.b16 %v1510, %v1502
    %v2383 = vpack.c.b16 %v1511, %v1503
    %v2384 = vpack.c.b16 %v1512, %v1504
    %v2385 = vpack.c.b16 %v1513, %v1505
    %v2386 = vpack.c.b16 %v1514, %v1506
    %v2387 = vpack.c.b16 %v1515, %v1507
    %v2388 = vpack.c.b16 %v1524, %v1516
    %v2389 = vpack.c.b16 %v1525, %v1517
    %v2390 = vpack.c.b16 %v1526, %v1518
    %v2391 = vpack.c.b16 %v1527, %v1519
    %v2392 = vpack.c.b16 %v1528, %v1520
    %v2393 = vpack.c.b16 %v1529, %v1521
    %v2394 = vpack.c.b16 %v1530, %v1522
    %v2395 = vpack.c.b16 %v1531, %v1523
    %v2396 = vpack.c.b16 %v1540, %v1532
    %v2397 = vpack.c.b16 %v1541, %v1533
    %v2398 = vpack.c.b16 %v1542, %v1534
    %v2399 = vpack.c.b16 %v1543, %v1535
    %v2400 = vpack.c.b16 %v1544, %v1536
    %v2401 = vpack.c.b16 %v1545, %v1537
    %v2402 = vpack.c.b16 %v1546, %v1538
    %v2403 = vpack.c.b16 %v1547, %v1539
    %v2404 = vpack.c.b16 %v1556, %v1548
    %v2405 = vpack.c.b16 %v1557, %v1549
    %v2406 = vpack.c.b16 %v1558, %v1550
    %v2407 = vpack.c.b16 %v1559, %v1551
    %v2408 = vpack.c.b16 %v1560, %v1552
    %v2409 = vpack.c.b16 %v1561, %v1553
    %v2410 = vpack.c.b16 %v1562, %v1554
    %v2411 = vpack.c.b16 %v1563, %v1555
    %v2412 = vpack.c.b16 %v1572, %v1564
    %v2413 = vpack.c.b16 %v1573, %v1565
    %v2414 = vpack.c.b16 %v1574, %v1566
    %v2415 = vpack.c.b16 %v1575, %v1567
    %v2416 = vpack.c.b16 %v1576, %v1568
    %v2417 = vpack.c.b16 %v1577, %v1569
    %v2418 = vpack.c.b16 %v1578, %v1570
    %v2419 = vpack.c.b16 %v1579, %v1571
    %v2420 = vpack.c.b16 %v1588, %v1580
    %v2421 = vpack.c.b16 %v1589, %v1581
    %v2422 = vpack.c.b16 %v1590, %v1582
    %v2423 = vpack.c.b16 %v1591, %v1583
    %v2424 = vpack.c.b16 %v1592, %v1584
    %v2425 = vpack.c.b16 %v1593, %v1585
    %v2426 = vpack.c.b16 %v1594, %v1586
    %v2427 = vpack.c.b16 %v1595, %v1587
    %v2428 = vpack.c.b16 %v1604, %v1596
    %v2429 = vpack.c.b16 %v1605, %v1597
    %v2430 = vpack.c.b16 %v1606, %v1598
    %v2431 = vpack.c.b16 %v1607, %v1599
    %v2432 = vpack.c.b16 %v1608, %v1600
    %v2433 = vpack.c.b16 %v1609, %v1601
    %v2434 = vpack.c.b16 %v1610, %v1602
    %v2435 = vpack.c.b16 %v1611, %v1603
    %v2436 = vpack.c.b16 %v1620, %v1612
    %v2437 = vpack.c.b16 %v1621, %v1613
    %v2438 = vpack.c.b16 %v1622, %v1614
    %v2439 = vpack.c.b16 %v1623, %v1615
    %v2440 = vpack.c.b16 %v1624, %v1616
    %v2441 = vpack.c.b16 %v1625, %v1617
    %v2442 = vpack.c.b16 %v1626, %v1618
    %v2443 = vpack.c.b16 %v1627, %v1619
    %v2444 = vpack.c.b16 %v1636, %v1628
    %v2445 = vpack.c.b16 %v1637, %v1629
    %v2446 = vpack.c.b16 %v1638, %v1630
    %v2447 = vpack.c.b16 %v1639, %v1631
    %v2448 = vpack.c.b16 %v1640, %v1632
    %v2449 = vpack.c.b16 %v1641, %v1633
    %v2450 = vpack.c.b16 %v1642, %v1634
    %v2451 = vpack.c.b16 %v1643, %v1635
    %v2452 = vpack.c.b16 %v1652, %v1644
    %v2453 = vpack.c.b16 %v1653, %v1645
    %v2454 = vpack.c.b16 %v1654, %v1646
    %v2455 = vpack.c.b16 %v1655, %v1647
    %v2456 = vpack.c.b16 %v1656, %v1648
    %v2457 = vpack.c.b16 %v1657, %v1649
    %v2458 = vpack.c.b16 %v1658, %v1650
    %v2459 = vpack.c.b16 %v1659, %v1651
    %v2460 = vpack.c.b16 %v1668, %v1660
    %v2461 = vpack.c.b16 %v1669, %v1661
    %v2462 = vpack.c.b16 %v1670, %v1662
    %v2463 = vpack.c.b16 %v1671, %v1663
    %v2464 = vpack.c.b16 %v1672, %v1664
    %v2465 = vpack.c.b16 %v1673, %v1665
    %v2466 = vpack.c.b16 %v1674, %v1666
    %v2467 = vpack.c.b16 %v1675, %v1667
    %v2468 = vpack.c.b16 %v1684, %v1676
    %v2469 = vpack.c.b16 %v1685, %v1677
    %v2470 = vpack.c.b16 %v1686, %v1678
    %v2471 = vpack.c.b16 %v1687, %v1679
    %v2472 = vpack.c.b16 %v1688, %v1680
    %v2473 = vpack.c.b16 %v1689, %v1681
    %v2474 = vpack.c.b16 %v1690, %v1682
    %v2475 = vpack.c.b16 %v1691, %v1683
    %v2476 = vpack.c.b16 %v1700, %v1692
    %v2477 = vpack.c.b16 %v1701, %v1693
    %v2478 = vpack.c.b16 %v1702, %v1694
    %v2479 = vpack.c.b16 %v1703, %v1695
    %v2480 = vpack.c.b16 %v1704, %v1696
    %v2481 = vpack.c.b16 %v1705, %v1697
    %v2482 = vpack.c.b16 %v1706, %v1698
    %v2483 = vpack.c.b16 %v1707, %v1699
    %v2484 = vpack.c.b16 %v1716, %v1708
    %v2485 = vpack.c.b16 %v1717, %v1709
    %v2486 = vpack.c.b16 %v1718, %v1710
    %v2487 = vpack.c.b16 %v1719, %v1711
    %v2488 = vpack.c.b16 %v1720, %v1712
    %v2489 = vpack.c.b16 %v1721, %v1713
    %v2490 = vpack.c.b16 %v1722, %v1714
    %v2491 = vpack.c.b16 %v1723, %v1715
    %v2492 = vpack.c.b16 %v1732, %v1724
    %v2493 = vpack.c.b16 %v1733, %v1725
    %v2494 = vpack.c.b16 %v1734, %v1726
    %v2495 = vpack.c.b16 %v1735, %v1727
    %v2496 = vpack.c.b16 %v1736, %v1728
    %v2497 = vpack.c.b16 %v1737, %v1729
    %v2498 = vpack.c.b16 %v1738, %v1730
    %v2499 = vpack.c.b16 %v1739, %v1731
    %v2500 = vpack.c.b16 %v1748, %v1740
    %v2501 = vpack.c.b16 %v1749, %v1741
    %v2502 = vpack.c.b16 %v1750, %v1742
    %v2503 = vpack.c.b16 %v1751, %v1743
    %v2504 = vpack.c.b16 %v1752, %v1744
    %v2505 = vpack.c.b16 %v1753, %v1745
    %v2506 = vpack.c.b16 %v1754, %v1746
    %v2507 = vpack.c.b16 %v1755, %v1747
    %v2508 = vpack.c.b16 %v1764, %v1756
    %v2509 = vpack.c.b16 %v1765, %v1757
    %v2510 = vpack.c.b16 %v1766, %v1758
    %v2511 = vpack.c.b16 %v1767, %v1759
    %v2512 = vpack.c.b16 %v1768, %v1760
    %v2513 = vpack.c.b16 %v1769, %v1761
    %v2514 = vpack.c.b16 %v1770, %v1762
    %v2515 = vpack.c.b16 %v1771, %v1763
    %v2516 = vpack.c.b16 %v1780, %v1772
    %v2517 = vpack.c.b16 %v1781, %v1773
    %v2518 = vpack.c.b16 %v1782, %v1774
    %v2519 = vpack.c.b16 %v1783, %v1775
    %v2520 = vpack.c.b16 %v1784, %v1776
    %v2521 = vpack.c.b16 %v1785, %v1777
    %v2522 = vpack.c.b16 %v1786, %v1778
    %v2523 = vpack.c.b16 %v1787, %v1779
    %v2524 = vpack.c.b16 %v1796, %v1788
    %v2525 = vpack.c.b16 %v1797, %v1789
    %v2526 = vpack.c.b16 %v1798, %v1790
    %v2527 = vpack.c.b16 %v1799, %v1791
    %v2528 = vpack.c.b16 %v1800, %v1792
    %v2529 = vpack.c.b16 %v1801, %v1793
    %v2530 = vpack.c.b16 %v1802, %v1794
    %v2531 = vpack.c.b16 %v1803, %v1795
    %v2532 = vpack.c.b16 %v1812, %v1804
    %v2533 = vpack.c.b16 %v1813, %v1805
    %v2534 = vpack.c.b16 %v1814, %v1806
    %v2535 = vpack.c.b16 %v1815, %v1807
    %v2536 = vpack.c.b16 %v1816, %v1808
    %v2537 = vpack.c.b16 %v1817, %v1809
    %v2538 = vpack.c.b16 %v1818, %v1810
    %v2539 = vpack.c.b16 %v1819, %v1811
    %v2540 = vpack.c.b16 %v1828, %v1820
    %v2541 = vpack.c.b16 %v1829, %v1821
    %v2542 = vpack.c.b16 %v1830, %v1822
    %v2543 = vpack.c.b16 %v1831, %v1823
    %v2544 = vpack.c.b16 %v1832, %v1824
    %v2545 = vpack.c.b16 %v1833, %v1825
    %v2546 = vpack.c.b16 %v1834, %v1826
    %v2547 = vpack.c.b16 %v1835, %v1827
    %v2548 = vpack.c.b16 %v1844, %v1836
    %v2549 = vpack.c.b16 %v1845, %v1837
    %v2550 = vpack.c.b16 %v1846, %v1838
    %v2551 = vpack.c.b16 %v1847, %v1839
    %v2552 = vpack.c.b16 %v1848, %v1840
    %v2553 = vpack.c.b16 %v1849, %v1841
    %v2554 = vpack.c.b16 %v1850, %v1842
    %v2555 = vpack.c.b16 %v1851, %v1843
    %v2556 = vpack.c.b16 %v1860, %v1852
    %v2557 = vpack.c.b16 %v1861, %v1853
    %v2558 = vpack.c.b16 %v1862, %v1854
    %v2559 = vpack.c.b16 %v1863, %v1855
    %v2560 = vpack.c.b16 %v1864, %v1856
    %v2561 = vpack.c.b16 %v1865, %v1857
    %v2562 = vpack.c.b16 %v1866, %v1858
    %v2563 = vpack.c.b16 %v1867, %v1859
    %v2564 = vpack.c.b16 %v1876, %v1868
    %v2565 = vpack.c.b16 %v1877, %v1869
    %v2566 = vpack.c.b16 %v1878, %v1870
    %v2567 = vpack.c.b16 %v1879, %v1871
    %v2568 = vpack.c.b16 %v1880, %v1872
    %v2569 = vpack.c.b16 %v1881, %v1873
    %v2570 = vpack.c.b16 %v1882, %v1874
    %v2571 = vpack.c.b16 %v1883, %v1875
    %v2572 = vpack.c.b16 %v1892, %v1884
    %v2573 = vpack.c.b16 %v1893, %v1885
    %v2574 = vpack.c.b16 %v1894, %v1886
    %v2575 = vpack.c.b16 %v1895, %v1887
    %v2576 = vpack.c.b16 %v1896, %v1888
    %v2577 = vpack.c.b16 %v1897, %v1889
    %v2578 = vpack.c.b16 %v1898, %v1890
    %v2579 = vpack.c.b16 %v1899, %v1891
    %v2580 = vpack.c.b16 %v1908, %v1900
    %v2581 = vpack.c.b16 %v1909, %v1901
    %v2582 = vpack.c.b16 %v1910, %v1902
    %v2583 = vpack.c.b16 %v1911, %v1903
    %v2584 = vpack.c.b16 %v1912, %v1904
    %v2585 = vpack.c.b16 %v1913, %v1905
    %v2586 = vpack.c.b16 %v1914, %v1906
    %v2587 = vpack.c.b16 %v1915, %v1907
    %v2588 = vpack.c.b16 %v1924, %v1916
    %v2589 = vpack.c.b16 %v1925, %v1917
    %v2590 = vpack.c.b16 %v1926, %v1918
    %v2591 = vpack.c.b16 %v1927, %v1919
    %v2592 = vpack.c.b16 %v1928, %v1920
    %v2593 = vpack.c.b16 %v1929, %v1921
    %v2594 = vpack.c.b16 %v1930, %v1922
    %v2595 = vpack.c.b16 %v1931, %v1923
    %v2596 = vpack.c.b16 %v1940, %v1932
    %v2597 = vpack.c.b16 %v1941, %v1933
    %v2598 = vpack.c.b16 %v1942, %v1934
    %v2599 = vpack.c.b16 %v1943, %v1935
    %v2600 = vpack.c.b16 %v1944, %v1936
    %v2601 = vpack.c.b16 %v1945, %v1937
    %v2602 = vpack.c.b16 %v1946, %v1938
    %v2603 = vpack.c.b16 %v1947, %v1939
    %v2604 = vpack.c.b16 %v1956, %v1948
    %v2605 = vpack.c.b16 %v1957, %v1949
    %v2606 = vpack.c.b16 %v1958, %v1950
    %v2607 = vpack.c.b16 %v1959, %v1951
    %v2608 = vpack.c.b16 %v1960, %v1952
    %v2609 = vpack.c.b16 %v1961, %v1953
    %v2610 = vpack.c.b16 %v1962, %v1954
    %v2611 = vpack.c.b16 %v1963, %v1955
    %v2612 = vpack.c.b16 %v1972, %v1964
    %v2613 = vpack.c.b16 %v1973, %v1965
    %v2614 = vpack.c.b16 %v1974, %v1966
    %v2615 = vpack.c.b16 %v1975, %v1967
    %v2616 = vpack.c.b16 %v1976, %v1968
    %v2617 = vpack.c.b16 %v1977, %v1969
    %v2618 = vpack.c.b16 %v1978, %v1970
    %v2619 = vpack.c.b16 %v1979, %v1971
    %v2620 = vpack.c.b16 %v1988, %v1980
    %v2621 = vpack.c.b16 %v1989, %v1981
    %v2622 = vpack.c.b16 %v1990, %v1982
    %v2623 = vpack.c.b16 %v1991, %v1983
    %v2624 = vpack.c.b16 %v1992, %v1984
    %v2625 = vpack.c.b16 %v1993, %v1985
    %v2626 = vpack.c.b16 %v1994, %v1986
    %v2627 = vpack.c.b16 %v1995, %v1987
    %v2628 = vpack.c.b16 %v2004, %v1996
    %v2629 = vpack.c.b16 %v2005, %v1997
    %v2630 = vpack.c.b16 %v2006, %v1998
    %v2631 = vpack.c.b16 %v2007, %v1999
    %v2632 = vpack.c.b16 %v2008, %v2000
    %v2633 = vpack.c.b16 %v2009, %v2001
    %v2634 = vpack.c.b16 %v2010, %v2002
    %v2635 = vpack.c.b16 %v2011, %v2003
    %v2636 = vpack.c.b16 %v2020, %v2012
    %v2637 = vpack.c.b16 %v2021, %v2013
    %v2638 = vpack.c.b16 %v2022, %v2014
    %v2639 = vpack.c.b16 %v2023, %v2015
    %v2640 = vpack.c.b16 %v2024, %v2016
    %v2641 = vpack.c.b16 %v2025, %v2017
    %v2642 = vpack.c.b16 %v2026, %v2018
    %v2643 = vpack.c.b16 %v2027, %v2019
    %v2644 = vpack.c.b16 %v2036, %v2028
    %v2645 = vpack.c.b16 %v2037, %v2029
    %v2646 = vpack.c.b16 %v2038, %v2030
    %v2647 = vpack.c.b16 %v2039, %v2031
    %v2648 = vpack.c.b16 %v2040, %v2032
    %v2649 = vpack.c.b16 %v2041, %v2033
    %v2650 = vpack.c.b16 %v2042, %v2034
    %v2651 = vpack.c.b16 %v2043, %v2035
    %v2652 = vpack.c.b16 %v2052, %v2044
    %v2653 = vpack.c.b16 %v2053, %v2045
    %v2654 = vpack.c.b16 %v2054, %v2046
    %v2655 = vpack.c.b16 %v2055, %v2047
    %v2656 = vpack.c.b16 %v2056, %v2048
    %v2657 = vpack.c.b16 %v2057, %v2049
    %v2658 = vpack.c.b16 %v2058, %v2050
    %v2659 = vpack.c.b16 %v2059, %v2051
    %v2660 = vpack.c.b16 %v2068, %v2060
    %v2661 = vpack.c.b16 %v2069, %v2061
    %v2662 = vpack.c.b16 %v2070, %v2062
    %v2663 = vpack.c.b16 %v2071, %v2063
    %v2664 = vpack.c.b16 %v2072, %v2064
    %v2665 = vpack.c.b16 %v2073, %v2065
    %v2666 = vpack.c.b16 %v2074, %v2066
    %v2667 = vpack.c.b16 %v2075, %v2067
    %v2668 = vpack.c.b16 %v2084, %v2076
    %v2669 = vpack.c.b16 %v2085, %v2077
    %v2670 = vpack.c.b16 %v2086, %v2078
    %v2671 = vpack.c.b16 %v2087, %v2079
    %v2672 = vpack.c.b16 %v2088, %v2080
    %v2673 = vpack.c.b16 %v2089, %v2081
    %v2674 = vpack.c.b16 %v2090, %v2082
    %v2675 = vpack.c.b16 %v2091, %v2083
    %v2676 = vpack.c.b16 %v2100, %v2092
    %v2677 = vpack.c.b16 %v2101, %v2093
    %v2678 = vpack.c.b16 %v2102, %v2094
    %v2679 = vpack.c.b16 %v2103, %v2095
    %v2680 = vpack.c.b16 %v2104, %v2096
    %v2681 = vpack.c.b16 %v2105, %v2097
    %v2682 = vpack.c.b16 %v2106, %v2098
    %v2683 = vpack.c.b16 %v2107, %v2099
    %v2684 = vpack.c.b16 %v2116, %v2108
    %v2685 = vpack.c.b16 %v2117, %v2109
    %v2686 = vpack.c.b16 %v2118, %v2110
    %v2687 = vpack.c.b16 %v2119, %v2111
    %v2688 = vpack.c.b16 %v2120, %v2112
    %v2689 = vpack.c.b16 %v2121, %v2113
    %v2690 = vpack.c.b16 %v2122, %v2114
    %v2691 = vpack.c.b16 %v2123, %v2115
    %v2692 = vpack.c.b16 %v2132, %v2124
    %v2693 = vpack.c.b16 %v2133, %v2125
    %v2694 = vpack.c.b16 %v2134, %v2126
    %v2695 = vpack.c.b16 %v2135, %v2127
    %v2696 = vpack.c.b16 %v2136, %v2128
    %v2697 = vpack.c.b16 %v2137, %v2129
    %v2698 = vpack.c.b16 %v2138, %v2130
    %v2699 = vpack.c.b16 %v2139, %v2131
    %v2700 = vpack.c.b16 %v2148, %v2140
    %v2701 = vpack.c.b16 %v2149, %v2141
    %v2702 = vpack.c.b16 %v2150, %v2142
    %v2703 = vpack.c.b16 %v2151, %v2143
    %v2704 = vpack.c.b16 %v2152, %v2144
    %v2705 = vpack.c.b16 %v2153, %v2145
    %v2706 = vpack.c.b16 %v2154, %v2146
    %v2707 = vpack.c.b16 %v2155, %v2147
    %v2708 = vpack.c.b16 %v2164, %v2156
    %v2709 = vpack.c.b16 %v2165, %v2157
    %v2710 = vpack.c.b16 %v2166, %v2158
    %v2711 = vpack.c.b16 %v2167, %v2159
    %v2712 = vpack.c.b16 %v2168, %v2160
    %v2713 = vpack.c.b16 %v2169, %v2161
    %v2714 = vpack.c.b16 %v2170, %v2162
    %v2715 = vpack.c.b16 %v2171, %v2163
    %v2716 = vpack.c.b16 %v2180, %v2172
    %v2717 = vpack.c.b16 %v2181, %v2173
    %v2718 = vpack.c.b16 %v2182, %v2174
    %v2719 = vpack.c.b16 %v2183, %v2175
    %v2720 = vpack.c.b16 %v2184, %v2176
    %v2721 = vpack.c.b16 %v2185, %v2177
    %v2722 = vpack.c.b16 %v2186, %v2178
    %v2723 = vpack.c.b16 %v2187, %v2179
    %v2724 = vpack.c.b16 %v2196, %v2188
    %v2725 = vpack.c.b16 %v2197, %v2189
    %v2726 = vpack.c.b16 %v2198, %v2190
    %v2727 = vpack.c.b16 %v2199, %v2191
    %v2728 = vpack.c.b16 %v2200, %v2192
    %v2729 = vpack.c.b16 %v2201, %v2193
    %v2730 = vpack.c.b16 %v2202, %v2194
    %v2731 = vpack.c.b16 %v2203, %v2195
    %v2732 = vpack.c.b16 %v2212, %v2204
    %v2733 = vpack.c.b16 %v2213, %v2205
    %v2734 = vpack.c.b16 %v2214, %v2206
    %v2735 = vpack.c.b16 %v2215, %v2207
    %v2736 = vpack.c.b16 %v2216, %v2208
    %v2737 = vpack.c.b16 %v2217, %v2209
    %v2738 = vpack.c.b16 %v2218, %v2210
    %v2739 = vpack.c.b16 %v2219, %v2211
    %v2740 = vpack.c.b16 %v2228, %v2220
    %v2741 = vpack.c.b16 %v2229, %v2221
    %v2742 = vpack.c.b16 %v2230, %v2222
    %v2743 = vpack.c.b16 %v2231, %v2223
    %v2744 = vpack.c.b16 %v2232, %v2224
    %v2745 = vpack.c.b16 %v2233, %v2225
    %v2746 = vpack.c.b16 %v2234, %v2226
    %v2747 = vpack.c.b16 %v2235, %v2227
    %3260 = vmatpush.bf16.msra.mxu0 %v2292
    %3261 = vmatpush.bf16.msra.mxu0 %v2284
    %3262 = vmatpush.bf16.msra.mxu0 %v2276
    %3263 = vmatpush.bf16.msra.mxu0 %v2268
    %3264 = vmatpush.bf16.msra.mxu0 %v2260
    %3265 = vmatpush.bf16.msra.mxu0 %v2252
    %3266 = vmatpush.bf16.msra.mxu0 %v2244
    %3267 = vmatpush.bf16.msra.mxu0 %v2236
    %3268 = vmatmul.bf16.gmra.mxu0 %v652
    %v3269 = vpop.f32.mrf.mxu0
    %v3270 = vadd.f32 0.0, %v3269
    %v3271 = vpop.f32.mrf.mxu0
    %v3272 = vadd.f32 0.0, %v3271
    %3273 = vmatmul.bf16.gmra.mxu0 %v660
    %v3274 = vpop.f32.mrf.mxu0
    %v3275 = vadd.f32 0.0, %v3274
    %v3276 = vpop.f32.mrf.mxu0
    %v3277 = vadd.f32 0.0, %v3276
    %3278 = vmatmul.bf16.gmra.mxu0 %v668
    %v3279 = vpop.f32.mrf.mxu0
    %v3280 = vadd.f32 0.0, %v3279
    %v3281 = vpop.f32.mrf.mxu0
    %v3282 = vadd.f32 0.0, %v3281
    %3283 = vdwg.mxu0
    %3284 = vmatpush.bf16.msra.mxu0 %v2356
    %3285 = vmatpush.bf16.msra.mxu0 %v2348
    %3286 = vmatpush.bf16.msra.mxu0 %v2340
    %3287 = vmatpush.bf16.msra.mxu0 %v2332
    %3288 = vmatpush.bf16.msra.mxu0 %v2324
    %3289 = vmatpush.bf16.msra.mxu0 %v2316
    %3290 = vmatpush.bf16.msra.mxu0 %v2308
    %3291 = vmatpush.bf16.msra.mxu0 %v2300
    %3292 = vmatmul.bf16.gmra.mxu0 %v653
    %v3293 = vpop.f32.mrf.mxu0
    %v3294 = vadd.f32 %v3270, %v3293
    %v3295 = vpop.f32.mrf.mxu0
    %v3296 = vadd.f32 %v3272, %v3295
    %3297 = vmatmul.bf16.gmra.mxu0 %v661
    %v3298 = vpop.f32.mrf.mxu0
    %v3299 = vadd.f32 %v3275, %v3298
    %v3300 = vpop.f32.mrf.mxu0
    %v3301 = vadd.f32 %v3277, %v3300
    %3302 = vmatmul.bf16.gmra.mxu0 %v669
    %v3303 = vpop.f32.mrf.mxu0
    %v3304 = vadd.f32 %v3280, %v3303
    %v3305 = vpop.f32.mrf.mxu0
    %v3306 = vadd.f32 %v3282, %v3305
    %3307 = vdwg.mxu0
    %3308 = vmatpush.bf16.msra.mxu0 %v2420
    %3309 = vmatpush.bf16.msra.mxu0 %v2412
    %3310 = vmatpush.bf16.msra.mxu0 %v2404
    %3311 = vmatpush.bf16.msra.mxu0 %v2396
    %3312 = vmatpush.bf16.msra.mxu0 %v2388
    %3313 = vmatpush.bf16.msra.mxu0 %v2380
    %3314 = vmatpush.bf16.msra.mxu0 %v2372
    %3315 = vmatpush.bf16.msra.mxu0 %v2364
    %3316 = vmatmul.bf16.gmra.mxu0 %v654
    %v3317 = vpop.f32.mrf.mxu0
    %v3318 = vadd.f32 %v3294, %v3317
    %v3319 = vpop.f32.mrf.mxu0
    %v3320 = vadd.f32 %v3296, %v3319
    %3321 = vmatmul.bf16.gmra.mxu0 %v662
    %v3322 = vpop.f32.mrf.mxu0
    %v3323 = vadd.f32 %v3299, %v3322
    %v3324 = vpop.f32.mrf.mxu0
    %v3325 = vadd.f32 %v3301, %v3324
    %3326 = vmatmul.bf16.gmra.mxu0 %v670
    %v3327 = vpop.f32.mrf.mxu0
    %v3328 = vadd.f32 %v3304, %v3327
    %v3329 = vpop.f32.mrf.mxu0
    %v3330 = vadd.f32 %v3306, %v3329
    %3331 = vdwg.mxu0
    %3332 = vmatpush.bf16.msra.mxu0 %v2484
    %3333 = vmatpush.bf16.msra.mxu0 %v2476
    %3334 = vmatpush.bf16.msra.mxu0 %v2468
    %3335 = vmatpush.bf16.msra.mxu0 %v2460
    %3336 = vmatpush.bf16.msra.mxu0 %v2452
    %3337 = vmatpush.bf16.msra.mxu0 %v2444
    %3338 = vmatpush.bf16.msra.mxu0 %v2436
    %3339 = vmatpush.bf16.msra.mxu0 %v2428
    %3340 = vmatmul.bf16.gmra.mxu0 %v655
    %v3341 = vpop.f32.mrf.mxu0
    %v3342 = vadd.f32 %v3318, %v3341
    %v3343 = vpop.f32.mrf.mxu0
    %v3344 = vadd.f32 %v3320, %v3343
    %3345 = vmatmul.bf16.gmra.mxu0 %v663
    %v3346 = vpop.f32.mrf.mxu0
    %v3347 = vadd.f32 %v3323, %v3346
    %v3348 = vpop.f32.mrf.mxu0
    %v3349 = vadd.f32 %v3325, %v3348
    %3350 = vmatmul.bf16.gmra.mxu0 %v671
    %v3351 = vpop.f32.mrf.mxu0
    %v3352 = vadd.f32 %v3328, %v3351
    %v3353 = vpop.f32.mrf.mxu0
    %v3354 = vadd.f32 %v3330, %v3353
    %3355 = vdwg.mxu0
    %3356 = vmatpush.bf16.msra.mxu0 %v2548
    %3357 = vmatpush.bf16.msra.mxu0 %v2540
    %3358 = vmatpush.bf16.msra.mxu0 %v2532
    %3359 = vmatpush.bf16.msra.mxu0 %v2524
    %3360 = vmatpush.bf16.msra.mxu0 %v2516
    %3361 = vmatpush.bf16.msra.mxu0 %v2508
    %3362 = vmatpush.bf16.msra.mxu0 %v2500
    %3363 = vmatpush.bf16.msra.mxu0 %v2492
    %3364 = vmatmul.bf16.gmra.mxu0 %v656
    %v3365 = vpop.f32.mrf.mxu0
    %v3366 = vadd.f32 %v3342, %v3365
    %v3367 = vpop.f32.mrf.mxu0
    %v3368 = vadd.f32 %v3344, %v3367
    %3369 = vmatmul.bf16.gmra.mxu0 %v664
    %v3370 = vpop.f32.mrf.mxu0
    %v3371 = vadd.f32 %v3347, %v3370
    %v3372 = vpop.f32.mrf.mxu0
    %v3373 = vadd.f32 %v3349, %v3372
    %3374 = vmatmul.bf16.gmra.mxu0 %v672
    %v3375 = vpop.f32.mrf.mxu0
    %v3376 = vadd.f32 %v3352, %v3375
    %v3377 = vpop.f32.mrf.mxu0
    %v3378 = vadd.f32 %v3354, %v3377
    %3379 = vdwg.mxu0
    %3380 = vmatpush.bf16.msra.mxu0 %v2612
    %3381 = vmatpush.bf16.msra.mxu0 %v2604
    %3382 = vmatpush.bf16.msra.mxu0 %v2596
    %3383 = vmatpush.bf16.msra.mxu0 %v2588
    %3384 = vmatpush.bf16.msra.mxu0 %v2580
    %3385 = vmatpush.bf16.msra.mxu0 %v2572
    %3386 = vmatpush.bf16.msra.mxu0 %v2564
    %3387 = vmatpush.bf16.msra.mxu0 %v2556
    %3388 = vmatmul.bf16.gmra.mxu0 %v657
    %v3389 = vpop.f32.mrf.mxu0
    %v3390 = vadd.f32 %v3366, %v3389
    %v3391 = vpop.f32.mrf.mxu0
    %v3392 = vadd.f32 %v3368, %v3391
    %3393 = vmatmul.bf16.gmra.mxu0 %v665
    %v3394 = vpop.f32.mrf.mxu0
    %v3395 = vadd.f32 %v3371, %v3394
    %v3396 = vpop.f32.mrf.mxu0
    %v3397 = vadd.f32 %v3373, %v3396
    %3398 = vmatmul.bf16.gmra.mxu0 %v673
    %v3399 = vpop.f32.mrf.mxu0
    %v3400 = vadd.f32 %v3376, %v3399
    %v3401 = vpop.f32.mrf.mxu0
    %v3402 = vadd.f32 %v3378, %v3401
    %3403 = vdwg.mxu0
    %3404 = vmatpush.bf16.msra.mxu0 %v2676
    %3405 = vmatpush.bf16.msra.mxu0 %v2668
    %3406 = vmatpush.bf16.msra.mxu0 %v2660
    %3407 = vmatpush.bf16.msra.mxu0 %v2652
    %3408 = vmatpush.bf16.msra.mxu0 %v2644
    %3409 = vmatpush.bf16.msra.mxu0 %v2636
    %3410 = vmatpush.bf16.msra.mxu0 %v2628
    %3411 = vmatpush.bf16.msra.mxu0 %v2620
    %3412 = vmatmul.bf16.gmra.mxu0 %v658
    %v3413 = vpop.f32.mrf.mxu0
    %v3414 = vadd.f32 %v3390, %v3413
    %v3415 = vpop.f32.mrf.mxu0
    %v3416 = vadd.f32 %v3392, %v3415
    %3417 = vmatmul.bf16.gmra.mxu0 %v666
    %v3418 = vpop.f32.mrf.mxu0
    %v3419 = vadd.f32 %v3395, %v3418
    %v3420 = vpop.f32.mrf.mxu0
    %v3421 = vadd.f32 %v3397, %v3420
    %3422 = vmatmul.bf16.gmra.mxu0 %v674
    %v3423 = vpop.f32.mrf.mxu0
    %v3424 = vadd.f32 %v3400, %v3423
    %v3425 = vpop.f32.mrf.mxu0
    %v3426 = vadd.f32 %v3402, %v3425
    %3427 = vdwg.mxu0
    %3428 = vmatpush.bf16.msra.mxu0 %v2740
    %3429 = vmatpush.bf16.msra.mxu0 %v2732
    %3430 = vmatpush.bf16.msra.mxu0 %v2724
    %3431 = vmatpush.bf16.msra.mxu0 %v2716
    %3432 = vmatpush.bf16.msra.mxu0 %v2708
    %3433 = vmatpush.bf16.msra.mxu0 %v2700
    %3434 = vmatpush.bf16.msra.mxu0 %v2692
    %3435 = vmatpush.bf16.msra.mxu0 %v2684
    %3436 = vmatmul.bf16.gmra.mxu0 %v659
    %v3437 = vpop.f32.mrf.mxu0
    %v3438 = vadd.f32 %v3414, %v3437
    %v3439 = vpop.f32.mrf.mxu0
    %v3440 = vadd.f32 %v3416, %v3439
    %3441 = vmatmul.bf16.gmra.mxu0 %v667
    %v3442 = vpop.f32.mrf.mxu0
    %v3443 = vadd.f32 %v3419, %v3442
    %v3444 = vpop.f32.mrf.mxu0
    %v3445 = vadd.f32 %v3421, %v3444
    %3446 = vmatmul.bf16.gmra.mxu0 %v675
    %v3447 = vpop.f32.mrf.mxu0
    %v3448 = vadd.f32 %v3424, %v3447
    %v3449 = vpop.f32.mrf.mxu0
    %v3450 = vadd.f32 %v3426, %v3449
    %3451 = vdwg.mxu0
    %3452 = vmatpush.bf16.msra.mxu0 %v2293
    %3453 = vmatpush.bf16.msra.mxu0 %v2285
    %3454 = vmatpush.bf16.msra.mxu0 %v2277
    %3455 = vmatpush.bf16.msra.mxu0 %v2269
    %3456 = vmatpush.bf16.msra.mxu0 %v2261
    %3457 = vmatpush.bf16.msra.mxu0 %v2253
    %3458 = vmatpush.bf16.msra.mxu0 %v2245
    %3459 = vmatpush.bf16.msra.mxu0 %v2237
    %3460 = vmatmul.bf16.gmra.mxu0 %v652
    %v3461 = vpop.f32.mrf.mxu0
    %v3462 = vadd.f32 0.0, %v3461
    %v3463 = vpop.f32.mrf.mxu0
    %v3464 = vadd.f32 0.0, %v3463
    %3465 = vmatmul.bf16.gmra.mxu0 %v660
    %v3466 = vpop.f32.mrf.mxu0
    %v3467 = vadd.f32 0.0, %v3466
    %v3468 = vpop.f32.mrf.mxu0
    %v3469 = vadd.f32 0.0, %v3468
    %3470 = vmatmul.bf16.gmra.mxu0 %v668
    %v3471 = vpop.f32.mrf.mxu0
    %v3472 = vadd.f32 0.0, %v3471
    %v3473 = vpop.f32.mrf.mxu0
    %v3474 = vadd.f32 0.0, %v3473
    %3475 = vdwg.mxu0
    %3476 = vmatpush.bf16.msra.mxu0 %v2357
    %3477 = vmatpush.bf16.msra.mxu0 %v2349
    %3478 = vmatpush.bf16.msra.mxu0 %v2341
    %3479 = vmatpush.bf16.msra.mxu0 %v2333
    %3480 = vmatpush.bf16.msra.mxu0 %v2325
    %3481 = vmatpush.bf16.msra.mxu0 %v2317
    %3482 = vmatpush.bf16.msra.mxu0 %v2309
    %3483 = vmatpush.bf16.msra.mxu0 %v2301
    %3484 = vmatmul.bf16.gmra.mxu0 %v653
    %v3485 = vpop.f32.mrf.mxu0
    %v3486 = vadd.f32 %v3462, %v3485
    %v3487 = vpop.f32.mrf.mxu0
    %v3488 = vadd.f32 %v3464, %v3487
    %3489 = vmatmul.bf16.gmra.mxu0 %v661
    %v3490 = vpop.f32.mrf.mxu0
    %v3491 = vadd.f32 %v3467, %v3490
    %v3492 = vpop.f32.mrf.mxu0
    %v3493 = vadd.f32 %v3469, %v3492
    %3494 = vmatmul.bf16.gmra.mxu0 %v669
    %v3495 = vpop.f32.mrf.mxu0
    %v3496 = vadd.f32 %v3472, %v3495
    %v3497 = vpop.f32.mrf.mxu0
    %v3498 = vadd.f32 %v3474, %v3497
    %3499 = vdwg.mxu0
    %3500 = vmatpush.bf16.msra.mxu0 %v2421
    %3501 = vmatpush.bf16.msra.mxu0 %v2413
    %3502 = vmatpush.bf16.msra.mxu0 %v2405
    %3503 = vmatpush.bf16.msra.mxu0 %v2397
    %3504 = vmatpush.bf16.msra.mxu0 %v2389
    %3505 = vmatpush.bf16.msra.mxu0 %v2381
    %3506 = vmatpush.bf16.msra.mxu0 %v2373
    %3507 = vmatpush.bf16.msra.mxu0 %v2365
    %3508 = vmatmul.bf16.gmra.mxu0 %v654
    %v3509 = vpop.f32.mrf.mxu0
    %v3510 = vadd.f32 %v3486, %v3509
    %v3511 = vpop.f32.mrf.mxu0
    %v3512 = vadd.f32 %v3488, %v3511
    %3513 = vmatmul.bf16.gmra.mxu0 %v662
    %v3514 = vpop.f32.mrf.mxu0
    %v3515 = vadd.f32 %v3491, %v3514
    %v3516 = vpop.f32.mrf.mxu0
    %v3517 = vadd.f32 %v3493, %v3516
    %3518 = vmatmul.bf16.gmra.mxu0 %v670
    %v3519 = vpop.f32.mrf.mxu0
    %v3520 = vadd.f32 %v3496, %v3519
    %v3521 = vpop.f32.mrf.mxu0
    %v3522 = vadd.f32 %v3498, %v3521
    %3523 = vdwg.mxu0
    %3524 = vmatpush.bf16.msra.mxu0 %v2485
    %3525 = vmatpush.bf16.msra.mxu0 %v2477
    %3526 = vmatpush.bf16.msra.mxu0 %v2469
    %3527 = vmatpush.bf16.msra.mxu0 %v2461
    %3528 = vmatpush.bf16.msra.mxu0 %v2453
    %3529 = vmatpush.bf16.msra.mxu0 %v2445
    %3530 = vmatpush.bf16.msra.mxu0 %v2437
    %3531 = vmatpush.bf16.msra.mxu0 %v2429
    %3532 = vmatmul.bf16.gmra.mxu0 %v655
    %v3533 = vpop.f32.mrf.mxu0
    %v3534 = vadd.f32 %v3510, %v3533
    %v3535 = vpop.f32.mrf.mxu0
    %v3536 = vadd.f32 %v3512, %v3535
    %3537 = vmatmul.bf16.gmra.mxu0 %v663
    %v3538 = vpop.f32.mrf.mxu0
    %v3539 = vadd.f32 %v3515, %v3538
    %v3540 = vpop.f32.mrf.mxu0
    %v3541 = vadd.f32 %v3517, %v3540
    %3542 = vmatmul.bf16.gmra.mxu0 %v671
    %v3543 = vpop.f32.mrf.mxu0
    %v3544 = vadd.f32 %v3520, %v3543
    %v3545 = vpop.f32.mrf.mxu0
    %v3546 = vadd.f32 %v3522, %v3545
    %3547 = vdwg.mxu0
    %3548 = vmatpush.bf16.msra.mxu0 %v2549
    %3549 = vmatpush.bf16.msra.mxu0 %v2541
    %3550 = vmatpush.bf16.msra.mxu0 %v2533
    %3551 = vmatpush.bf16.msra.mxu0 %v2525
    %3552 = vmatpush.bf16.msra.mxu0 %v2517
    %3553 = vmatpush.bf16.msra.mxu0 %v2509
    %3554 = vmatpush.bf16.msra.mxu0 %v2501
    %3555 = vmatpush.bf16.msra.mxu0 %v2493
    %3556 = vmatmul.bf16.gmra.mxu0 %v656
    %v3557 = vpop.f32.mrf.mxu0
    %v3558 = vadd.f32 %v3534, %v3557
    %v3559 = vpop.f32.mrf.mxu0
    %v3560 = vadd.f32 %v3536, %v3559
    %3561 = vmatmul.bf16.gmra.mxu0 %v664
    %v3562 = vpop.f32.mrf.mxu0
    %v3563 = vadd.f32 %v3539, %v3562
    %v3564 = vpop.f32.mrf.mxu0
    %v3565 = vadd.f32 %v3541, %v3564
    %3566 = vmatmul.bf16.gmra.mxu0 %v672
    %v3567 = vpop.f32.mrf.mxu0
    %v3568 = vadd.f32 %v3544, %v3567
    %v3569 = vpop.f32.mrf.mxu0
    %v3570 = vadd.f32 %v3546, %v3569
    %3571 = vdwg.mxu0
    %3572 = vmatpush.bf16.msra.mxu0 %v2613
    %3573 = vmatpush.bf16.msra.mxu0 %v2605
    %3574 = vmatpush.bf16.msra.mxu0 %v2597
    %3575 = vmatpush.bf16.msra.mxu0 %v2589
    %3576 = vmatpush.bf16.msra.mxu0 %v2581
    %3577 = vmatpush.bf16.msra.mxu0 %v2573
    %3578 = vmatpush.bf16.msra.mxu0 %v2565
    %3579 = vmatpush.bf16.msra.mxu0 %v2557
    %3580 = vmatmul.bf16.gmra.mxu0 %v657
    %v3581 = vpop.f32.mrf.mxu0
    %v3582 = vadd.f32 %v3558, %v3581
    %v3583 = vpop.f32.mrf.mxu0
    %v3584 = vadd.f32 %v3560, %v3583
    %3585 = vmatmul.bf16.gmra.mxu0 %v665
    %v3586 = vpop.f32.mrf.mxu0
    %v3587 = vadd.f32 %v3563, %v3586
    %v3588 = vpop.f32.mrf.mxu0
    %v3589 = vadd.f32 %v3565, %v3588
    %3590 = vmatmul.bf16.gmra.mxu0 %v673
    %v3591 = vpop.f32.mrf.mxu0
    %v3592 = vadd.f32 %v3568, %v3591
    %v3593 = vpop.f32.mrf.mxu0
    %v3594 = vadd.f32 %v3570, %v3593
    %3595 = vdwg.mxu0
    %3596 = vmatpush.bf16.msra.mxu0 %v2677
    %3597 = vmatpush.bf16.msra.mxu0 %v2669
    %3598 = vmatpush.bf16.msra.mxu0 %v2661
    %3599 = vmatpush.bf16.msra.mxu0 %v2653
    %3600 = vmatpush.bf16.msra.mxu0 %v2645
    %3601 = vmatpush.bf16.msra.mxu0 %v2637
    %3602 = vmatpush.bf16.msra.mxu0 %v2629
    %3603 = vmatpush.bf16.msra.mxu0 %v2621
    %3604 = vmatmul.bf16.gmra.mxu0 %v658
    %v3605 = vpop.f32.mrf.mxu0
    %v3606 = vadd.f32 %v3582, %v3605
    %v3607 = vpop.f32.mrf.mxu0
    %v3608 = vadd.f32 %v3584, %v3607
    %3609 = vmatmul.bf16.gmra.mxu0 %v666
    %v3610 = vpop.f32.mrf.mxu0
    %v3611 = vadd.f32 %v3587, %v3610
    %v3612 = vpop.f32.mrf.mxu0
    %v3613 = vadd.f32 %v3589, %v3612
    %3614 = vmatmul.bf16.gmra.mxu0 %v674
    %v3615 = vpop.f32.mrf.mxu0
    %v3616 = vadd.f32 %v3592, %v3615
    %v3617 = vpop.f32.mrf.mxu0
    %v3618 = vadd.f32 %v3594, %v3617
    %3619 = vdwg.mxu0
    %3620 = vmatpush.bf16.msra.mxu0 %v2741
    %3621 = vmatpush.bf16.msra.mxu0 %v2733
    %3622 = vmatpush.bf16.msra.mxu0 %v2725
    %3623 = vmatpush.bf16.msra.mxu0 %v2717
    %3624 = vmatpush.bf16.msra.mxu0 %v2709
    %3625 = vmatpush.bf16.msra.mxu0 %v2701
    %3626 = vmatpush.bf16.msra.mxu0 %v2693
    %3627 = vmatpush.bf16.msra.mxu0 %v2685
    %3628 = vmatmul.bf16.gmra.mxu0 %v659
    %v3629 = vpop.f32.mrf.mxu0
    %v3630 = vadd.f32 %v3606, %v3629
    %v3631 = vpop.f32.mrf.mxu0
    %v3632 = vadd.f32 %v3608, %v3631
    %3633 = vmatmul.bf16.gmra.mxu0 %v667
    %v3634 = vpop.f32.mrf.mxu0
    %v3635 = vadd.f32 %v3611, %v3634
    %v3636 = vpop.f32.mrf.mxu0
    %v3637 = vadd.f32 %v3613, %v3636
    %3638 = vmatmul.bf16.gmra.mxu0 %v675
    %v3639 = vpop.f32.mrf.mxu0
    %v3640 = vadd.f32 %v3616, %v3639
    %v3641 = vpop.f32.mrf.mxu0
    %v3642 = vadd.f32 %v3618, %v3641
    %3643 = vdwg.mxu0
    %3644 = vmatpush.bf16.msra.mxu0 %v2294
    %3645 = vmatpush.bf16.msra.mxu0 %v2286
    %3646 = vmatpush.bf16.msra.mxu0 %v2278
    %3647 = vmatpush.bf16.msra.mxu0 %v2270
    %3648 = vmatpush.bf16.msra.mxu0 %v2262
    %3649 = vmatpush.bf16.msra.mxu0 %v2254
    %3650 = vmatpush.bf16.msra.mxu0 %v2246
    %3651 = vmatpush.bf16.msra.mxu0 %v2238
    %3652 = vmatmul.bf16.gmra.mxu0 %v652
    %v3653 = vpop.f32.mrf.mxu0
    %v3654 = vadd.f32 0.0, %v3653
    %v3655 = vpop.f32.mrf.mxu0
    %v3656 = vadd.f32 0.0, %v3655
    %3657 = vmatmul.bf16.gmra.mxu0 %v660
    %v3658 = vpop.f32.mrf.mxu0
    %v3659 = vadd.f32 0.0, %v3658
    %v3660 = vpop.f32.mrf.mxu0
    %v3661 = vadd.f32 0.0, %v3660
    %3662 = vmatmul.bf16.gmra.mxu0 %v668
    %v3663 = vpop.f32.mrf.mxu0
    %v3664 = vadd.f32 0.0, %v3663
    %v3665 = vpop.f32.mrf.mxu0
    %v3666 = vadd.f32 0.0, %v3665
    %3667 = vdwg.mxu0
    %3668 = vmatpush.bf16.msra.mxu0 %v2358
    %3669 = vmatpush.bf16.msra.mxu0 %v2350
    %3670 = vmatpush.bf16.msra.mxu0 %v2342
    %3671 = vmatpush.bf16.msra.mxu0 %v2334
    %3672 = vmatpush.bf16.msra.mxu0 %v2326
    %3673 = vmatpush.bf16.msra.mxu0 %v2318
    %3674 = vmatpush.bf16.msra.mxu0 %v2310
    %3675 = vmatpush.bf16.msra.mxu0 %v2302
    %3676 = vmatmul.bf16.gmra.mxu0 %v653
    %v3677 = vpop.f32.mrf.mxu0
    %v3678 = vadd.f32 %v3654, %v3677
    %v3679 = vpop.f32.mrf.mxu0
    %v3680 = vadd.f32 %v3656, %v3679
    %3681 = vmatmul.bf16.gmra.mxu0 %v661
    %v3682 = vpop.f32.mrf.mxu0
    %v3683 = vadd.f32 %v3659, %v3682
    %v3684 = vpop.f32.mrf.mxu0
    %v3685 = vadd.f32 %v3661, %v3684
    %3686 = vmatmul.bf16.gmra.mxu0 %v669
    %v3687 = vpop.f32.mrf.mxu0
    %v3688 = vadd.f32 %v3664, %v3687
    %v3689 = vpop.f32.mrf.mxu0
    %v3690 = vadd.f32 %v3666, %v3689
    %3691 = vdwg.mxu0
    %3692 = vmatpush.bf16.msra.mxu0 %v2422
    %3693 = vmatpush.bf16.msra.mxu0 %v2414
    %3694 = vmatpush.bf16.msra.mxu0 %v2406
    %3695 = vmatpush.bf16.msra.mxu0 %v2398
    %3696 = vmatpush.bf16.msra.mxu0 %v2390
    %3697 = vmatpush.bf16.msra.mxu0 %v2382
    %3698 = vmatpush.bf16.msra.mxu0 %v2374
    %3699 = vmatpush.bf16.msra.mxu0 %v2366
    %3700 = vmatmul.bf16.gmra.mxu0 %v654
    %v3701 = vpop.f32.mrf.mxu0
    %v3702 = vadd.f32 %v3678, %v3701
    %v3703 = vpop.f32.mrf.mxu0
    %v3704 = vadd.f32 %v3680, %v3703
    %3705 = vmatmul.bf16.gmra.mxu0 %v662
    %v3706 = vpop.f32.mrf.mxu0
    %v3707 = vadd.f32 %v3683, %v3706
    %v3708 = vpop.f32.mrf.mxu0
    %v3709 = vadd.f32 %v3685, %v3708
    %3710 = vmatmul.bf16.gmra.mxu0 %v670
    %v3711 = vpop.f32.mrf.mxu0
    %v3712 = vadd.f32 %v3688, %v3711
    %v3713 = vpop.f32.mrf.mxu0
    %v3714 = vadd.f32 %v3690, %v3713
    %3715 = vdwg.mxu0
    %3716 = vmatpush.bf16.msra.mxu0 %v2486
    %3717 = vmatpush.bf16.msra.mxu0 %v2478
    %3718 = vmatpush.bf16.msra.mxu0 %v2470
    %3719 = vmatpush.bf16.msra.mxu0 %v2462
    %3720 = vmatpush.bf16.msra.mxu0 %v2454
    %3721 = vmatpush.bf16.msra.mxu0 %v2446
    %3722 = vmatpush.bf16.msra.mxu0 %v2438
    %3723 = vmatpush.bf16.msra.mxu0 %v2430
    %3724 = vmatmul.bf16.gmra.mxu0 %v655
    %v3725 = vpop.f32.mrf.mxu0
    %v3726 = vadd.f32 %v3702, %v3725
    %v3727 = vpop.f32.mrf.mxu0
    %v3728 = vadd.f32 %v3704, %v3727
    %3729 = vmatmul.bf16.gmra.mxu0 %v663
    %v3730 = vpop.f32.mrf.mxu0
    %v3731 = vadd.f32 %v3707, %v3730
    %v3732 = vpop.f32.mrf.mxu0
    %v3733 = vadd.f32 %v3709, %v3732
    %3734 = vmatmul.bf16.gmra.mxu0 %v671
    %v3735 = vpop.f32.mrf.mxu0
    %v3736 = vadd.f32 %v3712, %v3735
    %v3737 = vpop.f32.mrf.mxu0
    %v3738 = vadd.f32 %v3714, %v3737
    %3739 = vdwg.mxu0
    %3740 = vmatpush.bf16.msra.mxu0 %v2550
    %3741 = vmatpush.bf16.msra.mxu0 %v2542
    %3742 = vmatpush.bf16.msra.mxu0 %v2534
    %3743 = vmatpush.bf16.msra.mxu0 %v2526
    %3744 = vmatpush.bf16.msra.mxu0 %v2518
    %3745 = vmatpush.bf16.msra.mxu0 %v2510
    %3746 = vmatpush.bf16.msra.mxu0 %v2502
    %3747 = vmatpush.bf16.msra.mxu0 %v2494
    %3748 = vmatmul.bf16.gmra.mxu0 %v656
    %v3749 = vpop.f32.mrf.mxu0
    %v3750 = vadd.f32 %v3726, %v3749
    %v3751 = vpop.f32.mrf.mxu0
    %v3752 = vadd.f32 %v3728, %v3751
    %3753 = vmatmul.bf16.gmra.mxu0 %v664
    %v3754 = vpop.f32.mrf.mxu0
    %v3755 = vadd.f32 %v3731, %v3754
    %v3756 = vpop.f32.mrf.mxu0
    %v3757 = vadd.f32 %v3733, %v3756
    %3758 = vmatmul.bf16.gmra.mxu0 %v672
    %v3759 = vpop.f32.mrf.mxu0
    %v3760 = vadd.f32 %v3736, %v3759
    %v3761 = vpop.f32.mrf.mxu0
    %v3762 = vadd.f32 %v3738, %v3761
    %3763 = vdwg.mxu0
    %3764 = vmatpush.bf16.msra.mxu0 %v2614
    %3765 = vmatpush.bf16.msra.mxu0 %v2606
    %3766 = vmatpush.bf16.msra.mxu0 %v2598
    %3767 = vmatpush.bf16.msra.mxu0 %v2590
    %3768 = vmatpush.bf16.msra.mxu0 %v2582
    %3769 = vmatpush.bf16.msra.mxu0 %v2574
    %3770 = vmatpush.bf16.msra.mxu0 %v2566
    %3771 = vmatpush.bf16.msra.mxu0 %v2558
    %3772 = vmatmul.bf16.gmra.mxu0 %v657
    %v3773 = vpop.f32.mrf.mxu0
    %v3774 = vadd.f32 %v3750, %v3773
    %v3775 = vpop.f32.mrf.mxu0
    %v3776 = vadd.f32 %v3752, %v3775
    %3777 = vmatmul.bf16.gmra.mxu0 %v665
    %v3778 = vpop.f32.mrf.mxu0
    %v3779 = vadd.f32 %v3755, %v3778
    %v3780 = vpop.f32.mrf.mxu0
    %v3781 = vadd.f32 %v3757, %v3780
    %3782 = vmatmul.bf16.gmra.mxu0 %v673
    %v3783 = vpop.f32.mrf.mxu0
    %v3784 = vadd.f32 %v3760, %v3783
    %v3785 = vpop.f32.mrf.mxu0
    %v3786 = vadd.f32 %v3762, %v3785
    %3787 = vdwg.mxu0
    %3788 = vmatpush.bf16.msra.mxu0 %v2678
    %3789 = vmatpush.bf16.msra.mxu0 %v2670
    %3790 = vmatpush.bf16.msra.mxu0 %v2662
    %3791 = vmatpush.bf16.msra.mxu0 %v2654
    %3792 = vmatpush.bf16.msra.mxu0 %v2646
    %3793 = vmatpush.bf16.msra.mxu0 %v2638
    %3794 = vmatpush.bf16.msra.mxu0 %v2630
    %3795 = vmatpush.bf16.msra.mxu0 %v2622
    %3796 = vmatmul.bf16.gmra.mxu0 %v658
    %v3797 = vpop.f32.mrf.mxu0
    %v3798 = vadd.f32 %v3774, %v3797
    %v3799 = vpop.f32.mrf.mxu0
    %v3800 = vadd.f32 %v3776, %v3799
    %3801 = vmatmul.bf16.gmra.mxu0 %v666
    %v3802 = vpop.f32.mrf.mxu0
    %v3803 = vadd.f32 %v3779, %v3802
    %v3804 = vpop.f32.mrf.mxu0
    %v3805 = vadd.f32 %v3781, %v3804
    %3806 = vmatmul.bf16.gmra.mxu0 %v674
    %v3807 = vpop.f32.mrf.mxu0
    %v3808 = vadd.f32 %v3784, %v3807
    %v3809 = vpop.f32.mrf.mxu0
    %v3810 = vadd.f32 %v3786, %v3809
    %3811 = vdwg.mxu0
    %3812 = vmatpush.bf16.msra.mxu0 %v2742
    %3813 = vmatpush.bf16.msra.mxu0 %v2734
    %3814 = vmatpush.bf16.msra.mxu0 %v2726
    %3815 = vmatpush.bf16.msra.mxu0 %v2718
    %3816 = vmatpush.bf16.msra.mxu0 %v2710
    %3817 = vmatpush.bf16.msra.mxu0 %v2702
    %3818 = vmatpush.bf16.msra.mxu0 %v2694
    %3819 = vmatpush.bf16.msra.mxu0 %v2686
    %3820 = vmatmul.bf16.gmra.mxu0 %v659
    %v3821 = vpop.f32.mrf.mxu0
    %v3822 = vadd.f32 %v3798, %v3821
    %v3823 = vpop.f32.mrf.mxu0
    %v3824 = vadd.f32 %v3800, %v3823
    %3825 = vmatmul.bf16.gmra.mxu0 %v667
    %v3826 = vpop.f32.mrf.mxu0
    %v3827 = vadd.f32 %v3803, %v3826
    %v3828 = vpop.f32.mrf.mxu0
    %v3829 = vadd.f32 %v3805, %v3828
    %3830 = vmatmul.bf16.gmra.mxu0 %v675
    %v3831 = vpop.f32.mrf.mxu0
    %v3832 = vadd.f32 %v3808, %v3831
    %v3833 = vpop.f32.mrf.mxu0
    %v3834 = vadd.f32 %v3810, %v3833
    %3835 = vdwg.mxu0
    %3836 = vmatpush.bf16.msra.mxu0 %v2295
    %3837 = vmatpush.bf16.msra.mxu0 %v2287
    %3838 = vmatpush.bf16.msra.mxu0 %v2279
    %3839 = vmatpush.bf16.msra.mxu0 %v2271
    %3840 = vmatpush.bf16.msra.mxu0 %v2263
    %3841 = vmatpush.bf16.msra.mxu0 %v2255
    %3842 = vmatpush.bf16.msra.mxu0 %v2247
    %3843 = vmatpush.bf16.msra.mxu0 %v2239
    %3844 = vmatmul.bf16.gmra.mxu0 %v652
    %v3845 = vpop.f32.mrf.mxu0
    %v3846 = vadd.f32 0.0, %v3845
    %v3847 = vpop.f32.mrf.mxu0
    %v3848 = vadd.f32 0.0, %v3847
    %3849 = vmatmul.bf16.gmra.mxu0 %v660
    %v3850 = vpop.f32.mrf.mxu0
    %v3851 = vadd.f32 0.0, %v3850
    %v3852 = vpop.f32.mrf.mxu0
    %v3853 = vadd.f32 0.0, %v3852
    %3854 = vmatmul.bf16.gmra.mxu0 %v668
    %v3855 = vpop.f32.mrf.mxu0
    %v3856 = vadd.f32 0.0, %v3855
    %v3857 = vpop.f32.mrf.mxu0
    %v3858 = vadd.f32 0.0, %v3857
    %3859 = vdwg.mxu0
    %3860 = vmatpush.bf16.msra.mxu0 %v2359
    %3861 = vmatpush.bf16.msra.mxu0 %v2351
    %3862 = vmatpush.bf16.msra.mxu0 %v2343
    %3863 = vmatpush.bf16.msra.mxu0 %v2335
    %3864 = vmatpush.bf16.msra.mxu0 %v2327
    %3865 = vmatpush.bf16.msra.mxu0 %v2319
    %3866 = vmatpush.bf16.msra.mxu0 %v2311
    %3867 = vmatpush.bf16.msra.mxu0 %v2303
    %3868 = vmatmul.bf16.gmra.mxu0 %v653
    %v3869 = vpop.f32.mrf.mxu0
    %v3870 = vadd.f32 %v3846, %v3869
    %v3871 = vpop.f32.mrf.mxu0
    %v3872 = vadd.f32 %v3848, %v3871
    %3873 = vmatmul.bf16.gmra.mxu0 %v661
    %v3874 = vpop.f32.mrf.mxu0
    %v3875 = vadd.f32 %v3851, %v3874
    %v3876 = vpop.f32.mrf.mxu0
    %v3877 = vadd.f32 %v3853, %v3876
    %3878 = vmatmul.bf16.gmra.mxu0 %v669
    %v3879 = vpop.f32.mrf.mxu0
    %v3880 = vadd.f32 %v3856, %v3879
    %v3881 = vpop.f32.mrf.mxu0
    %v3882 = vadd.f32 %v3858, %v3881
    %3883 = vdwg.mxu0
    %3884 = vmatpush.bf16.msra.mxu0 %v2423
    %3885 = vmatpush.bf16.msra.mxu0 %v2415
    %3886 = vmatpush.bf16.msra.mxu0 %v2407
    %3887 = vmatpush.bf16.msra.mxu0 %v2399
    %3888 = vmatpush.bf16.msra.mxu0 %v2391
    %3889 = vmatpush.bf16.msra.mxu0 %v2383
    %3890 = vmatpush.bf16.msra.mxu0 %v2375
    %3891 = vmatpush.bf16.msra.mxu0 %v2367
    %3892 = vmatmul.bf16.gmra.mxu0 %v654
    %v3893 = vpop.f32.mrf.mxu0
    %v3894 = vadd.f32 %v3870, %v3893
    %v3895 = vpop.f32.mrf.mxu0
    %v3896 = vadd.f32 %v3872, %v3895
    %3897 = vmatmul.bf16.gmra.mxu0 %v662
    %v3898 = vpop.f32.mrf.mxu0
    %v3899 = vadd.f32 %v3875, %v3898
    %v3900 = vpop.f32.mrf.mxu0
    %v3901 = vadd.f32 %v3877, %v3900
    %3902 = vmatmul.bf16.gmra.mxu0 %v670
    %v3903 = vpop.f32.mrf.mxu0
    %v3904 = vadd.f32 %v3880, %v3903
    %v3905 = vpop.f32.mrf.mxu0
    %v3906 = vadd.f32 %v3882, %v3905
    %3907 = vdwg.mxu0
    %3908 = vmatpush.bf16.msra.mxu0 %v2487
    %3909 = vmatpush.bf16.msra.mxu0 %v2479
    %3910 = vmatpush.bf16.msra.mxu0 %v2471
    %3911 = vmatpush.bf16.msra.mxu0 %v2463
    %3912 = vmatpush.bf16.msra.mxu0 %v2455
    %3913 = vmatpush.bf16.msra.mxu0 %v2447
    %3914 = vmatpush.bf16.msra.mxu0 %v2439
    %3915 = vmatpush.bf16.msra.mxu0 %v2431
    %3916 = vmatmul.bf16.gmra.mxu0 %v655
    %v3917 = vpop.f32.mrf.mxu0
    %v3918 = vadd.f32 %v3894, %v3917
    %v3919 = vpop.f32.mrf.mxu0
    %v3920 = vadd.f32 %v3896, %v3919
    %3921 = vmatmul.bf16.gmra.mxu0 %v663
    %v3922 = vpop.f32.mrf.mxu0
    %v3923 = vadd.f32 %v3899, %v3922
    %v3924 = vpop.f32.mrf.mxu0
    %v3925 = vadd.f32 %v3901, %v3924
    %3926 = vmatmul.bf16.gmra.mxu0 %v671
    %v3927 = vpop.f32.mrf.mxu0
    %v3928 = vadd.f32 %v3904, %v3927
    %v3929 = vpop.f32.mrf.mxu0
    %v3930 = vadd.f32 %v3906, %v3929
    %3931 = vdwg.mxu0
    %3932 = vmatpush.bf16.msra.mxu0 %v2551
    %3933 = vmatpush.bf16.msra.mxu0 %v2543
    %3934 = vmatpush.bf16.msra.mxu0 %v2535
    %3935 = vmatpush.bf16.msra.mxu0 %v2527
    %3936 = vmatpush.bf16.msra.mxu0 %v2519
    %3937 = vmatpush.bf16.msra.mxu0 %v2511
    %3938 = vmatpush.bf16.msra.mxu0 %v2503
    %3939 = vmatpush.bf16.msra.mxu0 %v2495
    %3940 = vmatmul.bf16.gmra.mxu0 %v656
    %v3941 = vpop.f32.mrf.mxu0
    %v3942 = vadd.f32 %v3918, %v3941
    %v3943 = vpop.f32.mrf.mxu0
    %v3944 = vadd.f32 %v3920, %v3943
    %3945 = vmatmul.bf16.gmra.mxu0 %v664
    %v3946 = vpop.f32.mrf.mxu0
    %v3947 = vadd.f32 %v3923, %v3946
    %v3948 = vpop.f32.mrf.mxu0
    %v3949 = vadd.f32 %v3925, %v3948
    %3950 = vmatmul.bf16.gmra.mxu0 %v672
    %v3951 = vpop.f32.mrf.mxu0
    %v3952 = vadd.f32 %v3928, %v3951
    %v3953 = vpop.f32.mrf.mxu0
    %v3954 = vadd.f32 %v3930, %v3953
    %3955 = vdwg.mxu0
    %3956 = vmatpush.bf16.msra.mxu0 %v2615
    %3957 = vmatpush.bf16.msra.mxu0 %v2607
    %3958 = vmatpush.bf16.msra.mxu0 %v2599
    %3959 = vmatpush.bf16.msra.mxu0 %v2591
    %3960 = vmatpush.bf16.msra.mxu0 %v2583
    %3961 = vmatpush.bf16.msra.mxu0 %v2575
    %3962 = vmatpush.bf16.msra.mxu0 %v2567
    %3963 = vmatpush.bf16.msra.mxu0 %v2559
    %3964 = vmatmul.bf16.gmra.mxu0 %v657
    %v3965 = vpop.f32.mrf.mxu0
    %v3966 = vadd.f32 %v3942, %v3965
    %v3967 = vpop.f32.mrf.mxu0
    %v3968 = vadd.f32 %v3944, %v3967
    %3969 = vmatmul.bf16.gmra.mxu0 %v665
    %v3970 = vpop.f32.mrf.mxu0
    %v3971 = vadd.f32 %v3947, %v3970
    %v3972 = vpop.f32.mrf.mxu0
    %v3973 = vadd.f32 %v3949, %v3972
    %3974 = vmatmul.bf16.gmra.mxu0 %v673
    %v3975 = vpop.f32.mrf.mxu0
    %v3976 = vadd.f32 %v3952, %v3975
    %v3977 = vpop.f32.mrf.mxu0
    %v3978 = vadd.f32 %v3954, %v3977
    %3979 = vdwg.mxu0
    %3980 = vmatpush.bf16.msra.mxu0 %v2679
    %3981 = vmatpush.bf16.msra.mxu0 %v2671
    %3982 = vmatpush.bf16.msra.mxu0 %v2663
    %3983 = vmatpush.bf16.msra.mxu0 %v2655
    %3984 = vmatpush.bf16.msra.mxu0 %v2647
    %3985 = vmatpush.bf16.msra.mxu0 %v2639
    %3986 = vmatpush.bf16.msra.mxu0 %v2631
    %3987 = vmatpush.bf16.msra.mxu0 %v2623
    %3988 = vmatmul.bf16.gmra.mxu0 %v658
    %v3989 = vpop.f32.mrf.mxu0
    %v3990 = vadd.f32 %v3966, %v3989
    %v3991 = vpop.f32.mrf.mxu0
    %v3992 = vadd.f32 %v3968, %v3991
    %3993 = vmatmul.bf16.gmra.mxu0 %v666
    %v3994 = vpop.f32.mrf.mxu0
    %v3995 = vadd.f32 %v3971, %v3994
    %v3996 = vpop.f32.mrf.mxu0
    %v3997 = vadd.f32 %v3973, %v3996
    %3998 = vmatmul.bf16.gmra.mxu0 %v674
    %v3999 = vpop.f32.mrf.mxu0
    %v4000 = vadd.f32 %v3976, %v3999
    %v4001 = vpop.f32.mrf.mxu0
    %v4002 = vadd.f32 %v3978, %v4001
    %4003 = vdwg.mxu0
    %4004 = vmatpush.bf16.msra.mxu0 %v2743
    %4005 = vmatpush.bf16.msra.mxu0 %v2735
    %4006 = vmatpush.bf16.msra.mxu0 %v2727
    %4007 = vmatpush.bf16.msra.mxu0 %v2719
    %4008 = vmatpush.bf16.msra.mxu0 %v2711
    %4009 = vmatpush.bf16.msra.mxu0 %v2703
    %4010 = vmatpush.bf16.msra.mxu0 %v2695
    %4011 = vmatpush.bf16.msra.mxu0 %v2687
    %4012 = vmatmul.bf16.gmra.mxu0 %v659
    %v4013 = vpop.f32.mrf.mxu0
    %v4014 = vadd.f32 %v3990, %v4013
    %v4015 = vpop.f32.mrf.mxu0
    %v4016 = vadd.f32 %v3992, %v4015
    %4017 = vmatmul.bf16.gmra.mxu0 %v667
    %v4018 = vpop.f32.mrf.mxu0
    %v4019 = vadd.f32 %v3995, %v4018
    %v4020 = vpop.f32.mrf.mxu0
    %v4021 = vadd.f32 %v3997, %v4020
    %4022 = vmatmul.bf16.gmra.mxu0 %v675
    %v4023 = vpop.f32.mrf.mxu0
    %v4024 = vadd.f32 %v4000, %v4023
    %v4025 = vpop.f32.mrf.mxu0
    %v4026 = vadd.f32 %v4002, %v4025
    %4027 = vdwg.mxu0
    %4028 = vmatpush.bf16.msra.mxu0 %v2296
    %4029 = vmatpush.bf16.msra.mxu0 %v2288
    %4030 = vmatpush.bf16.msra.mxu0 %v2280
    %4031 = vmatpush.bf16.msra.mxu0 %v2272
    %4032 = vmatpush.bf16.msra.mxu0 %v2264
    %4033 = vmatpush.bf16.msra.mxu0 %v2256
    %4034 = vmatpush.bf16.msra.mxu0 %v2248
    %4035 = vmatpush.bf16.msra.mxu0 %v2240
    %4036 = vmatmul.bf16.gmra.mxu0 %v652
    %v4037 = vpop.f32.mrf.mxu0
    %v4038 = vadd.f32 0.0, %v4037
    %v4039 = vpop.f32.mrf.mxu0
    %v4040 = vadd.f32 0.0, %v4039
    %4041 = vmatmul.bf16.gmra.mxu0 %v660
    %v4042 = vpop.f32.mrf.mxu0
    %v4043 = vadd.f32 0.0, %v4042
    %v4044 = vpop.f32.mrf.mxu0
    %v4045 = vadd.f32 0.0, %v4044
    %4046 = vmatmul.bf16.gmra.mxu0 %v668
    %v4047 = vpop.f32.mrf.mxu0
    %v4048 = vadd.f32 0.0, %v4047
    %v4049 = vpop.f32.mrf.mxu0
    %v4050 = vadd.f32 0.0, %v4049
    %4051 = vdwg.mxu0
    %4052 = vmatpush.bf16.msra.mxu0 %v2360
    %4053 = vmatpush.bf16.msra.mxu0 %v2352
    %4054 = vmatpush.bf16.msra.mxu0 %v2344
    %4055 = vmatpush.bf16.msra.mxu0 %v2336
    %4056 = vmatpush.bf16.msra.mxu0 %v2328
    %4057 = vmatpush.bf16.msra.mxu0 %v2320
    %4058 = vmatpush.bf16.msra.mxu0 %v2312
    %4059 = vmatpush.bf16.msra.mxu0 %v2304
    %4060 = vmatmul.bf16.gmra.mxu0 %v653
    %v4061 = vpop.f32.mrf.mxu0
    %v4062 = vadd.f32 %v4038, %v4061
    %v4063 = vpop.f32.mrf.mxu0
    %v4064 = vadd.f32 %v4040, %v4063
    %4065 = vmatmul.bf16.gmra.mxu0 %v661
    %v4066 = vpop.f32.mrf.mxu0
    %v4067 = vadd.f32 %v4043, %v4066
    %v4068 = vpop.f32.mrf.mxu0
    %v4069 = vadd.f32 %v4045, %v4068
    %4070 = vmatmul.bf16.gmra.mxu0 %v669
    %v4071 = vpop.f32.mrf.mxu0
    %v4072 = vadd.f32 %v4048, %v4071
    %v4073 = vpop.f32.mrf.mxu0
    %v4074 = vadd.f32 %v4050, %v4073
    %4075 = vdwg.mxu0
    %4076 = vmatpush.bf16.msra.mxu0 %v2424
    %4077 = vmatpush.bf16.msra.mxu0 %v2416
    %4078 = vmatpush.bf16.msra.mxu0 %v2408
    %4079 = vmatpush.bf16.msra.mxu0 %v2400
    %4080 = vmatpush.bf16.msra.mxu0 %v2392
    %4081 = vmatpush.bf16.msra.mxu0 %v2384
    %4082 = vmatpush.bf16.msra.mxu0 %v2376
    %4083 = vmatpush.bf16.msra.mxu0 %v2368
    %4084 = vmatmul.bf16.gmra.mxu0 %v654
    %v4085 = vpop.f32.mrf.mxu0
    %v4086 = vadd.f32 %v4062, %v4085
    %v4087 = vpop.f32.mrf.mxu0
    %v4088 = vadd.f32 %v4064, %v4087
    %4089 = vmatmul.bf16.gmra.mxu0 %v662
    %v4090 = vpop.f32.mrf.mxu0
    %v4091 = vadd.f32 %v4067, %v4090
    %v4092 = vpop.f32.mrf.mxu0
    %v4093 = vadd.f32 %v4069, %v4092
    %4094 = vmatmul.bf16.gmra.mxu0 %v670
    %v4095 = vpop.f32.mrf.mxu0
    %v4096 = vadd.f32 %v4072, %v4095
    %v4097 = vpop.f32.mrf.mxu0
    %v4098 = vadd.f32 %v4074, %v4097
    %4099 = vdwg.mxu0
    %4100 = vmatpush.bf16.msra.mxu0 %v2488
    %4101 = vmatpush.bf16.msra.mxu0 %v2480
    %4102 = vmatpush.bf16.msra.mxu0 %v2472
    %4103 = vmatpush.bf16.msra.mxu0 %v2464
    %4104 = vmatpush.bf16.msra.mxu0 %v2456
    %4105 = vmatpush.bf16.msra.mxu0 %v2448
    %4106 = vmatpush.bf16.msra.mxu0 %v2440
    %4107 = vmatpush.bf16.msra.mxu0 %v2432
    %4108 = vmatmul.bf16.gmra.mxu0 %v655
    %v4109 = vpop.f32.mrf.mxu0
    %v4110 = vadd.f32 %v4086, %v4109
    %v4111 = vpop.f32.mrf.mxu0
    %v4112 = vadd.f32 %v4088, %v4111
    %4113 = vmatmul.bf16.gmra.mxu0 %v663
    %v4114 = vpop.f32.mrf.mxu0
    %v4115 = vadd.f32 %v4091, %v4114
    %v4116 = vpop.f32.mrf.mxu0
    %v4117 = vadd.f32 %v4093, %v4116
    %4118 = vmatmul.bf16.gmra.mxu0 %v671
    %v4119 = vpop.f32.mrf.mxu0
    %v4120 = vadd.f32 %v4096, %v4119
    %v4121 = vpop.f32.mrf.mxu0
    %v4122 = vadd.f32 %v4098, %v4121
    %4123 = vdwg.mxu0
    %4124 = vmatpush.bf16.msra.mxu0 %v2552
    %4125 = vmatpush.bf16.msra.mxu0 %v2544
    %4126 = vmatpush.bf16.msra.mxu0 %v2536
    %4127 = vmatpush.bf16.msra.mxu0 %v2528
    %4128 = vmatpush.bf16.msra.mxu0 %v2520
    %4129 = vmatpush.bf16.msra.mxu0 %v2512
    %4130 = vmatpush.bf16.msra.mxu0 %v2504
    %4131 = vmatpush.bf16.msra.mxu0 %v2496
    %4132 = vmatmul.bf16.gmra.mxu0 %v656
    %v4133 = vpop.f32.mrf.mxu0
    %v4134 = vadd.f32 %v4110, %v4133
    %v4135 = vpop.f32.mrf.mxu0
    %v4136 = vadd.f32 %v4112, %v4135
    %4137 = vmatmul.bf16.gmra.mxu0 %v664
    %v4138 = vpop.f32.mrf.mxu0
    %v4139 = vadd.f32 %v4115, %v4138
    %v4140 = vpop.f32.mrf.mxu0
    %v4141 = vadd.f32 %v4117, %v4140
    %4142 = vmatmul.bf16.gmra.mxu0 %v672
    %v4143 = vpop.f32.mrf.mxu0
    %v4144 = vadd.f32 %v4120, %v4143
    %v4145 = vpop.f32.mrf.mxu0
    %v4146 = vadd.f32 %v4122, %v4145
    %4147 = vdwg.mxu0
    %4148 = vmatpush.bf16.msra.mxu0 %v2616
    %4149 = vmatpush.bf16.msra.mxu0 %v2608
    %4150 = vmatpush.bf16.msra.mxu0 %v2600
    %4151 = vmatpush.bf16.msra.mxu0 %v2592
    %4152 = vmatpush.bf16.msra.mxu0 %v2584
    %4153 = vmatpush.bf16.msra.mxu0 %v2576
    %4154 = vmatpush.bf16.msra.mxu0 %v2568
    %4155 = vmatpush.bf16.msra.mxu0 %v2560
    %4156 = vmatmul.bf16.gmra.mxu0 %v657
    %v4157 = vpop.f32.mrf.mxu0
    %v4158 = vadd.f32 %v4134, %v4157
    %v4159 = vpop.f32.mrf.mxu0
    %v4160 = vadd.f32 %v4136, %v4159
    %4161 = vmatmul.bf16.gmra.mxu0 %v665
    %v4162 = vpop.f32.mrf.mxu0
    %v4163 = vadd.f32 %v4139, %v4162
    %v4164 = vpop.f32.mrf.mxu0
    %v4165 = vadd.f32 %v4141, %v4164
    %4166 = vmatmul.bf16.gmra.mxu0 %v673
    %v4167 = vpop.f32.mrf.mxu0
    %v4168 = vadd.f32 %v4144, %v4167
    %v4169 = vpop.f32.mrf.mxu0
    %v4170 = vadd.f32 %v4146, %v4169
    %4171 = vdwg.mxu0
    %4172 = vmatpush.bf16.msra.mxu0 %v2680
    %4173 = vmatpush.bf16.msra.mxu0 %v2672
    %4174 = vmatpush.bf16.msra.mxu0 %v2664
    %4175 = vmatpush.bf16.msra.mxu0 %v2656
    %4176 = vmatpush.bf16.msra.mxu0 %v2648
    %4177 = vmatpush.bf16.msra.mxu0 %v2640
    %4178 = vmatpush.bf16.msra.mxu0 %v2632
    %4179 = vmatpush.bf16.msra.mxu0 %v2624
    %4180 = vmatmul.bf16.gmra.mxu0 %v658
    %v4181 = vpop.f32.mrf.mxu0
    %v4182 = vadd.f32 %v4158, %v4181
    %v4183 = vpop.f32.mrf.mxu0
    %v4184 = vadd.f32 %v4160, %v4183
    %4185 = vmatmul.bf16.gmra.mxu0 %v666
    %v4186 = vpop.f32.mrf.mxu0
    %v4187 = vadd.f32 %v4163, %v4186
    %v4188 = vpop.f32.mrf.mxu0
    %v4189 = vadd.f32 %v4165, %v4188
    %4190 = vmatmul.bf16.gmra.mxu0 %v674
    %v4191 = vpop.f32.mrf.mxu0
    %v4192 = vadd.f32 %v4168, %v4191
    %v4193 = vpop.f32.mrf.mxu0
    %v4194 = vadd.f32 %v4170, %v4193
    %4195 = vdwg.mxu0
    %4196 = vmatpush.bf16.msra.mxu0 %v2744
    %4197 = vmatpush.bf16.msra.mxu0 %v2736
    %4198 = vmatpush.bf16.msra.mxu0 %v2728
    %4199 = vmatpush.bf16.msra.mxu0 %v2720
    %4200 = vmatpush.bf16.msra.mxu0 %v2712
    %4201 = vmatpush.bf16.msra.mxu0 %v2704
    %4202 = vmatpush.bf16.msra.mxu0 %v2696
    %4203 = vmatpush.bf16.msra.mxu0 %v2688
    %4204 = vmatmul.bf16.gmra.mxu0 %v659
    %v4205 = vpop.f32.mrf.mxu0
    %v4206 = vadd.f32 %v4182, %v4205
    %v4207 = vpop.f32.mrf.mxu0
    %v4208 = vadd.f32 %v4184, %v4207
    %4209 = vmatmul.bf16.gmra.mxu0 %v667
    %v4210 = vpop.f32.mrf.mxu0
    %v4211 = vadd.f32 %v4187, %v4210
    %v4212 = vpop.f32.mrf.mxu0
    %v4213 = vadd.f32 %v4189, %v4212
    %4214 = vmatmul.bf16.gmra.mxu0 %v675
    %v4215 = vpop.f32.mrf.mxu0
    %v4216 = vadd.f32 %v4192, %v4215
    %v4217 = vpop.f32.mrf.mxu0
    %v4218 = vadd.f32 %v4194, %v4217
    %4219 = vdwg.mxu0
    %4220 = vmatpush.bf16.msra.mxu0 %v2297
    %4221 = vmatpush.bf16.msra.mxu0 %v2289
    %4222 = vmatpush.bf16.msra.mxu0 %v2281
    %4223 = vmatpush.bf16.msra.mxu0 %v2273
    %4224 = vmatpush.bf16.msra.mxu0 %v2265
    %4225 = vmatpush.bf16.msra.mxu0 %v2257
    %4226 = vmatpush.bf16.msra.mxu0 %v2249
    %4227 = vmatpush.bf16.msra.mxu0 %v2241
    %4228 = vmatmul.bf16.gmra.mxu0 %v652
    %v4229 = vpop.f32.mrf.mxu0
    %v4230 = vadd.f32 0.0, %v4229
    %v4231 = vpop.f32.mrf.mxu0
    %v4232 = vadd.f32 0.0, %v4231
    %4233 = vmatmul.bf16.gmra.mxu0 %v660
    %v4234 = vpop.f32.mrf.mxu0
    %v4235 = vadd.f32 0.0, %v4234
    %v4236 = vpop.f32.mrf.mxu0
    %v4237 = vadd.f32 0.0, %v4236
    %4238 = vmatmul.bf16.gmra.mxu0 %v668
    %v4239 = vpop.f32.mrf.mxu0
    %v4240 = vadd.f32 0.0, %v4239
    %v4241 = vpop.f32.mrf.mxu0
    %v4242 = vadd.f32 0.0, %v4241
    %4243 = vdwg.mxu0
    %4244 = vmatpush.bf16.msra.mxu0 %v2361
    %4245 = vmatpush.bf16.msra.mxu0 %v2353
    %4246 = vmatpush.bf16.msra.mxu0 %v2345
    %4247 = vmatpush.bf16.msra.mxu0 %v2337
    %4248 = vmatpush.bf16.msra.mxu0 %v2329
    %4249 = vmatpush.bf16.msra.mxu0 %v2321
    %4250 = vmatpush.bf16.msra.mxu0 %v2313
    %4251 = vmatpush.bf16.msra.mxu0 %v2305
    %4252 = vmatmul.bf16.gmra.mxu0 %v653
    %v4253 = vpop.f32.mrf.mxu0
    %v4254 = vadd.f32 %v4230, %v4253
    %v4255 = vpop.f32.mrf.mxu0
    %v4256 = vadd.f32 %v4232, %v4255
    %4257 = vmatmul.bf16.gmra.mxu0 %v661
    %v4258 = vpop.f32.mrf.mxu0
    %v4259 = vadd.f32 %v4235, %v4258
    %v4260 = vpop.f32.mrf.mxu0
    %v4261 = vadd.f32 %v4237, %v4260
    %4262 = vmatmul.bf16.gmra.mxu0 %v669
    %v4263 = vpop.f32.mrf.mxu0
    %v4264 = vadd.f32 %v4240, %v4263
    %v4265 = vpop.f32.mrf.mxu0
    %v4266 = vadd.f32 %v4242, %v4265
    %4267 = vdwg.mxu0
    %4268 = vmatpush.bf16.msra.mxu0 %v2425
    %4269 = vmatpush.bf16.msra.mxu0 %v2417
    %4270 = vmatpush.bf16.msra.mxu0 %v2409
    %4271 = vmatpush.bf16.msra.mxu0 %v2401
    %4272 = vmatpush.bf16.msra.mxu0 %v2393
    %4273 = vmatpush.bf16.msra.mxu0 %v2385
    %4274 = vmatpush.bf16.msra.mxu0 %v2377
    %4275 = vmatpush.bf16.msra.mxu0 %v2369
    %4276 = vmatmul.bf16.gmra.mxu0 %v654
    %v4277 = vpop.f32.mrf.mxu0
    %v4278 = vadd.f32 %v4254, %v4277
    %v4279 = vpop.f32.mrf.mxu0
    %v4280 = vadd.f32 %v4256, %v4279
    %4281 = vmatmul.bf16.gmra.mxu0 %v662
    %v4282 = vpop.f32.mrf.mxu0
    %v4283 = vadd.f32 %v4259, %v4282
    %v4284 = vpop.f32.mrf.mxu0
    %v4285 = vadd.f32 %v4261, %v4284
    %4286 = vmatmul.bf16.gmra.mxu0 %v670
    %v4287 = vpop.f32.mrf.mxu0
    %v4288 = vadd.f32 %v4264, %v4287
    %v4289 = vpop.f32.mrf.mxu0
    %v4290 = vadd.f32 %v4266, %v4289
    %4291 = vdwg.mxu0
    %4292 = vmatpush.bf16.msra.mxu0 %v2489
    %4293 = vmatpush.bf16.msra.mxu0 %v2481
    %4294 = vmatpush.bf16.msra.mxu0 %v2473
    %4295 = vmatpush.bf16.msra.mxu0 %v2465
    %4296 = vmatpush.bf16.msra.mxu0 %v2457
    %4297 = vmatpush.bf16.msra.mxu0 %v2449
    %4298 = vmatpush.bf16.msra.mxu0 %v2441
    %4299 = vmatpush.bf16.msra.mxu0 %v2433
    %4300 = vmatmul.bf16.gmra.mxu0 %v655
    %v4301 = vpop.f32.mrf.mxu0
    %v4302 = vadd.f32 %v4278, %v4301
    %v4303 = vpop.f32.mrf.mxu0
    %v4304 = vadd.f32 %v4280, %v4303
    %4305 = vmatmul.bf16.gmra.mxu0 %v663
    %v4306 = vpop.f32.mrf.mxu0
    %v4307 = vadd.f32 %v4283, %v4306
    %v4308 = vpop.f32.mrf.mxu0
    %v4309 = vadd.f32 %v4285, %v4308
    %4310 = vmatmul.bf16.gmra.mxu0 %v671
    %v4311 = vpop.f32.mrf.mxu0
    %v4312 = vadd.f32 %v4288, %v4311
    %v4313 = vpop.f32.mrf.mxu0
    %v4314 = vadd.f32 %v4290, %v4313
    %4315 = vdwg.mxu0
    %4316 = vmatpush.bf16.msra.mxu0 %v2553
    %4317 = vmatpush.bf16.msra.mxu0 %v2545
    %4318 = vmatpush.bf16.msra.mxu0 %v2537
    %4319 = vmatpush.bf16.msra.mxu0 %v2529
    %4320 = vmatpush.bf16.msra.mxu0 %v2521
    %4321 = vmatpush.bf16.msra.mxu0 %v2513
    %4322 = vmatpush.bf16.msra.mxu0 %v2505
    %4323 = vmatpush.bf16.msra.mxu0 %v2497
    %4324 = vmatmul.bf16.gmra.mxu0 %v656
    %v4325 = vpop.f32.mrf.mxu0
    %v4326 = vadd.f32 %v4302, %v4325
    %v4327 = vpop.f32.mrf.mxu0
    %v4328 = vadd.f32 %v4304, %v4327
    %4329 = vmatmul.bf16.gmra.mxu0 %v664
    %v4330 = vpop.f32.mrf.mxu0
    %v4331 = vadd.f32 %v4307, %v4330
    %v4332 = vpop.f32.mrf.mxu0
    %v4333 = vadd.f32 %v4309, %v4332
    %4334 = vmatmul.bf16.gmra.mxu0 %v672
    %v4335 = vpop.f32.mrf.mxu0
    %v4336 = vadd.f32 %v4312, %v4335
    %v4337 = vpop.f32.mrf.mxu0
    %v4338 = vadd.f32 %v4314, %v4337
    %4339 = vdwg.mxu0
    %4340 = vmatpush.bf16.msra.mxu0 %v2617
    %4341 = vmatpush.bf16.msra.mxu0 %v2609
    %4342 = vmatpush.bf16.msra.mxu0 %v2601
    %4343 = vmatpush.bf16.msra.mxu0 %v2593
    %4344 = vmatpush.bf16.msra.mxu0 %v2585
    %4345 = vmatpush.bf16.msra.mxu0 %v2577
    %4346 = vmatpush.bf16.msra.mxu0 %v2569
    %4347 = vmatpush.bf16.msra.mxu0 %v2561
    %4348 = vmatmul.bf16.gmra.mxu0 %v657
    %v4349 = vpop.f32.mrf.mxu0
    %v4350 = vadd.f32 %v4326, %v4349
    %v4351 = vpop.f32.mrf.mxu0
    %v4352 = vadd.f32 %v4328, %v4351
    %4353 = vmatmul.bf16.gmra.mxu0 %v665
    %v4354 = vpop.f32.mrf.mxu0
    %v4355 = vadd.f32 %v4331, %v4354
    %v4356 = vpop.f32.mrf.mxu0
    %v4357 = vadd.f32 %v4333, %v4356
    %4358 = vmatmul.bf16.gmra.mxu0 %v673
    %v4359 = vpop.f32.mrf.mxu0
    %v4360 = vadd.f32 %v4336, %v4359
    %v4361 = vpop.f32.mrf.mxu0
    %v4362 = vadd.f32 %v4338, %v4361
    %4363 = vdwg.mxu0
    %4364 = vmatpush.bf16.msra.mxu0 %v2681
    %4365 = vmatpush.bf16.msra.mxu0 %v2673
    %4366 = vmatpush.bf16.msra.mxu0 %v2665
    %4367 = vmatpush.bf16.msra.mxu0 %v2657
    %4368 = vmatpush.bf16.msra.mxu0 %v2649
    %4369 = vmatpush.bf16.msra.mxu0 %v2641
    %4370 = vmatpush.bf16.msra.mxu0 %v2633
    %4371 = vmatpush.bf16.msra.mxu0 %v2625
    %4372 = vmatmul.bf16.gmra.mxu0 %v658
    %v4373 = vpop.f32.mrf.mxu0
    %v4374 = vadd.f32 %v4350, %v4373
    %v4375 = vpop.f32.mrf.mxu0
    %v4376 = vadd.f32 %v4352, %v4375
    %4377 = vmatmul.bf16.gmra.mxu0 %v666
    %v4378 = vpop.f32.mrf.mxu0
    %v4379 = vadd.f32 %v4355, %v4378
    %v4380 = vpop.f32.mrf.mxu0
    %v4381 = vadd.f32 %v4357, %v4380
    %4382 = vmatmul.bf16.gmra.mxu0 %v674
    %v4383 = vpop.f32.mrf.mxu0
    %v4384 = vadd.f32 %v4360, %v4383
    %v4385 = vpop.f32.mrf.mxu0
    %v4386 = vadd.f32 %v4362, %v4385
    %4387 = vdwg.mxu0
    %4388 = vmatpush.bf16.msra.mxu0 %v2745
    %4389 = vmatpush.bf16.msra.mxu0 %v2737
    %4390 = vmatpush.bf16.msra.mxu0 %v2729
    %4391 = vmatpush.bf16.msra.mxu0 %v2721
    %4392 = vmatpush.bf16.msra.mxu0 %v2713
    %4393 = vmatpush.bf16.msra.mxu0 %v2705
    %4394 = vmatpush.bf16.msra.mxu0 %v2697
    %4395 = vmatpush.bf16.msra.mxu0 %v2689
    %4396 = vmatmul.bf16.gmra.mxu0 %v659
    %v4397 = vpop.f32.mrf.mxu0
    %v4398 = vadd.f32 %v4374, %v4397
    %v4399 = vpop.f32.mrf.mxu0
    %v4400 = vadd.f32 %v4376, %v4399
    %4401 = vmatmul.bf16.gmra.mxu0 %v667
    %v4402 = vpop.f32.mrf.mxu0
    %v4403 = vadd.f32 %v4379, %v4402
    %v4404 = vpop.f32.mrf.mxu0
    %v4405 = vadd.f32 %v4381, %v4404
    %4406 = vmatmul.bf16.gmra.mxu0 %v675
    %v4407 = vpop.f32.mrf.mxu0
    %v4408 = vadd.f32 %v4384, %v4407
    %v4409 = vpop.f32.mrf.mxu0
    %v4410 = vadd.f32 %v4386, %v4409
    %4411 = vdwg.mxu0
    %4412 = vmatpush.bf16.msra.mxu0 %v2298
    %4413 = vmatpush.bf16.msra.mxu0 %v2290
    %4414 = vmatpush.bf16.msra.mxu0 %v2282
    %4415 = vmatpush.bf16.msra.mxu0 %v2274
    %4416 = vmatpush.bf16.msra.mxu0 %v2266
    %4417 = vmatpush.bf16.msra.mxu0 %v2258
    %4418 = vmatpush.bf16.msra.mxu0 %v2250
    %4419 = vmatpush.bf16.msra.mxu0 %v2242
    %4420 = vmatmul.bf16.gmra.mxu0 %v652
    %v4421 = vpop.f32.mrf.mxu0
    %v4422 = vadd.f32 0.0, %v4421
    %v4423 = vpop.f32.mrf.mxu0
    %v4424 = vadd.f32 0.0, %v4423
    %4425 = vmatmul.bf16.gmra.mxu0 %v660
    %v4426 = vpop.f32.mrf.mxu0
    %v4427 = vadd.f32 0.0, %v4426
    %v4428 = vpop.f32.mrf.mxu0
    %v4429 = vadd.f32 0.0, %v4428
    %4430 = vmatmul.bf16.gmra.mxu0 %v668
    %v4431 = vpop.f32.mrf.mxu0
    %v4432 = vadd.f32 0.0, %v4431
    %v4433 = vpop.f32.mrf.mxu0
    %v4434 = vadd.f32 0.0, %v4433
    %4435 = vdwg.mxu0
    %4436 = vmatpush.bf16.msra.mxu0 %v2362
    %4437 = vmatpush.bf16.msra.mxu0 %v2354
    %4438 = vmatpush.bf16.msra.mxu0 %v2346
    %4439 = vmatpush.bf16.msra.mxu0 %v2338
    %4440 = vmatpush.bf16.msra.mxu0 %v2330
    %4441 = vmatpush.bf16.msra.mxu0 %v2322
    %4442 = vmatpush.bf16.msra.mxu0 %v2314
    %4443 = vmatpush.bf16.msra.mxu0 %v2306
    %4444 = vmatmul.bf16.gmra.mxu0 %v653
    %v4445 = vpop.f32.mrf.mxu0
    %v4446 = vadd.f32 %v4422, %v4445
    %v4447 = vpop.f32.mrf.mxu0
    %v4448 = vadd.f32 %v4424, %v4447
    %4449 = vmatmul.bf16.gmra.mxu0 %v661
    %v4450 = vpop.f32.mrf.mxu0
    %v4451 = vadd.f32 %v4427, %v4450
    %v4452 = vpop.f32.mrf.mxu0
    %v4453 = vadd.f32 %v4429, %v4452
    %4454 = vmatmul.bf16.gmra.mxu0 %v669
    %v4455 = vpop.f32.mrf.mxu0
    %v4456 = vadd.f32 %v4432, %v4455
    %v4457 = vpop.f32.mrf.mxu0
    %v4458 = vadd.f32 %v4434, %v4457
    %4459 = vdwg.mxu0
    %4460 = vmatpush.bf16.msra.mxu0 %v2426
    %4461 = vmatpush.bf16.msra.mxu0 %v2418
    %4462 = vmatpush.bf16.msra.mxu0 %v2410
    %4463 = vmatpush.bf16.msra.mxu0 %v2402
    %4464 = vmatpush.bf16.msra.mxu0 %v2394
    %4465 = vmatpush.bf16.msra.mxu0 %v2386
    %4466 = vmatpush.bf16.msra.mxu0 %v2378
    %4467 = vmatpush.bf16.msra.mxu0 %v2370
    %4468 = vmatmul.bf16.gmra.mxu0 %v654
    %v4469 = vpop.f32.mrf.mxu0
    %v4470 = vadd.f32 %v4446, %v4469
    %v4471 = vpop.f32.mrf.mxu0
    %v4472 = vadd.f32 %v4448, %v4471
    %4473 = vmatmul.bf16.gmra.mxu0 %v662
    %v4474 = vpop.f32.mrf.mxu0
    %v4475 = vadd.f32 %v4451, %v4474
    %v4476 = vpop.f32.mrf.mxu0
    %v4477 = vadd.f32 %v4453, %v4476
    %4478 = vmatmul.bf16.gmra.mxu0 %v670
    %v4479 = vpop.f32.mrf.mxu0
    %v4480 = vadd.f32 %v4456, %v4479
    %v4481 = vpop.f32.mrf.mxu0
    %v4482 = vadd.f32 %v4458, %v4481
    %4483 = vdwg.mxu0
    %4484 = vmatpush.bf16.msra.mxu0 %v2490
    %4485 = vmatpush.bf16.msra.mxu0 %v2482
    %4486 = vmatpush.bf16.msra.mxu0 %v2474
    %4487 = vmatpush.bf16.msra.mxu0 %v2466
    %4488 = vmatpush.bf16.msra.mxu0 %v2458
    %4489 = vmatpush.bf16.msra.mxu0 %v2450
    %4490 = vmatpush.bf16.msra.mxu0 %v2442
    %4491 = vmatpush.bf16.msra.mxu0 %v2434
    %4492 = vmatmul.bf16.gmra.mxu0 %v655
    %v4493 = vpop.f32.mrf.mxu0
    %v4494 = vadd.f32 %v4470, %v4493
    %v4495 = vpop.f32.mrf.mxu0
    %v4496 = vadd.f32 %v4472, %v4495
    %4497 = vmatmul.bf16.gmra.mxu0 %v663
    %v4498 = vpop.f32.mrf.mxu0
    %v4499 = vadd.f32 %v4475, %v4498
    %v4500 = vpop.f32.mrf.mxu0
    %v4501 = vadd.f32 %v4477, %v4500
    %4502 = vmatmul.bf16.gmra.mxu0 %v671
    %v4503 = vpop.f32.mrf.mxu0
    %v4504 = vadd.f32 %v4480, %v4503
    %v4505 = vpop.f32.mrf.mxu0
    %v4506 = vadd.f32 %v4482, %v4505
    %4507 = vdwg.mxu0
    %4508 = vmatpush.bf16.msra.mxu0 %v2554
    %4509 = vmatpush.bf16.msra.mxu0 %v2546
    %4510 = vmatpush.bf16.msra.mxu0 %v2538
    %4511 = vmatpush.bf16.msra.mxu0 %v2530
    %4512 = vmatpush.bf16.msra.mxu0 %v2522
    %4513 = vmatpush.bf16.msra.mxu0 %v2514
    %4514 = vmatpush.bf16.msra.mxu0 %v2506
    %4515 = vmatpush.bf16.msra.mxu0 %v2498
    %4516 = vmatmul.bf16.gmra.mxu0 %v656
    %v4517 = vpop.f32.mrf.mxu0
    %v4518 = vadd.f32 %v4494, %v4517
    %v4519 = vpop.f32.mrf.mxu0
    %v4520 = vadd.f32 %v4496, %v4519
    %4521 = vmatmul.bf16.gmra.mxu0 %v664
    %v4522 = vpop.f32.mrf.mxu0
    %v4523 = vadd.f32 %v4499, %v4522
    %v4524 = vpop.f32.mrf.mxu0
    %v4525 = vadd.f32 %v4501, %v4524
    %4526 = vmatmul.bf16.gmra.mxu0 %v672
    %v4527 = vpop.f32.mrf.mxu0
    %v4528 = vadd.f32 %v4504, %v4527
    %v4529 = vpop.f32.mrf.mxu0
    %v4530 = vadd.f32 %v4506, %v4529
    %4531 = vdwg.mxu0
    %4532 = vmatpush.bf16.msra.mxu0 %v2618
    %4533 = vmatpush.bf16.msra.mxu0 %v2610
    %4534 = vmatpush.bf16.msra.mxu0 %v2602
    %4535 = vmatpush.bf16.msra.mxu0 %v2594
    %4536 = vmatpush.bf16.msra.mxu0 %v2586
    %4537 = vmatpush.bf16.msra.mxu0 %v2578
    %4538 = vmatpush.bf16.msra.mxu0 %v2570
    %4539 = vmatpush.bf16.msra.mxu0 %v2562
    %4540 = vmatmul.bf16.gmra.mxu0 %v657
    %v4541 = vpop.f32.mrf.mxu0
    %v4542 = vadd.f32 %v4518, %v4541
    %v4543 = vpop.f32.mrf.mxu0
    %v4544 = vadd.f32 %v4520, %v4543
    %4545 = vmatmul.bf16.gmra.mxu0 %v665
    %v4546 = vpop.f32.mrf.mxu0
    %v4547 = vadd.f32 %v4523, %v4546
    %v4548 = vpop.f32.mrf.mxu0
    %v4549 = vadd.f32 %v4525, %v4548
    %4550 = vmatmul.bf16.gmra.mxu0 %v673
    %v4551 = vpop.f32.mrf.mxu0
    %v4552 = vadd.f32 %v4528, %v4551
    %v4553 = vpop.f32.mrf.mxu0
    %v4554 = vadd.f32 %v4530, %v4553
    %4555 = vdwg.mxu0
    %4556 = vmatpush.bf16.msra.mxu0 %v2682
    %4557 = vmatpush.bf16.msra.mxu0 %v2674
    %4558 = vmatpush.bf16.msra.mxu0 %v2666
    %4559 = vmatpush.bf16.msra.mxu0 %v2658
    %4560 = vmatpush.bf16.msra.mxu0 %v2650
    %4561 = vmatpush.bf16.msra.mxu0 %v2642
    %4562 = vmatpush.bf16.msra.mxu0 %v2634
    %4563 = vmatpush.bf16.msra.mxu0 %v2626
    %4564 = vmatmul.bf16.gmra.mxu0 %v658
    %v4565 = vpop.f32.mrf.mxu0
    %v4566 = vadd.f32 %v4542, %v4565
    %v4567 = vpop.f32.mrf.mxu0
    %v4568 = vadd.f32 %v4544, %v4567
    %4569 = vmatmul.bf16.gmra.mxu0 %v666
    %v4570 = vpop.f32.mrf.mxu0
    %v4571 = vadd.f32 %v4547, %v4570
    %v4572 = vpop.f32.mrf.mxu0
    %v4573 = vadd.f32 %v4549, %v4572
    %4574 = vmatmul.bf16.gmra.mxu0 %v674
    %v4575 = vpop.f32.mrf.mxu0
    %v4576 = vadd.f32 %v4552, %v4575
    %v4577 = vpop.f32.mrf.mxu0
    %v4578 = vadd.f32 %v4554, %v4577
    %4579 = vdwg.mxu0
    %4580 = vmatpush.bf16.msra.mxu0 %v2746
    %4581 = vmatpush.bf16.msra.mxu0 %v2738
    %4582 = vmatpush.bf16.msra.mxu0 %v2730
    %4583 = vmatpush.bf16.msra.mxu0 %v2722
    %4584 = vmatpush.bf16.msra.mxu0 %v2714
    %4585 = vmatpush.bf16.msra.mxu0 %v2706
    %4586 = vmatpush.bf16.msra.mxu0 %v2698
    %4587 = vmatpush.bf16.msra.mxu0 %v2690
    %4588 = vmatmul.bf16.gmra.mxu0 %v659
    %v4589 = vpop.f32.mrf.mxu0
    %v4590 = vadd.f32 %v4566, %v4589
    %v4591 = vpop.f32.mrf.mxu0
    %v4592 = vadd.f32 %v4568, %v4591
    %4593 = vmatmul.bf16.gmra.mxu0 %v667
    %v4594 = vpop.f32.mrf.mxu0
    %v4595 = vadd.f32 %v4571, %v4594
    %v4596 = vpop.f32.mrf.mxu0
    %v4597 = vadd.f32 %v4573, %v4596
    %4598 = vmatmul.bf16.gmra.mxu0 %v675
    %v4599 = vpop.f32.mrf.mxu0
    %v4600 = vadd.f32 %v4576, %v4599
    %v4601 = vpop.f32.mrf.mxu0
    %v4602 = vadd.f32 %v4578, %v4601
    %4603 = vdwg.mxu0
    %4604 = vmatpush.bf16.msra.mxu0 %v2299
    %4605 = vmatpush.bf16.msra.mxu0 %v2291
    %4606 = vmatpush.bf16.msra.mxu0 %v2283
    %4607 = vmatpush.bf16.msra.mxu0 %v2275
    %4608 = vmatpush.bf16.msra.mxu0 %v2267
    %4609 = vmatpush.bf16.msra.mxu0 %v2259
    %4610 = vmatpush.bf16.msra.mxu0 %v2251
    %4611 = vmatpush.bf16.msra.mxu0 %v2243
    %4612 = vmatmul.bf16.gmra.mxu0 %v652
    %v4613 = vpop.f32.mrf.mxu0
    %v4614 = vadd.f32 0.0, %v4613
    %v4615 = vpop.f32.mrf.mxu0
    %v4616 = vadd.f32 0.0, %v4615
    %4617 = vmatmul.bf16.gmra.mxu0 %v660
    %v4618 = vpop.f32.mrf.mxu0
    %v4619 = vadd.f32 0.0, %v4618
    %v4620 = vpop.f32.mrf.mxu0
    %v4621 = vadd.f32 0.0, %v4620
    %4622 = vmatmul.bf16.gmra.mxu0 %v668
    %v4623 = vpop.f32.mrf.mxu0
    %v4624 = vadd.f32 0.0, %v4623
    %v4625 = vpop.f32.mrf.mxu0
    %v4626 = vadd.f32 0.0, %v4625
    %4627 = vdwg.mxu0
    %4628 = vmatpush.bf16.msra.mxu0 %v2363
    %4629 = vmatpush.bf16.msra.mxu0 %v2355
    %4630 = vmatpush.bf16.msra.mxu0 %v2347
    %4631 = vmatpush.bf16.msra.mxu0 %v2339
    %4632 = vmatpush.bf16.msra.mxu0 %v2331
    %4633 = vmatpush.bf16.msra.mxu0 %v2323
    %4634 = vmatpush.bf16.msra.mxu0 %v2315
    %4635 = vmatpush.bf16.msra.mxu0 %v2307
    %4636 = vmatmul.bf16.gmra.mxu0 %v653
    %v4637 = vpop.f32.mrf.mxu0
    %v4638 = vadd.f32 %v4614, %v4637
    %v4639 = vpop.f32.mrf.mxu0
    %v4640 = vadd.f32 %v4616, %v4639
    %4641 = vmatmul.bf16.gmra.mxu0 %v661
    %v4642 = vpop.f32.mrf.mxu0
    %v4643 = vadd.f32 %v4619, %v4642
    %v4644 = vpop.f32.mrf.mxu0
    %v4645 = vadd.f32 %v4621, %v4644
    %4646 = vmatmul.bf16.gmra.mxu0 %v669
    %v4647 = vpop.f32.mrf.mxu0
    %v4648 = vadd.f32 %v4624, %v4647
    %v4649 = vpop.f32.mrf.mxu0
    %v4650 = vadd.f32 %v4626, %v4649
    %4651 = vdwg.mxu0
    %4652 = vmatpush.bf16.msra.mxu0 %v2427
    %4653 = vmatpush.bf16.msra.mxu0 %v2419
    %4654 = vmatpush.bf16.msra.mxu0 %v2411
    %4655 = vmatpush.bf16.msra.mxu0 %v2403
    %4656 = vmatpush.bf16.msra.mxu0 %v2395
    %4657 = vmatpush.bf16.msra.mxu0 %v2387
    %4658 = vmatpush.bf16.msra.mxu0 %v2379
    %4659 = vmatpush.bf16.msra.mxu0 %v2371
    %4660 = vmatmul.bf16.gmra.mxu0 %v654
    %v4661 = vpop.f32.mrf.mxu0
    %v4662 = vadd.f32 %v4638, %v4661
    %v4663 = vpop.f32.mrf.mxu0
    %v4664 = vadd.f32 %v4640, %v4663
    %4665 = vmatmul.bf16.gmra.mxu0 %v662
    %v4666 = vpop.f32.mrf.mxu0
    %v4667 = vadd.f32 %v4643, %v4666
    %v4668 = vpop.f32.mrf.mxu0
    %v4669 = vadd.f32 %v4645, %v4668
    %4670 = vmatmul.bf16.gmra.mxu0 %v670
    %v4671 = vpop.f32.mrf.mxu0
    %v4672 = vadd.f32 %v4648, %v4671
    %v4673 = vpop.f32.mrf.mxu0
    %v4674 = vadd.f32 %v4650, %v4673
    %4675 = vdwg.mxu0
    %4676 = vmatpush.bf16.msra.mxu0 %v2491
    %4677 = vmatpush.bf16.msra.mxu0 %v2483
    %4678 = vmatpush.bf16.msra.mxu0 %v2475
    %4679 = vmatpush.bf16.msra.mxu0 %v2467
    %4680 = vmatpush.bf16.msra.mxu0 %v2459
    %4681 = vmatpush.bf16.msra.mxu0 %v2451
    %4682 = vmatpush.bf16.msra.mxu0 %v2443
    %4683 = vmatpush.bf16.msra.mxu0 %v2435
    %4684 = vmatmul.bf16.gmra.mxu0 %v655
    %v4685 = vpop.f32.mrf.mxu0
    %v4686 = vadd.f32 %v4662, %v4685
    %v4687 = vpop.f32.mrf.mxu0
    %v4688 = vadd.f32 %v4664, %v4687
    %4689 = vmatmul.bf16.gmra.mxu0 %v663
    %v4690 = vpop.f32.mrf.mxu0
    %v4691 = vadd.f32 %v4667, %v4690
    %v4692 = vpop.f32.mrf.mxu0
    %v4693 = vadd.f32 %v4669, %v4692
    %4694 = vmatmul.bf16.gmra.mxu0 %v671
    %v4695 = vpop.f32.mrf.mxu0
    %v4696 = vadd.f32 %v4672, %v4695
    %v4697 = vpop.f32.mrf.mxu0
    %v4698 = vadd.f32 %v4674, %v4697
    %4699 = vdwg.mxu0
    %4700 = vmatpush.bf16.msra.mxu0 %v2555
    %4701 = vmatpush.bf16.msra.mxu0 %v2547
    %4702 = vmatpush.bf16.msra.mxu0 %v2539
    %4703 = vmatpush.bf16.msra.mxu0 %v2531
    %4704 = vmatpush.bf16.msra.mxu0 %v2523
    %4705 = vmatpush.bf16.msra.mxu0 %v2515
    %4706 = vmatpush.bf16.msra.mxu0 %v2507
    %4707 = vmatpush.bf16.msra.mxu0 %v2499
    %4708 = vmatmul.bf16.gmra.mxu0 %v656
    %v4709 = vpop.f32.mrf.mxu0
    %v4710 = vadd.f32 %v4686, %v4709
    %v4711 = vpop.f32.mrf.mxu0
    %v4712 = vadd.f32 %v4688, %v4711
    %4713 = vmatmul.bf16.gmra.mxu0 %v664
    %v4714 = vpop.f32.mrf.mxu0
    %v4715 = vadd.f32 %v4691, %v4714
    %v4716 = vpop.f32.mrf.mxu0
    %v4717 = vadd.f32 %v4693, %v4716
    %4718 = vmatmul.bf16.gmra.mxu0 %v672
    %v4719 = vpop.f32.mrf.mxu0
    %v4720 = vadd.f32 %v4696, %v4719
    %v4721 = vpop.f32.mrf.mxu0
    %v4722 = vadd.f32 %v4698, %v4721
    %4723 = vdwg.mxu0
    %4724 = vmatpush.bf16.msra.mxu0 %v2619
    %4725 = vmatpush.bf16.msra.mxu0 %v2611
    %4726 = vmatpush.bf16.msra.mxu0 %v2603
    %4727 = vmatpush.bf16.msra.mxu0 %v2595
    %4728 = vmatpush.bf16.msra.mxu0 %v2587
    %4729 = vmatpush.bf16.msra.mxu0 %v2579
    %4730 = vmatpush.bf16.msra.mxu0 %v2571
    %4731 = vmatpush.bf16.msra.mxu0 %v2563
    %4732 = vmatmul.bf16.gmra.mxu0 %v657
    %v4733 = vpop.f32.mrf.mxu0
    %v4734 = vadd.f32 %v4710, %v4733
    %v4735 = vpop.f32.mrf.mxu0
    %v4736 = vadd.f32 %v4712, %v4735
    %4737 = vmatmul.bf16.gmra.mxu0 %v665
    %v4738 = vpop.f32.mrf.mxu0
    %v4739 = vadd.f32 %v4715, %v4738
    %v4740 = vpop.f32.mrf.mxu0
    %v4741 = vadd.f32 %v4717, %v4740
    %4742 = vmatmul.bf16.gmra.mxu0 %v673
    %v4743 = vpop.f32.mrf.mxu0
    %v4744 = vadd.f32 %v4720, %v4743
    %v4745 = vpop.f32.mrf.mxu0
    %v4746 = vadd.f32 %v4722, %v4745
    %4747 = vdwg.mxu0
    %4748 = vmatpush.bf16.msra.mxu0 %v2683
    %4749 = vmatpush.bf16.msra.mxu0 %v2675
    %4750 = vmatpush.bf16.msra.mxu0 %v2667
    %4751 = vmatpush.bf16.msra.mxu0 %v2659
    %4752 = vmatpush.bf16.msra.mxu0 %v2651
    %4753 = vmatpush.bf16.msra.mxu0 %v2643
    %4754 = vmatpush.bf16.msra.mxu0 %v2635
    %4755 = vmatpush.bf16.msra.mxu0 %v2627
    %4756 = vmatmul.bf16.gmra.mxu0 %v658
    %v4757 = vpop.f32.mrf.mxu0
    %v4758 = vadd.f32 %v4734, %v4757
    %v4759 = vpop.f32.mrf.mxu0
    %v4760 = vadd.f32 %v4736, %v4759
    %4761 = vmatmul.bf16.gmra.mxu0 %v666
    %v4762 = vpop.f32.mrf.mxu0
    %v4763 = vadd.f32 %v4739, %v4762
    %v4764 = vpop.f32.mrf.mxu0
    %v4765 = vadd.f32 %v4741, %v4764
    %4766 = vmatmul.bf16.gmra.mxu0 %v674
    %v4767 = vpop.f32.mrf.mxu0
    %v4768 = vadd.f32 %v4744, %v4767
    %v4769 = vpop.f32.mrf.mxu0
    %v4770 = vadd.f32 %v4746, %v4769
    %4771 = vdwg.mxu0
    %4772 = vmatpush.bf16.msra.mxu0 %v2747
    %4773 = vmatpush.bf16.msra.mxu0 %v2739
    %4774 = vmatpush.bf16.msra.mxu0 %v2731
    %4775 = vmatpush.bf16.msra.mxu0 %v2723
    %4776 = vmatpush.bf16.msra.mxu0 %v2715
    %4777 = vmatpush.bf16.msra.mxu0 %v2707
    %4778 = vmatpush.bf16.msra.mxu0 %v2699
    %4779 = vmatpush.bf16.msra.mxu0 %v2691
    %4780 = vmatmul.bf16.gmra.mxu0 %v659
    %v4781 = vpop.f32.mrf.mxu0
    %v4782 = vadd.f32 %v4758, %v4781
    %v4783 = vpop.f32.mrf.mxu0
    %v4784 = vadd.f32 %v4760, %v4783
    %4785 = vmatmul.bf16.gmra.mxu0 %v667
    %v4786 = vpop.f32.mrf.mxu0
    %v4787 = vadd.f32 %v4763, %v4786
    %v4788 = vpop.f32.mrf.mxu0
    %v4789 = vadd.f32 %v4765, %v4788
    %4790 = vmatmul.bf16.gmra.mxu0 %v675
    %v4791 = vpop.f32.mrf.mxu0
    %v4792 = vadd.f32 %v4768, %v4791
    %v4793 = vpop.f32.mrf.mxu0
    %v4794 = vadd.f32 %v4770, %v4793
    %4795 = vdwg.mxu0
    %v4796 = vmul.f32 %v3438, %v3438
    %v4797 = vmul.f32 %v3630, %v3630
    %v4798 = vmul.f32 %v3822, %v3822
    %v4799 = vmul.f32 %v4014, %v4014
    %v4800 = vmul.f32 %v3440, %v3440
    %v4801 = vmul.f32 %v3632, %v3632
    %v4802 = vmul.f32 %v3824, %v3824
    %v4803 = vmul.f32 %v4016, %v4016
    %v4804 = vmul.f32 %v3443, %v3443
    %v4805 = vmul.f32 %v3635, %v3635
    %v4806 = vmul.f32 %v3827, %v3827
    %v4807 = vmul.f32 %v4019, %v4019
    %v4808 = vmul.f32 %v3445, %v3445
    %v4809 = vmul.f32 %v3637, %v3637
    %v4810 = vmul.f32 %v3829, %v3829
    %v4811 = vmul.f32 %v4021, %v4021
    %v4812 = vmul.f32 %v3448, %v3448
    %v4813 = vmul.f32 %v3640, %v3640
    %v4814 = vmul.f32 %v3832, %v3832
    %v4815 = vmul.f32 %v4024, %v4024
    %v4816 = vmul.f32 %v3450, %v3450
    %v4817 = vmul.f32 %v3642, %v3642
    %v4818 = vmul.f32 %v3834, %v3834
    %v4819 = vmul.f32 %v4026, %v4026
    %v4820 = vmul.f32 %v4206, %v4206
    %v4821 = vmul.f32 %v4398, %v4398
    %v4822 = vmul.f32 %v4590, %v4590
    %v4823 = vmul.f32 %v4782, %v4782
    %v4824 = vmul.f32 %v4208, %v4208
    %v4825 = vmul.f32 %v4400, %v4400
    %v4826 = vmul.f32 %v4592, %v4592
    %v4827 = vmul.f32 %v4784, %v4784
    %v4828 = vmul.f32 %v4211, %v4211
    %v4829 = vmul.f32 %v4403, %v4403
    %v4830 = vmul.f32 %v4595, %v4595
    %v4831 = vmul.f32 %v4787, %v4787
    %v4832 = vmul.f32 %v4213, %v4213
    %v4833 = vmul.f32 %v4405, %v4405
    %v4834 = vmul.f32 %v4597, %v4597
    %v4835 = vmul.f32 %v4789, %v4789
    %v4836 = vmul.f32 %v4216, %v4216
    %v4837 = vmul.f32 %v4408, %v4408
    %v4838 = vmul.f32 %v4600, %v4600
    %v4839 = vmul.f32 %v4792, %v4792
    %v4840 = vmul.f32 %v4218, %v4218
    %v4841 = vmul.f32 %v4410, %v4410
    %v4842 = vmul.f32 %v4602, %v4602
    %v4843 = vmul.f32 %v4794, %v4794
    %v4844 = vadd.f32 %v4796, %v4820
    %v4845 = vadd.f32 %v4797, %v4821
    %v4846 = vadd.f32 %v4798, %v4822
    %v4847 = vadd.f32 %v4799, %v4823
    %v4848 = vadd.f32 %v4800, %v4824
    %v4849 = vadd.f32 %v4801, %v4825
    %v4850 = vadd.f32 %v4802, %v4826
    %v4851 = vadd.f32 %v4803, %v4827
    %v4852 = vadd.f32 %v4804, %v4828
    %v4853 = vadd.f32 %v4805, %v4829
    %v4854 = vadd.f32 %v4806, %v4830
    %v4855 = vadd.f32 %v4807, %v4831
    %v4856 = vadd.f32 %v4808, %v4832
    %v4857 = vadd.f32 %v4809, %v4833
    %v4858 = vadd.f32 %v4810, %v4834
    %v4859 = vadd.f32 %v4811, %v4835
    %v4860 = vadd.f32 %v4812, %v4836
    %v4861 = vadd.f32 %v4813, %v4837
    %v4862 = vadd.f32 %v4814, %v4838
    %v4863 = vadd.f32 %v4815, %v4839
    %v4864 = vadd.f32 %v4816, %v4840
    %v4865 = vadd.f32 %v4817, %v4841
    %v4866 = vadd.f32 %v4818, %v4842
    %v4867 = vadd.f32 %v4819, %v4843
    %4868 = vst [vmem:[#allocation7] sm:$0xff] %v4844
    %4869 = vst [vmem:[#allocation7 + $0x8] sm:$0xff] %v4845
    %4870 = vst [vmem:[#allocation7 + $0x10] sm:$0xff] %v4846
    %4871 = vst [vmem:[#allocation7 + $0x18] sm:$0xff] %v4847
    %4872 = vst [vmem:[#allocation7 + $0x20] sm:$0xff] %v4848
    %4873 = vst [vmem:[#allocation7 + $0x28] sm:$0xff] %v4849
    %4874 = vst [vmem:[#allocation7 + $0x30] sm:$0xff] %v4850
    %4875 = vst [vmem:[#allocation7 + $0x38] sm:$0xff] %v4851
    %4876 = vst [vmem:[#allocation7 + $0x40] sm:$0xff] %v4852
    %4877 = vst [vmem:[#allocation7 + $0x48] sm:$0xff] %v4853
    %4878 = vst [vmem:[#allocation7 + $0x50] sm:$0xff] %v4854
    %4879 = vst [vmem:[#allocation7 + $0x58] sm:$0xff] %v4855
    %4880 = vst [vmem:[#allocation7 + $0x60] sm:$0xff] %v4856
    %4881 = vst [vmem:[#allocation7 + $0x68] sm:$0xff] %v4857
    %4882 = vst [vmem:[#allocation7 + $0x70] sm:$0xff] %v4858
    %4883 = vst [vmem:[#allocation7 + $0x78] sm:$0xff] %v4859
    %4884 = vst [vmem:[#allocation7 + $0x80] sm:$0xff] %v4860
    %4885 = vst [vmem:[#allocation7 + $0x88] sm:$0xff] %v4861
    %4886 = vst [vmem:[#allocation7 + $0x90] sm:$0xff] %v4862
    %4887 = vst [vmem:[#allocation7 + $0x98] sm:$0xff] %v4863
    %4888 = vst [vmem:[#allocation7 + $0xa0] sm:$0xff] %v4864
    %4889 = vst [vmem:[#allocation7 + $0xa8] sm:$0xff] %v4865
    %4890 = vst [vmem:[#allocation7 + $0xb0] sm:$0xff] %v4866
    %4891 = vst [vmem:[#allocation7 + $0xb8] sm:$0xff] %v4867
    // Predicated region
    $region18: #{tpu_custom_call.1} parent=1 // pred_check
      _
    $region19: #{tpu_custom_call.1} parent=1 // pred_check_branch
      %4893 = sbr.rel (0) target = $region21
    $region20: #{tpu_custom_call.1} parent=1 // pred_region
      %4895 = vsyncadd [#allocation4], 0
      %s4896 = sshll.u32 [#allocation7], 4
      %s4897 = int_to_ptr.vmem [resolvable:$true] %s4896
      %s4898 = sshll.u32 %s2, 4
      %s4899 = int_to_ptr.hbm [resolvable:$true] %s4898
      %4904 = dma.vmem_to_hbm [thread:$0]  %s4897, 3072, %s4899, [#allocation4], 512, 512, 32
    $region21: #{tpu_custom_call.1} parent=1 // pred_fallthru
      _
    // Predicated region
    $region22: #{tpu_custom_call.1} parent=1 // pred_check
      _
    $region23: #{tpu_custom_call.1} parent=1 // pred_check_branch
      %4906 = sbr.rel (0) target = $region25
    $region24: #{tpu_custom_call.1} parent=1 // pred_region
      %4908 = dma.done [#allocation4], 3072
    $region25: #{tpu_custom_call.1} parent=1 // pred_fallthru
      _
    %4909 = vsyncpa [#allocation3], 1
    %4910 = vsyncpa [#allocation6], 1
    %4911 = vsyncpa [#allocation4], 1

</llo_original>
